<compile_context>
chip_gen: v7x
topology: tpu7x:2x2x1
jax: 0.10.0
libtpu: 0.0.40
codegen_flags: <defaults>
</compile_context>

<pallas_src>
import functools
import math

import jax
import jax.numpy as jnp
from jax.experimental import pallas as pl
from jax.experimental.pallas import tpu as pltpu


# ----------------------------------------------------------------------------- #
# Constant buffers (built in __init__ in the PyTorch module, not forward compute)
# ----------------------------------------------------------------------------- #
def make_sinusoidal_table(max_position_embeddings: int, num_hiddens: int) -> jnp.ndarray:
    """Replicates PositionEmbedding.__init__: returns (max_pos, H) float32."""
    pos = jnp.arange(max_position_embeddings, dtype=jnp.float32).reshape(-1, 1)
    div = jnp.power(
        10000.0, jnp.arange(0, num_hiddens, 2, dtype=jnp.float32) / num_hiddens
    )
    ang = pos / div                                        # (max_pos, H//2)
    table = jnp.zeros((max_position_embeddings, num_hiddens), dtype=jnp.float32)
    table = table.at[:, 0::2].set(jnp.sin(ang))
    table = table.at[:, 1::2].set(jnp.cos(ang))
    return table


# ----------------------------------------------------------------------------- #
# Fused Pallas kernel (one grid step == one batch element / sequence)
# ----------------------------------------------------------------------------- #
def _decoder_lm_kernel(
    ids_ref,                 # (S, 1)   int32 token ids for this sequence
    emb_ref,                 # (V, H)   embedding table
    pos_ref,                 # (S, H)   sinusoidal position embeddings
    wqkv_ref,                # (L, H, 3H) fused Q|K|V projection (lane-dense)
    wo_ref,                  # (L, H, H)  output projection
    ln1w_ref, ln1b_ref,      # (L, 1, H)  AddNorm1 LayerNorm affine
    ln2w_ref, ln2b_ref,      # (L, 1, H)  AddNorm2 LayerNorm affine
    w1_ref, b1_ref,          # (L, H, I), (L, 1, I) MLP linear1
    w2_ref, b2_ref,          # (L, I, H), (L, 1, H) MLP linear2
    plnw_ref, plnb_ref,      # (1, H)     post LayerNorm affine
    lmw_ref, lmb_ref,        # (H, V), (1, V) lm_head
    out_ref,                 # (1, 1, V)  logits of the LAST position (lane-dense)
    *,
    num_layers: int,
    num_heads: int,
    head_dim: int,
    ln_eps: float,
):
    f32 = jnp.float32
    S = pos_ref.shape[0]
    V = emb_ref.shape[0]
    H = emb_ref.shape[1]

    def layer_norm(v, w, b):
        mu = jnp.mean(v, axis=-1, keepdims=True)
        var = jnp.mean(jnp.square(v - mu), axis=-1, keepdims=True)
        return (v - mu) * jax.lax.rsqrt(var + ln_eps) * w + b

    # --- token embedding: gather expressed as a one-hot MXU matmul (V = 128) ---
    # TODO(synk): switch to a scalar-prefetch row gather if vocab grows large.
    ids = ids_ref[...]                                               # (S, 1) i32
    one_hot = (jax.lax.broadcasted_iota(jnp.int32, (S, V), 1) == ids).astype(f32)
    x = jnp.dot(one_hot, emb_ref[...], preferred_element_type=f32)   # (S, H)

    # --- position embedding add (dropout == identity at inference) -------------
    x = x + pos_ref[...]

    # --- causal additive mask, built in-kernel (free VPU work, no HBM DMA) -----
    row = jax.lax.broadcasted_iota(jnp.int32, (S, S), 0)
    col = jax.lax.broadcasted_iota(jnp.int32, (S, S), 1)
    mask = jnp.where(col <= row, 0.0, -1e30).astype(f32)             # (S, S)

    scale = 1.0 / math.sqrt(head_dim)

    for layer in range(num_layers):
        # ---- multi-head causal self-attention --------------------------------
        # Single fused QKV projection: one (S,H)@(H,3H) MXU push.
        qkv = jnp.dot(x, wqkv_ref[layer], preferred_element_type=f32)  # (S, 3H)

        head_out = []
        for h in range(num_heads):
            lo = h * head_dim
            q = qkv[:, lo:lo + head_dim]
            k = qkv[:, H + lo:H + lo + head_dim]
            v = qkv[:, 2 * H + lo:2 * H + lo + head_dim]
            s = jax.lax.dot_general(
                q, k, (((1,), (1,)), ((), ())), preferred_element_type=f32
            ) * scale + mask                                           # (S, S)
            s = s - jnp.max(s, axis=-1, keepdims=True)
            e = jnp.exp(s)
            p = e * pl.reciprocal(jnp.sum(e, axis=-1, keepdims=True), approx=True)
            head_out.append(jnp.dot(p, v, preferred_element_type=f32))  # (S, HD)

        # Concatenate heads once, then a single (H,H) Wo matmul.
        ctx = jnp.concatenate(head_out, axis=-1)                        # (S, H)
        attn = jnp.dot(ctx, wo_ref[layer], preferred_element_type=f32)

        # ---- AddNorm 1: ln(dropout(attn) + residual) --------------------------
        x = layer_norm(attn + x, ln1w_ref[layer], ln1b_ref[layer])

        # ---- MLP: linear -> ReLU -> linear ------------------------------------
        m = jnp.dot(x, w1_ref[layer], preferred_element_type=f32) + b1_ref[layer]
        m = jnp.maximum(m, 0.0)
        m = jnp.dot(m, w2_ref[layer], preferred_element_type=f32) + b2_ref[layer]

        # ---- AddNorm 2 ---------------------------------------------------------
        x = layer_norm(m + x, ln2w_ref[layer], ln2b_ref[layer])

    # --- post LayerNorm + lm_head for the LAST position only -------------------
    x_last = x[S - 1:S, :]                                              # (1, H)
    x_last = layer_norm(x_last, plnw_ref[...], plnb_ref[...])
    logits = jnp.dot(x_last, lmw_ref[...], preferred_element_type=f32) + lmb_ref[...]
    out_ref[...] = logits.reshape(1, 1, V)


# ----------------------------------------------------------------------------- #
# Wrapper: layout plumbing + pallas_call
# ----------------------------------------------------------------------------- #
def recommendation_model_forward(ids: jnp.ndarray, params: dict, config: dict) -> jnp.ndarray:
    """ids: (B, S) int32 token ids -> logits of the last position, (B, vocab)."""
    B, S = ids.shape
    H = config["num_hiddens"]
    V = config["vocab_size"]
    NH = config["num_heads"]
    HD = H // NH
    L = config["num_layers"]
    I = config["num_mlp_intermediate"]

    # Fused, lane-dense QKV weights. params store weights in (in, out) layout
    # (i.e. PyTorch nn.Linear weights (out, in) transposed).
    wqkv = jnp.concatenate([params["wq"], params["wk"], params["wv"]], axis=-1)  # (L,H,3H)

    args = (
        ids.reshape(B * S, 1).astype(jnp.int32),
        params["emb"].astype(jnp.float32),
        params["pos_table"][:S].astype(jnp.float32),
        wqkv.astype(jnp.float32),
        params["wo"].astype(jnp.float32),
        params["ln1_w"].reshape(L, 1, H), params["ln1_b"].reshape(L, 1, H),
        params["ln2_w"].reshape(L, 1, H), params["ln2_b"].reshape(L, 1, H),
        params["w1"], params["b1"].reshape(L, 1, I),
        params["w2"], params["b2"].reshape(L, 1, H),
        params["post_ln_w"].reshape(1, H), params["post_ln_b"].reshape(1, H),
        params["lm_w"], params["lm_b"].reshape(1, V),
    )

    def const_spec(shape):
        nd = len(shape)
        return pl.BlockSpec(shape, lambda b, _nd=nd: (0,) * _nd)

    in_specs = [pl.BlockSpec((S, 1), lambda b: (b, 0))]       # ids rows of batch b
    in_specs += [const_spec(a.shape) for a in args[1:]]       # weights: resident

    # Advisory cost estimate for the XLA scheduler.
    flops = B * (
        2 * S * V * H
        + L * (2 * S * H * 3 * H + 4 * S * S * H + 2 * S * H * H + 4 * S * H * I)
        + 2 * H * V
    )
    bytes_accessed = sum(int(a.size) * a.dtype.itemsize for a in args) + B * V * 4
    cost = pl.CostEstimate(
        flops=int(flops),
        transcendentals=int(B * L * NH * S * S),
        bytes_accessed=int(bytes_accessed),
    )

    kernel = functools.partial(
        _decoder_lm_kernel,
        num_layers=L,
        num_heads=NH,
        head_dim=HD,
        ln_eps=1e-5,
    )

    out = pl.pallas_call(
        kernel,
        grid=(B,),
        in_specs=in_specs,
        out_specs=pl.BlockSpec((1, 1, V), lambda b: (b, 0, 0)),
        out_shape=jax.ShapeDtypeStruct((B, 1, V), jnp.float32),
        compiler_params=pltpu.CompilerParams(dimension_semantics=("parallel",)),
        cost_estimate=cost,
    )(*args)

    # The module returns logits[:, -1, :]; that slice is done in-kernel already.
    return out.reshape(B, V)


# ----------------------------------------------------------------------------- #
# Parameter construction + pure-JAX reference for validation
# ----------------------------------------------------------------------------- #
def init_params(key, config):
    V = config["vocab_size"]
    H = config["num_hiddens"]
    L = config["num_layers"]
    I = config["num_mlp_intermediate"]
    P = config["max_position_embeddings"]
    ks = jax.random.split(key, 16)

    def nrm(k, shape, scale):
        return (scale * jax.random.normal(k, shape)).astype(jnp.float32)

    return dict(
        emb=nrm(ks[0], (V, H), 1.0),
        pos_table=make_sinusoidal_table(P, H),
        wq=nrm(ks[1], (L, H, H), 0.1),
        wk=nrm(ks[2], (L, H, H), 0.1),
        wv=nrm(ks[3], (L, H, H), 0.1),
        wo=nrm(ks[4], (L, H, H), 0.1),
        ln1_w=(1.0 + 0.1 * jax.random.normal(ks[5], (L, H))).astype(jnp.float32),
        ln1_b=nrm(ks[6], (L, H), 0.05),
        ln2_w=(1.0 + 0.1 * jax.random.normal(ks[7], (L, H))).astype(jnp.float32),
        ln2_b=nrm(ks[8], (L, H), 0.05),
        w1=nrm(ks[9], (L, H, I), 0.1),
        b1=nrm(ks[10], (L, I), 0.02),
        w2=nrm(ks[11], (L, I, H), 0.1),
        b2=nrm(ks[12], (L, H), 0.02),
        post_ln_w=(1.0 + 0.1 * jax.random.normal(ks[13], (H,))).astype(jnp.float32),
        post_ln_b=nrm(ks[14], (H,), 0.05),
        lm_w=nrm(ks[15], (H, V), 0.1),
        lm_b=jnp.zeros((V,), jnp.float32),
    )


def reference_forward(ids, params, config):
    """Plain-JAX re-implementation of RecommendationModel.forward (eval mode)."""
    B, S = ids.shape
    H = config["num_hiddens"]
    NH = config["num_heads"]
    HD = H // NH
    L = config["num_layers"]
    neg = jnp.finfo(jnp.float32).min
    scale = 1.0 / math.sqrt(HD)

    def layer_norm(v, w, b, eps=1e-5):
        mu = jnp.mean(v, axis=-1, keepdims=True)
        var = jnp.mean(jnp.square(v - mu), axis=-1, keepdims=True)
        return (v - mu) * jax.lax.rsqrt(var + eps) * w + b

    x = params["emb"][ids] + params["pos_table"][:S][None]               # (B, S, H)
    causal = jnp.where(
        jnp.arange(S)[None, :] <= jnp.arange(S)[:, None], 0.0, neg
    ).astype(jnp.float32)

    for layer in range(L):
        def heads(w, x=x):
            return (x @ w[layer]).reshape(B, S, NH, HD).transpose(0, 2, 1, 3)

        q, k, v = heads(params["wq"]), heads(params["wk"]), heads(params["wv"])
        s = jnp.einsum("bhqd,bhkd->bhqk", q, k) * scale + causal[None, None]
        a = jax.nn.softmax(s, axis=-1)
        o = jnp.einsum("bhqk,bhkd->bhqd", a, v).transpose(0, 2, 1, 3).reshape(B, S, H)
        o = o @ params["wo"][layer]
        x = layer_norm(o + x, params["ln1_w"][layer], params["ln1_b"][layer])
        y = jax.nn.relu(x @ params["w1"][layer] + params["b1"][layer])
        y = y @ params["w2"][layer] + params["b2"][layer]
        x = layer_norm(y + x, params["ln2_w"][layer], params["ln2_b"][layer])

    x = layer_norm(x, params["post_ln_w"], params["post_ln_b"])
    logits = x @ params["lm_w"] + params["lm_b"]
    return logits[:, -1, :]


# ----------------------------------------------------------------------------- #
if __name__ == "__main__":
    config = dict(
        vocab_size=128,
        num_hiddens=32,
        num_heads=4,
        num_layers=2,
        num_mlp_intermediate=64,
        max_position_embeddings=16,
        dropout=0.1,   # identity at inference
    )
    B, S = 2, 8

    root = jax.random.PRNGKey(0)
    k_param, k_ids = jax.random.split(root)
    params = init_params(k_param, config)
    ids = jax.random.randint(k_ids, (B, S), 0, config["vocab_size"], dtype=jnp.int32)

    logits = jax.block_until_ready(recommendation_model_forward(ids, params, config))
    ref = jax.block_until_ready(reference_forward(ids, params, config))

    assert logits.shape == (B, config["vocab_size"]), logits.shape
    assert bool(jnp.all(jnp.isfinite(logits)))
    max_diff = float(jnp.max(jnp.abs(logits - ref)))
    assert jnp.allclose(logits, ref, atol=2e-2, rtol=2e-2), f"max abs diff {max_diff}"

    print("KERNEL_OK")
</pallas_src>

<mosaic_0001>
module attributes {stable_mosaic.version = 11 : i64} {
  func.func @_decoder_lm_kernel(%arg0: i32, %arg1: memref<8x1xi32, #tpu.memory_space<vmem>>, %arg2: memref<128x32xf32, #tpu.memory_space<vmem>>, %arg3: memref<8x32xf32, #tpu.memory_space<vmem>>, %arg4: memref<2x32x96xf32, #tpu.memory_space<vmem>>, %arg5: memref<2x32x32xf32, #tpu.memory_space<vmem>>, %arg6: memref<2x1x32xf32, #tpu.memory_space<vmem>>, %arg7: memref<2x1x32xf32, #tpu.memory_space<vmem>>, %arg8: memref<2x1x32xf32, #tpu.memory_space<vmem>>, %arg9: memref<2x1x32xf32, #tpu.memory_space<vmem>>, %arg10: memref<2x32x64xf32, #tpu.memory_space<vmem>>, %arg11: memref<2x1x64xf32, #tpu.memory_space<vmem>>, %arg12: memref<2x64x32xf32, #tpu.memory_space<vmem>>, %arg13: memref<2x1x32xf32, #tpu.memory_space<vmem>>, %arg14: memref<1x32xf32, #tpu.memory_space<vmem>>, %arg15: memref<1x32xf32, #tpu.memory_space<vmem>>, %arg16: memref<32x128xf32, #tpu.memory_space<vmem>>, %arg17: memref<1x128xf32, #tpu.memory_space<vmem>>, %arg18: memref<1x1x128xf32, #tpu.memory_space<vmem>>) attributes {dimension_semantics = [#tpu.dimension_semantics<parallel>], iteration_bounds = array<i64: 2>, scalar_prefetch = 0 : i64, scratch_operands = 0 : i64, tpu.core_type = #tpu.core_type<tc>, window_params = [{transform_indices = @transform_0, window_bounds = array<i64: 8, 1>}, {pipeline_mode = #tpu.pipeline_mode<synchronous>, transform_indices = @transform_1, window_bounds = array<i64: 128, 32>}, {pipeline_mode = #tpu.pipeline_mode<synchronous>, transform_indices = @transform_2, window_bounds = array<i64: 8, 32>}, {pipeline_mode = #tpu.pipeline_mode<synchronous>, transform_indices = @transform_3, window_bounds = array<i64: 2, 32, 96>}, {pipeline_mode = #tpu.pipeline_mode<synchronous>, transform_indices = @transform_4, window_bounds = array<i64: 2, 32, 32>}, {pipeline_mode = #tpu.pipeline_mode<synchronous>, transform_indices = @transform_5, window_bounds = array<i64: 2, 1, 32>}, {pipeline_mode = #tpu.pipeline_mode<synchronous>, transform_indices = @transform_6, window_bounds = array<i64: 2, 1, 32>}, {pipeline_mode = #tpu.pipeline_mode<synchronous>, transform_indices = @transform_7, window_bounds = array<i64: 2, 1, 32>}, {pipeline_mode = #tpu.pipeline_mode<synchronous>, transform_indices = @transform_8, window_bounds = array<i64: 2, 1, 32>}, {pipeline_mode = #tpu.pipeline_mode<synchronous>, transform_indices = @transform_9, window_bounds = array<i64: 2, 32, 64>}, {pipeline_mode = #tpu.pipeline_mode<synchronous>, transform_indices = @transform_10, window_bounds = array<i64: 2, 1, 64>}, {pipeline_mode = #tpu.pipeline_mode<synchronous>, transform_indices = @transform_11, window_bounds = array<i64: 2, 64, 32>}, {pipeline_mode = #tpu.pipeline_mode<synchronous>, transform_indices = @transform_12, window_bounds = array<i64: 2, 1, 32>}, {pipeline_mode = #tpu.pipeline_mode<synchronous>, transform_indices = @transform_13, window_bounds = array<i64: 1, 32>}, {pipeline_mode = #tpu.pipeline_mode<synchronous>, transform_indices = @transform_14, window_bounds = array<i64: 1, 32>}, {pipeline_mode = #tpu.pipeline_mode<synchronous>, transform_indices = @transform_15, window_bounds = array<i64: 32, 128>}, {pipeline_mode = #tpu.pipeline_mode<synchronous>, transform_indices = @transform_16, window_bounds = array<i64: 1, 128>}, {transform_indices = @transform_17, window_bounds = array<i64: 1, 1, 128>}]} {
    %c0 = arith.constant 0 : index
    %c0_0 = arith.constant 0 : index
    %0 = vector.load %arg1[%c0, %c0_0] : memref<8x1xi32, #tpu.memory_space<vmem>>, vector<8x1xi32>
    %1 = tpu.iota {dimensions = array<i32: 1>} : vector<8x128xi32>
    %2 = vector.broadcast %0 : vector<8x1xi32> to vector<8x128xi32>
    %3 = arith.cmpi eq, %1, %2 : vector<8x128xi32>
    %4 = arith.extui %3 : vector<8x128xi1> to vector<8x128xi32>
    %5 = arith.sitofp %4 : vector<8x128xi32> to vector<8x128xf32>
    %c0_1 = arith.constant 0 : index
    %c0_2 = arith.constant 0 : index
    %6 = vector.load %arg2[%c0_1, %c0_2] : memref<128x32xf32, #tpu.memory_space<vmem>>, vector<128x32xf32>
    %cst = arith.constant dense<0.000000e+00> : vector<8x32xf32>
    %7 = tpu.matmul %5, %6, %cst {dimension_numbers = #tpu.dot_dimension_numbers<[1], [0], [0], [1], [0, 0, 1, 1], [], []>} : vector<8x128xf32>, vector<128x32xf32>, vector<8x32xf32> -> vector<8x32xf32>
    %c0_3 = arith.constant 0 : index
    %c0_4 = arith.constant 0 : index
    %8 = vector.load %arg3[%c0_3, %c0_4] : memref<8x32xf32, #tpu.memory_space<vmem>>, vector<8x32xf32>
    %9 = arith.addf %7, %8 : vector<8x32xf32>
    %10 = tpu.iota {dimensions = array<i32: 0>} : vector<8x8xi32>
    %11 = tpu.iota {dimensions = array<i32: 1>} : vector<8x8xi32>
    %12 = arith.cmpi sle, %11, %10 : vector<8x8xi32>
    %cst_5 = arith.constant 0.000000e+00 : f32
    %cst_6 = arith.constant -1.000000e+30 : f32
    %13 = vector.broadcast %cst_5 : f32 to vector<8x8xf32>
    %14 = vector.broadcast %cst_6 : f32 to vector<8x8xf32>
    %15 = arith.select %12, %13, %14 : vector<8x8xi1>, vector<8x8xf32>
    %c0_7 = arith.constant 0 : index
    %c0_8 = arith.constant 0 : index
    %c0_9 = arith.constant 0 : index
    %16 = vector.load %arg4[%c0_7, %c0_8, %c0_9] : memref<2x32x96xf32, #tpu.memory_space<vmem>>, vector<1x32x96xf32>
    %17 = vector.shape_cast %16 : vector<1x32x96xf32> to vector<32x96xf32>
    %cst_10 = arith.constant dense<0.000000e+00> : vector<8x96xf32>
    %18 = tpu.matmul %9, %17, %cst_10 {dimension_numbers = #tpu.dot_dimension_numbers<[1], [0], [0], [1], [0, 0, 1, 1], [], []>} : vector<8x32xf32>, vector<32x96xf32>, vector<8x96xf32> -> vector<8x96xf32>
    %19 = vector.extract_strided_slice %18 {offsets = [0, 0], sizes = [8, 8], strides = [1, 1]} : vector<8x96xf32> to vector<8x8xf32>
    %20 = vector.extract_strided_slice %18 {offsets = [0, 32], sizes = [8, 8], strides = [1, 1]} : vector<8x96xf32> to vector<8x8xf32>
    %21 = vector.extract_strided_slice %18 {offsets = [0, 64], sizes = [8, 8], strides = [1, 1]} : vector<8x96xf32> to vector<8x8xf32>
    %cst_11 = arith.constant dense<0.000000e+00> : vector<8x8xf32>
    %22 = tpu.matmul %19, %20, %cst_11 {dimension_numbers = #tpu.dot_dimension_numbers<[1], [1], [0], [0], [0, 0, 1, 0], [], []>} : vector<8x8xf32>, vector<8x8xf32>, vector<8x8xf32> -> vector<8x8xf32>
    %cst_12 = arith.constant 0.353553385 : f32
    %23 = vector.broadcast %cst_12 : f32 to vector<8x8xf32>
    %24 = arith.mulf %22, %23 : vector<8x8xf32>
    %25 = arith.addf %24, %15 : vector<8x8xf32>
    %cst_13 = arith.constant dense<0xFF800000> : vector<8xf32>
    %26 = vector.multi_reduction <maximumf>, %25, %cst_13 [1] : vector<8x8xf32> to vector<8xf32>
    %27 = vector.shape_cast %26 : vector<8xf32> to vector<8x1xf32>
    %28 = vector.broadcast %27 : vector<8x1xf32> to vector<8x8xf32>
    %29 = arith.subf %25, %28 : vector<8x8xf32>
    %30 = math.exp %29 : vector<8x8xf32>
    %cst_14 = arith.constant dense<0.000000e+00> : vector<8xf32>
    %31 = vector.multi_reduction <add>, %30, %cst_14 [1] : vector<8x8xf32> to vector<8xf32>
    %32 = vector.shape_cast %31 : vector<8xf32> to vector<8x1xf32>
    %33 = tpu.reciprocal %32 {approx = true} : vector<8x1xf32> -> vector<8x1xf32>
    %34 = vector.broadcast %33 : vector<8x1xf32> to vector<8x8xf32>
    %35 = arith.mulf %30, %34 : vector<8x8xf32>
    %cst_15 = arith.constant dense<0.000000e+00> : vector<8x8xf32>
    %36 = tpu.matmul %35, %21, %cst_15 {dimension_numbers = #tpu.dot_dimension_numbers<[1], [0], [0], [1], [0, 0, 1, 1], [], []>} : vector<8x8xf32>, vector<8x8xf32>, vector<8x8xf32> -> vector<8x8xf32>
    %37 = vector.extract_strided_slice %18 {offsets = [0, 8], sizes = [8, 8], strides = [1, 1]} : vector<8x96xf32> to vector<8x8xf32>
    %38 = vector.extract_strided_slice %18 {offsets = [0, 40], sizes = [8, 8], strides = [1, 1]} : vector<8x96xf32> to vector<8x8xf32>
    %39 = vector.extract_strided_slice %18 {offsets = [0, 72], sizes = [8, 8], strides = [1, 1]} : vector<8x96xf32> to vector<8x8xf32>
    %cst_16 = arith.constant dense<0.000000e+00> : vector<8x8xf32>
    %40 = tpu.matmul %37, %38, %cst_16 {dimension_numbers = #tpu.dot_dimension_numbers<[1], [1], [0], [0], [0, 0, 1, 0], [], []>} : vector<8x8xf32>, vector<8x8xf32>, vector<8x8xf32> -> vector<8x8xf32>
    %cst_17 = arith.constant 0.353553385 : f32
    %41 = vector.broadcast %cst_17 : f32 to vector<8x8xf32>
    %42 = arith.mulf %40, %41 : vector<8x8xf32>
    %43 = arith.addf %42, %15 : vector<8x8xf32>
    %cst_18 = arith.constant dense<0xFF800000> : vector<8xf32>
    %44 = vector.multi_reduction <maximumf>, %43, %cst_18 [1] : vector<8x8xf32> to vector<8xf32>
    %45 = vector.shape_cast %44 : vector<8xf32> to vector<8x1xf32>
    %46 = vector.broadcast %45 : vector<8x1xf32> to vector<8x8xf32>
    %47 = arith.subf %43, %46 : vector<8x8xf32>
    %48 = math.exp %47 : vector<8x8xf32>
    %cst_19 = arith.constant dense<0.000000e+00> : vector<8xf32>
    %49 = vector.multi_reduction <add>, %48, %cst_19 [1] : vector<8x8xf32> to vector<8xf32>
    %50 = vector.shape_cast %49 : vector<8xf32> to vector<8x1xf32>
    %51 = tpu.reciprocal %50 {approx = true} : vector<8x1xf32> -> vector<8x1xf32>
    %52 = vector.broadcast %51 : vector<8x1xf32> to vector<8x8xf32>
    %53 = arith.mulf %48, %52 : vector<8x8xf32>
    %cst_20 = arith.constant dense<0.000000e+00> : vector<8x8xf32>
    %54 = tpu.matmul %53, %39, %cst_20 {dimension_numbers = #tpu.dot_dimension_numbers<[1], [0], [0], [1], [0, 0, 1, 1], [], []>} : vector<8x8xf32>, vector<8x8xf32>, vector<8x8xf32> -> vector<8x8xf32>
    %55 = vector.extract_strided_slice %18 {offsets = [0, 16], sizes = [8, 8], strides = [1, 1]} : vector<8x96xf32> to vector<8x8xf32>
    %56 = vector.extract_strided_slice %18 {offsets = [0, 48], sizes = [8, 8], strides = [1, 1]} : vector<8x96xf32> to vector<8x8xf32>
    %57 = vector.extract_strided_slice %18 {offsets = [0, 80], sizes = [8, 8], strides = [1, 1]} : vector<8x96xf32> to vector<8x8xf32>
    %cst_21 = arith.constant dense<0.000000e+00> : vector<8x8xf32>
    %58 = tpu.matmul %55, %56, %cst_21 {dimension_numbers = #tpu.dot_dimension_numbers<[1], [1], [0], [0], [0, 0, 1, 0], [], []>} : vector<8x8xf32>, vector<8x8xf32>, vector<8x8xf32> -> vector<8x8xf32>
    %cst_22 = arith.constant 0.353553385 : f32
    %59 = vector.broadcast %cst_22 : f32 to vector<8x8xf32>
    %60 = arith.mulf %58, %59 : vector<8x8xf32>
    %61 = arith.addf %60, %15 : vector<8x8xf32>
    %cst_23 = arith.constant dense<0xFF800000> : vector<8xf32>
    %62 = vector.multi_reduction <maximumf>, %61, %cst_23 [1] : vector<8x8xf32> to vector<8xf32>
    %63 = vector.shape_cast %62 : vector<8xf32> to vector<8x1xf32>
    %64 = vector.broadcast %63 : vector<8x1xf32> to vector<8x8xf32>
    %65 = arith.subf %61, %64 : vector<8x8xf32>
    %66 = math.exp %65 : vector<8x8xf32>
    %cst_24 = arith.constant dense<0.000000e+00> : vector<8xf32>
    %67 = vector.multi_reduction <add>, %66, %cst_24 [1] : vector<8x8xf32> to vector<8xf32>
    %68 = vector.shape_cast %67 : vector<8xf32> to vector<8x1xf32>
    %69 = tpu.reciprocal %68 {approx = true} : vector<8x1xf32> -> vector<8x1xf32>
    %70 = vector.broadcast %69 : vector<8x1xf32> to vector<8x8xf32>
    %71 = arith.mulf %66, %70 : vector<8x8xf32>
    %cst_25 = arith.constant dense<0.000000e+00> : vector<8x8xf32>
    %72 = tpu.matmul %71, %57, %cst_25 {dimension_numbers = #tpu.dot_dimension_numbers<[1], [0], [0], [1], [0, 0, 1, 1], [], []>} : vector<8x8xf32>, vector<8x8xf32>, vector<8x8xf32> -> vector<8x8xf32>
    %73 = vector.extract_strided_slice %18 {offsets = [0, 24], sizes = [8, 8], strides = [1, 1]} : vector<8x96xf32> to vector<8x8xf32>
    %74 = vector.extract_strided_slice %18 {offsets = [0, 56], sizes = [8, 8], strides = [1, 1]} : vector<8x96xf32> to vector<8x8xf32>
    %75 = vector.extract_strided_slice %18 {offsets = [0, 88], sizes = [8, 8], strides = [1, 1]} : vector<8x96xf32> to vector<8x8xf32>
    %cst_26 = arith.constant dense<0.000000e+00> : vector<8x8xf32>
    %76 = tpu.matmul %73, %74, %cst_26 {dimension_numbers = #tpu.dot_dimension_numbers<[1], [1], [0], [0], [0, 0, 1, 0], [], []>} : vector<8x8xf32>, vector<8x8xf32>, vector<8x8xf32> -> vector<8x8xf32>
    %cst_27 = arith.constant 0.353553385 : f32
    %77 = vector.broadcast %cst_27 : f32 to vector<8x8xf32>
    %78 = arith.mulf %76, %77 : vector<8x8xf32>
    %79 = arith.addf %78, %15 : vector<8x8xf32>
    %cst_28 = arith.constant dense<0xFF800000> : vector<8xf32>
    %80 = vector.multi_reduction <maximumf>, %79, %cst_28 [1] : vector<8x8xf32> to vector<8xf32>
    %81 = vector.shape_cast %80 : vector<8xf32> to vector<8x1xf32>
    %82 = vector.broadcast %81 : vector<8x1xf32> to vector<8x8xf32>
    %83 = arith.subf %79, %82 : vector<8x8xf32>
    %84 = math.exp %83 : vector<8x8xf32>
    %cst_29 = arith.constant dense<0.000000e+00> : vector<8xf32>
    %85 = vector.multi_reduction <add>, %84, %cst_29 [1] : vector<8x8xf32> to vector<8xf32>
    %86 = vector.shape_cast %85 : vector<8xf32> to vector<8x1xf32>
    %87 = tpu.reciprocal %86 {approx = true} : vector<8x1xf32> -> vector<8x1xf32>
    %88 = vector.broadcast %87 : vector<8x1xf32> to vector<8x8xf32>
    %89 = arith.mulf %84, %88 : vector<8x8xf32>
    %cst_30 = arith.constant dense<0.000000e+00> : vector<8x8xf32>
    %90 = tpu.matmul %89, %75, %cst_30 {dimension_numbers = #tpu.dot_dimension_numbers<[1], [0], [0], [1], [0, 0, 1, 1], [], []>} : vector<8x8xf32>, vector<8x8xf32>, vector<8x8xf32> -> vector<8x8xf32>
    %91 = tpu.concatenate %36, %54, %72, %90 in 1 : vector<8x8xf32>, vector<8x8xf32>, vector<8x8xf32>, vector<8x8xf32> -> vector<8x32xf32>
    %c0_31 = arith.constant 0 : index
    %c0_32 = arith.constant 0 : index
    %c0_33 = arith.constant 0 : index
    %92 = vector.load %arg5[%c0_31, %c0_32, %c0_33] : memref<2x32x32xf32, #tpu.memory_space<vmem>>, vector<1x32x32xf32>
    %93 = vector.shape_cast %92 : vector<1x32x32xf32> to vector<32x32xf32>
    %cst_34 = arith.constant dense<0.000000e+00> : vector<8x32xf32>
    %94 = tpu.matmul %91, %93, %cst_34 {dimension_numbers = #tpu.dot_dimension_numbers<[1], [0], [0], [1], [0, 0, 1, 1], [], []>} : vector<8x32xf32>, vector<32x32xf32>, vector<8x32xf32> -> vector<8x32xf32>
    %95 = arith.addf %94, %9 : vector<8x32xf32>
    %c0_35 = arith.constant 0 : index
    %c0_36 = arith.constant 0 : index
    %c0_37 = arith.constant 0 : index
    %96 = vector.load %arg6[%c0_35, %c0_36, %c0_37] : memref<2x1x32xf32, #tpu.memory_space<vmem>>, vector<1x1x32xf32>
    %97 = vector.shape_cast %96 : vector<1x1x32xf32> to vector<1x32xf32>
    %c0_38 = arith.constant 0 : index
    %c0_39 = arith.constant 0 : index
    %c0_40 = arith.constant 0 : index
    %98 = vector.load %arg7[%c0_38, %c0_39, %c0_40] : memref<2x1x32xf32, #tpu.memory_space<vmem>>, vector<1x1x32xf32>
    %99 = vector.shape_cast %98 : vector<1x1x32xf32> to vector<1x32xf32>
    %cst_41 = arith.constant dense<0.000000e+00> : vector<8xf32>
    %100 = vector.multi_reduction <add>, %95, %cst_41 [1] : vector<8x32xf32> to vector<8xf32>
    %101 = vector.shape_cast %100 : vector<8xf32> to vector<8x1xf32>
    %cst_42 = arith.constant 3.200000e+01 : f32
    %102 = vector.broadcast %cst_42 : f32 to vector<8x1xf32>
    %103 = arith.divf %101, %102 : vector<8x1xf32>
    %104 = vector.broadcast %103 : vector<8x1xf32> to vector<8x32xf32>
    %105 = arith.subf %95, %104 : vector<8x32xf32>
    %106 = arith.mulf %105, %105 : vector<8x32xf32>
    %cst_43 = arith.constant dense<0.000000e+00> : vector<8xf32>
    %107 = vector.multi_reduction <add>, %106, %cst_43 [1] : vector<8x32xf32> to vector<8xf32>
    %108 = vector.shape_cast %107 : vector<8xf32> to vector<8x1xf32>
    %cst_44 = arith.constant 3.200000e+01 : f32
    %109 = vector.broadcast %cst_44 : f32 to vector<8x1xf32>
    %110 = arith.divf %108, %109 : vector<8x1xf32>
    %111 = vector.broadcast %103 : vector<8x1xf32> to vector<8x32xf32>
    %112 = arith.subf %95, %111 : vector<8x32xf32>
    %cst_45 = arith.constant 9.99999974E-6 : f32
    %113 = vector.broadcast %cst_45 : f32 to vector<8x1xf32>
    %114 = arith.addf %110, %113 : vector<8x1xf32>
    %115 = math.rsqrt %114 : vector<8x1xf32>
    %116 = vector.broadcast %115 : vector<8x1xf32> to vector<8x32xf32>
    %117 = arith.mulf %112, %116 : vector<8x32xf32>
    %118 = vector.broadcast %97 : vector<1x32xf32> to vector<8x32xf32>
    %119 = arith.mulf %117, %118 : vector<8x32xf32>
    %120 = vector.broadcast %99 : vector<1x32xf32> to vector<8x32xf32>
    %121 = arith.addf %119, %120 : vector<8x32xf32>
    %c0_46 = arith.constant 0 : index
    %c0_47 = arith.constant 0 : index
    %c0_48 = arith.constant 0 : index
    %122 = vector.load %arg10[%c0_46, %c0_47, %c0_48] : memref<2x32x64xf32, #tpu.memory_space<vmem>>, vector<1x32x64xf32>
    %123 = vector.shape_cast %122 : vector<1x32x64xf32> to vector<32x64xf32>
    %cst_49 = arith.constant dense<0.000000e+00> : vector<8x64xf32>
    %124 = tpu.matmul %121, %123, %cst_49 {dimension_numbers = #tpu.dot_dimension_numbers<[1], [0], [0], [1], [0, 0, 1, 1], [], []>} : vector<8x32xf32>, vector<32x64xf32>, vector<8x64xf32> -> vector<8x64xf32>
    %c0_50 = arith.constant 0 : index
    %c0_51 = arith.constant 0 : index
    %c0_52 = arith.constant 0 : index
    %125 = vector.load %arg11[%c0_50, %c0_51, %c0_52] : memref<2x1x64xf32, #tpu.memory_space<vmem>>, vector<1x1x64xf32>
    %126 = vector.shape_cast %125 : vector<1x1x64xf32> to vector<1x64xf32>
    %127 = vector.broadcast %126 : vector<1x64xf32> to vector<8x64xf32>
    %128 = arith.addf %124, %127 : vector<8x64xf32>
    %cst_53 = arith.constant 0.000000e+00 : f32
    %129 = vector.broadcast %cst_53 : f32 to vector<8x64xf32>
    %130 = arith.maximumf %128, %129 : vector<8x64xf32>
    %c0_54 = arith.constant 0 : index
    %c0_55 = arith.constant 0 : index
    %c0_56 = arith.constant 0 : index
    %131 = vector.load %arg12[%c0_54, %c0_55, %c0_56] : memref<2x64x32xf32, #tpu.memory_space<vmem>>, vector<1x64x32xf32>
    %132 = vector.shape_cast %131 : vector<1x64x32xf32> to vector<64x32xf32>
    %cst_57 = arith.constant dense<0.000000e+00> : vector<8x32xf32>
    %133 = tpu.matmul %130, %132, %cst_57 {dimension_numbers = #tpu.dot_dimension_numbers<[1], [0], [0], [1], [0, 0, 1, 1], [], []>} : vector<8x64xf32>, vector<64x32xf32>, vector<8x32xf32> -> vector<8x32xf32>
    %c0_58 = arith.constant 0 : index
    %c0_59 = arith.constant 0 : index
    %c0_60 = arith.constant 0 : index
    %134 = vector.load %arg13[%c0_58, %c0_59, %c0_60] : memref<2x1x32xf32, #tpu.memory_space<vmem>>, vector<1x1x32xf32>
    %135 = vector.shape_cast %134 : vector<1x1x32xf32> to vector<1x32xf32>
    %136 = vector.broadcast %135 : vector<1x32xf32> to vector<8x32xf32>
    %137 = arith.addf %133, %136 : vector<8x32xf32>
    %138 = arith.addf %137, %121 : vector<8x32xf32>
    %c0_61 = arith.constant 0 : index
    %c0_62 = arith.constant 0 : index
    %c0_63 = arith.constant 0 : index
    %139 = vector.load %arg8[%c0_61, %c0_62, %c0_63] : memref<2x1x32xf32, #tpu.memory_space<vmem>>, vector<1x1x32xf32>
    %140 = vector.shape_cast %139 : vector<1x1x32xf32> to vector<1x32xf32>
    %c0_64 = arith.constant 0 : index
    %c0_65 = arith.constant 0 : index
    %c0_66 = arith.constant 0 : index
    %141 = vector.load %arg9[%c0_64, %c0_65, %c0_66] : memref<2x1x32xf32, #tpu.memory_space<vmem>>, vector<1x1x32xf32>
    %142 = vector.shape_cast %141 : vector<1x1x32xf32> to vector<1x32xf32>
    %cst_67 = arith.constant dense<0.000000e+00> : vector<8xf32>
    %143 = vector.multi_reduction <add>, %138, %cst_67 [1] : vector<8x32xf32> to vector<8xf32>
    %144 = vector.shape_cast %143 : vector<8xf32> to vector<8x1xf32>
    %cst_68 = arith.constant 3.200000e+01 : f32
    %145 = vector.broadcast %cst_68 : f32 to vector<8x1xf32>
    %146 = arith.divf %144, %145 : vector<8x1xf32>
    %147 = vector.broadcast %146 : vector<8x1xf32> to vector<8x32xf32>
    %148 = arith.subf %138, %147 : vector<8x32xf32>
    %149 = arith.mulf %148, %148 : vector<8x32xf32>
    %cst_69 = arith.constant dense<0.000000e+00> : vector<8xf32>
    %150 = vector.multi_reduction <add>, %149, %cst_69 [1] : vector<8x32xf32> to vector<8xf32>
    %151 = vector.shape_cast %150 : vector<8xf32> to vector<8x1xf32>
    %cst_70 = arith.constant 3.200000e+01 : f32
    %152 = vector.broadcast %cst_70 : f32 to vector<8x1xf32>
    %153 = arith.divf %151, %152 : vector<8x1xf32>
    %154 = vector.broadcast %146 : vector<8x1xf32> to vector<8x32xf32>
    %155 = arith.subf %138, %154 : vector<8x32xf32>
    %cst_71 = arith.constant 9.99999974E-6 : f32
    %156 = vector.broadcast %cst_71 : f32 to vector<8x1xf32>
    %157 = arith.addf %153, %156 : vector<8x1xf32>
    %158 = math.rsqrt %157 : vector<8x1xf32>
    %159 = vector.broadcast %158 : vector<8x1xf32> to vector<8x32xf32>
    %160 = arith.mulf %155, %159 : vector<8x32xf32>
    %161 = vector.broadcast %140 : vector<1x32xf32> to vector<8x32xf32>
    %162 = arith.mulf %160, %161 : vector<8x32xf32>
    %163 = vector.broadcast %142 : vector<1x32xf32> to vector<8x32xf32>
    %164 = arith.addf %162, %163 : vector<8x32xf32>
    %c1 = arith.constant 1 : index
    %c0_72 = arith.constant 0 : index
    %c0_73 = arith.constant 0 : index
    %165 = vector.load %arg4[%c1, %c0_72, %c0_73] : memref<2x32x96xf32, #tpu.memory_space<vmem>>, vector<1x32x96xf32>
    %166 = vector.shape_cast %165 : vector<1x32x96xf32> to vector<32x96xf32>
    %cst_74 = arith.constant dense<0.000000e+00> : vector<8x96xf32>
    %167 = tpu.matmul %164, %166, %cst_74 {dimension_numbers = #tpu.dot_dimension_numbers<[1], [0], [0], [1], [0, 0, 1, 1], [], []>} : vector<8x32xf32>, vector<32x96xf32>, vector<8x96xf32> -> vector<8x96xf32>
    %168 = vector.extract_strided_slice %167 {offsets = [0, 0], sizes = [8, 8], strides = [1, 1]} : vector<8x96xf32> to vector<8x8xf32>
    %169 = vector.extract_strided_slice %167 {offsets = [0, 32], sizes = [8, 8], strides = [1, 1]} : vector<8x96xf32> to vector<8x8xf32>
    %170 = vector.extract_strided_slice %167 {offsets = [0, 64], sizes = [8, 8], strides = [1, 1]} : vector<8x96xf32> to vector<8x8xf32>
    %cst_75 = arith.constant dense<0.000000e+00> : vector<8x8xf32>
    %171 = tpu.matmul %168, %169, %cst_75 {dimension_numbers = #tpu.dot_dimension_numbers<[1], [1], [0], [0], [0, 0, 1, 0], [], []>} : vector<8x8xf32>, vector<8x8xf32>, vector<8x8xf32> -> vector<8x8xf32>
    %cst_76 = arith.constant 0.353553385 : f32
    %172 = vector.broadcast %cst_76 : f32 to vector<8x8xf32>
    %173 = arith.mulf %171, %172 : vector<8x8xf32>
    %174 = arith.addf %173, %15 : vector<8x8xf32>
    %cst_77 = arith.constant dense<0xFF800000> : vector<8xf32>
    %175 = vector.multi_reduction <maximumf>, %174, %cst_77 [1] : vector<8x8xf32> to vector<8xf32>
    %176 = vector.shape_cast %175 : vector<8xf32> to vector<8x1xf32>
    %177 = vector.broadcast %176 : vector<8x1xf32> to vector<8x8xf32>
    %178 = arith.subf %174, %177 : vector<8x8xf32>
    %179 = math.exp %178 : vector<8x8xf32>
    %cst_78 = arith.constant dense<0.000000e+00> : vector<8xf32>
    %180 = vector.multi_reduction <add>, %179, %cst_78 [1] : vector<8x8xf32> to vector<8xf32>
    %181 = vector.shape_cast %180 : vector<8xf32> to vector<8x1xf32>
    %182 = tpu.reciprocal %181 {approx = true} : vector<8x1xf32> -> vector<8x1xf32>
    %183 = vector.broadcast %182 : vector<8x1xf32> to vector<8x8xf32>
    %184 = arith.mulf %179, %183 : vector<8x8xf32>
    %cst_79 = arith.constant dense<0.000000e+00> : vector<8x8xf32>
    %185 = tpu.matmul %184, %170, %cst_79 {dimension_numbers = #tpu.dot_dimension_numbers<[1], [0], [0], [1], [0, 0, 1, 1], [], []>} : vector<8x8xf32>, vector<8x8xf32>, vector<8x8xf32> -> vector<8x8xf32>
    %186 = vector.extract_strided_slice %167 {offsets = [0, 8], sizes = [8, 8], strides = [1, 1]} : vector<8x96xf32> to vector<8x8xf32>
    %187 = vector.extract_strided_slice %167 {offsets = [0, 40], sizes = [8, 8], strides = [1, 1]} : vector<8x96xf32> to vector<8x8xf32>
    %188 = vector.extract_strided_slice %167 {offsets = [0, 72], sizes = [8, 8], strides = [1, 1]} : vector<8x96xf32> to vector<8x8xf32>
    %cst_80 = arith.constant dense<0.000000e+00> : vector<8x8xf32>
    %189 = tpu.matmul %186, %187, %cst_80 {dimension_numbers = #tpu.dot_dimension_numbers<[1], [1], [0], [0], [0, 0, 1, 0], [], []>} : vector<8x8xf32>, vector<8x8xf32>, vector<8x8xf32> -> vector<8x8xf32>
    %cst_81 = arith.constant 0.353553385 : f32
    %190 = vector.broadcast %cst_81 : f32 to vector<8x8xf32>
    %191 = arith.mulf %189, %190 : vector<8x8xf32>
    %192 = arith.addf %191, %15 : vector<8x8xf32>
    %cst_82 = arith.constant dense<0xFF800000> : vector<8xf32>
    %193 = vector.multi_reduction <maximumf>, %192, %cst_82 [1] : vector<8x8xf32> to vector<8xf32>
    %194 = vector.shape_cast %193 : vector<8xf32> to vector<8x1xf32>
    %195 = vector.broadcast %194 : vector<8x1xf32> to vector<8x8xf32>
    %196 = arith.subf %192, %195 : vector<8x8xf32>
    %197 = math.exp %196 : vector<8x8xf32>
    %cst_83 = arith.constant dense<0.000000e+00> : vector<8xf32>
    %198 = vector.multi_reduction <add>, %197, %cst_83 [1] : vector<8x8xf32> to vector<8xf32>
    %199 = vector.shape_cast %198 : vector<8xf32> to vector<8x1xf32>
    %200 = tpu.reciprocal %199 {approx = true} : vector<8x1xf32> -> vector<8x1xf32>
    %201 = vector.broadcast %200 : vector<8x1xf32> to vector<8x8xf32>
    %202 = arith.mulf %197, %201 : vector<8x8xf32>
    %cst_84 = arith.constant dense<0.000000e+00> : vector<8x8xf32>
    %203 = tpu.matmul %202, %188, %cst_84 {dimension_numbers = #tpu.dot_dimension_numbers<[1], [0], [0], [1], [0, 0, 1, 1], [], []>} : vector<8x8xf32>, vector<8x8xf32>, vector<8x8xf32> -> vector<8x8xf32>
    %204 = vector.extract_strided_slice %167 {offsets = [0, 16], sizes = [8, 8], strides = [1, 1]} : vector<8x96xf32> to vector<8x8xf32>
    %205 = vector.extract_strided_slice %167 {offsets = [0, 48], sizes = [8, 8], strides = [1, 1]} : vector<8x96xf32> to vector<8x8xf32>
    %206 = vector.extract_strided_slice %167 {offsets = [0, 80], sizes = [8, 8], strides = [1, 1]} : vector<8x96xf32> to vector<8x8xf32>
    %cst_85 = arith.constant dense<0.000000e+00> : vector<8x8xf32>
    %207 = tpu.matmul %204, %205, %cst_85 {dimension_numbers = #tpu.dot_dimension_numbers<[1], [1], [0], [0], [0, 0, 1, 0], [], []>} : vector<8x8xf32>, vector<8x8xf32>, vector<8x8xf32> -> vector<8x8xf32>
    %cst_86 = arith.constant 0.353553385 : f32
    %208 = vector.broadcast %cst_86 : f32 to vector<8x8xf32>
    %209 = arith.mulf %207, %208 : vector<8x8xf32>
    %210 = arith.addf %209, %15 : vector<8x8xf32>
    %cst_87 = arith.constant dense<0xFF800000> : vector<8xf32>
    %211 = vector.multi_reduction <maximumf>, %210, %cst_87 [1] : vector<8x8xf32> to vector<8xf32>
    %212 = vector.shape_cast %211 : vector<8xf32> to vector<8x1xf32>
    %213 = vector.broadcast %212 : vector<8x1xf32> to vector<8x8xf32>
    %214 = arith.subf %210, %213 : vector<8x8xf32>
    %215 = math.exp %214 : vector<8x8xf32>
    %cst_88 = arith.constant dense<0.000000e+00> : vector<8xf32>
    %216 = vector.multi_reduction <add>, %215, %cst_88 [1] : vector<8x8xf32> to vector<8xf32>
    %217 = vector.shape_cast %216 : vector<8xf32> to vector<8x1xf32>
    %218 = tpu.reciprocal %217 {approx = true} : vector<8x1xf32> -> vector<8x1xf32>
    %219 = vector.broadcast %218 : vector<8x1xf32> to vector<8x8xf32>
    %220 = arith.mulf %215, %219 : vector<8x8xf32>
    %cst_89 = arith.constant dense<0.000000e+00> : vector<8x8xf32>
    %221 = tpu.matmul %220, %206, %cst_89 {dimension_numbers = #tpu.dot_dimension_numbers<[1], [0], [0], [1], [0, 0, 1, 1], [], []>} : vector<8x8xf32>, vector<8x8xf32>, vector<8x8xf32> -> vector<8x8xf32>
    %222 = vector.extract_strided_slice %167 {offsets = [0, 24], sizes = [8, 8], strides = [1, 1]} : vector<8x96xf32> to vector<8x8xf32>
    %223 = vector.extract_strided_slice %167 {offsets = [0, 56], sizes = [8, 8], strides = [1, 1]} : vector<8x96xf32> to vector<8x8xf32>
    %224 = vector.extract_strided_slice %167 {offsets = [0, 88], sizes = [8, 8], strides = [1, 1]} : vector<8x96xf32> to vector<8x8xf32>
    %cst_90 = arith.constant dense<0.000000e+00> : vector<8x8xf32>
    %225 = tpu.matmul %222, %223, %cst_90 {dimension_numbers = #tpu.dot_dimension_numbers<[1], [1], [0], [0], [0, 0, 1, 0], [], []>} : vector<8x8xf32>, vector<8x8xf32>, vector<8x8xf32> -> vector<8x8xf32>
    %cst_91 = arith.constant 0.353553385 : f32
    %226 = vector.broadcast %cst_91 : f32 to vector<8x8xf32>
    %227 = arith.mulf %225, %226 : vector<8x8xf32>
    %228 = arith.addf %227, %15 : vector<8x8xf32>
    %cst_92 = arith.constant dense<0xFF800000> : vector<8xf32>
    %229 = vector.multi_reduction <maximumf>, %228, %cst_92 [1] : vector<8x8xf32> to vector<8xf32>
    %230 = vector.shape_cast %229 : vector<8xf32> to vector<8x1xf32>
    %231 = vector.broadcast %230 : vector<8x1xf32> to vector<8x8xf32>
    %232 = arith.subf %228, %231 : vector<8x8xf32>
    %233 = math.exp %232 : vector<8x8xf32>
    %cst_93 = arith.constant dense<0.000000e+00> : vector<8xf32>
    %234 = vector.multi_reduction <add>, %233, %cst_93 [1] : vector<8x8xf32> to vector<8xf32>
    %235 = vector.shape_cast %234 : vector<8xf32> to vector<8x1xf32>
    %236 = tpu.reciprocal %235 {approx = true} : vector<8x1xf32> -> vector<8x1xf32>
    %237 = vector.broadcast %236 : vector<8x1xf32> to vector<8x8xf32>
    %238 = arith.mulf %233, %237 : vector<8x8xf32>
    %cst_94 = arith.constant dense<0.000000e+00> : vector<8x8xf32>
    %239 = tpu.matmul %238, %224, %cst_94 {dimension_numbers = #tpu.dot_dimension_numbers<[1], [0], [0], [1], [0, 0, 1, 1], [], []>} : vector<8x8xf32>, vector<8x8xf32>, vector<8x8xf32> -> vector<8x8xf32>
    %240 = tpu.concatenate %185, %203, %221, %239 in 1 : vector<8x8xf32>, vector<8x8xf32>, vector<8x8xf32>, vector<8x8xf32> -> vector<8x32xf32>
    %c1_95 = arith.constant 1 : index
    %c0_96 = arith.constant 0 : index
    %c0_97 = arith.constant 0 : index
    %241 = vector.load %arg5[%c1_95, %c0_96, %c0_97] : memref<2x32x32xf32, #tpu.memory_space<vmem>>, vector<1x32x32xf32>
    %242 = vector.shape_cast %241 : vector<1x32x32xf32> to vector<32x32xf32>
    %cst_98 = arith.constant dense<0.000000e+00> : vector<8x32xf32>
    %243 = tpu.matmul %240, %242, %cst_98 {dimension_numbers = #tpu.dot_dimension_numbers<[1], [0], [0], [1], [0, 0, 1, 1], [], []>} : vector<8x32xf32>, vector<32x32xf32>, vector<8x32xf32> -> vector<8x32xf32>
    %244 = arith.addf %243, %164 : vector<8x32xf32>
    %c1_99 = arith.constant 1 : index
    %c0_100 = arith.constant 0 : index
    %c0_101 = arith.constant 0 : index
    %245 = vector.load %arg6[%c1_99, %c0_100, %c0_101] : memref<2x1x32xf32, #tpu.memory_space<vmem>>, vector<1x1x32xf32>
    %246 = vector.shape_cast %245 : vector<1x1x32xf32> to vector<1x32xf32>
    %c1_102 = arith.constant 1 : index
    %c0_103 = arith.constant 0 : index
    %c0_104 = arith.constant 0 : index
    %247 = vector.load %arg7[%c1_102, %c0_103, %c0_104] : memref<2x1x32xf32, #tpu.memory_space<vmem>>, vector<1x1x32xf32>
    %248 = vector.shape_cast %247 : vector<1x1x32xf32> to vector<1x32xf32>
    %cst_105 = arith.constant dense<0.000000e+00> : vector<8xf32>
    %249 = vector.multi_reduction <add>, %244, %cst_105 [1] : vector<8x32xf32> to vector<8xf32>
    %250 = vector.shape_cast %249 : vector<8xf32> to vector<8x1xf32>
    %cst_106 = arith.constant 3.200000e+01 : f32
    %251 = vector.broadcast %cst_106 : f32 to vector<8x1xf32>
    %252 = arith.divf %250, %251 : vector<8x1xf32>
    %253 = vector.broadcast %252 : vector<8x1xf32> to vector<8x32xf32>
    %254 = arith.subf %244, %253 : vector<8x32xf32>
    %255 = arith.mulf %254, %254 : vector<8x32xf32>
    %cst_107 = arith.constant dense<0.000000e+00> : vector<8xf32>
    %256 = vector.multi_reduction <add>, %255, %cst_107 [1] : vector<8x32xf32> to vector<8xf32>
    %257 = vector.shape_cast %256 : vector<8xf32> to vector<8x1xf32>
    %cst_108 = arith.constant 3.200000e+01 : f32
    %258 = vector.broadcast %cst_108 : f32 to vector<8x1xf32>
    %259 = arith.divf %257, %258 : vector<8x1xf32>
    %260 = vector.broadcast %252 : vector<8x1xf32> to vector<8x32xf32>
    %261 = arith.subf %244, %260 : vector<8x32xf32>
    %cst_109 = arith.constant 9.99999974E-6 : f32
    %262 = vector.broadcast %cst_109 : f32 to vector<8x1xf32>
    %263 = arith.addf %259, %262 : vector<8x1xf32>
    %264 = math.rsqrt %263 : vector<8x1xf32>
    %265 = vector.broadcast %264 : vector<8x1xf32> to vector<8x32xf32>
    %266 = arith.mulf %261, %265 : vector<8x32xf32>
    %267 = vector.broadcast %246 : vector<1x32xf32> to vector<8x32xf32>
    %268 = arith.mulf %266, %267 : vector<8x32xf32>
    %269 = vector.broadcast %248 : vector<1x32xf32> to vector<8x32xf32>
    %270 = arith.addf %268, %269 : vector<8x32xf32>
    %c1_110 = arith.constant 1 : index
    %c0_111 = arith.constant 0 : index
    %c0_112 = arith.constant 0 : index
    %271 = vector.load %arg10[%c1_110, %c0_111, %c0_112] : memref<2x32x64xf32, #tpu.memory_space<vmem>>, vector<1x32x64xf32>
    %272 = vector.shape_cast %271 : vector<1x32x64xf32> to vector<32x64xf32>
    %cst_113 = arith.constant dense<0.000000e+00> : vector<8x64xf32>
    %273 = tpu.matmul %270, %272, %cst_113 {dimension_numbers = #tpu.dot_dimension_numbers<[1], [0], [0], [1], [0, 0, 1, 1], [], []>} : vector<8x32xf32>, vector<32x64xf32>, vector<8x64xf32> -> vector<8x64xf32>
    %c1_114 = arith.constant 1 : index
    %c0_115 = arith.constant 0 : index
    %c0_116 = arith.constant 0 : index
    %274 = vector.load %arg11[%c1_114, %c0_115, %c0_116] : memref<2x1x64xf32, #tpu.memory_space<vmem>>, vector<1x1x64xf32>
    %275 = vector.shape_cast %274 : vector<1x1x64xf32> to vector<1x64xf32>
    %276 = vector.broadcast %275 : vector<1x64xf32> to vector<8x64xf32>
    %277 = arith.addf %273, %276 : vector<8x64xf32>
    %cst_117 = arith.constant 0.000000e+00 : f32
    %278 = vector.broadcast %cst_117 : f32 to vector<8x64xf32>
    %279 = arith.maximumf %277, %278 : vector<8x64xf32>
    %c1_118 = arith.constant 1 : index
    %c0_119 = arith.constant 0 : index
    %c0_120 = arith.constant 0 : index
    %280 = vector.load %arg12[%c1_118, %c0_119, %c0_120] : memref<2x64x32xf32, #tpu.memory_space<vmem>>, vector<1x64x32xf32>
    %281 = vector.shape_cast %280 : vector<1x64x32xf32> to vector<64x32xf32>
    %cst_121 = arith.constant dense<0.000000e+00> : vector<8x32xf32>
    %282 = tpu.matmul %279, %281, %cst_121 {dimension_numbers = #tpu.dot_dimension_numbers<[1], [0], [0], [1], [0, 0, 1, 1], [], []>} : vector<8x64xf32>, vector<64x32xf32>, vector<8x32xf32> -> vector<8x32xf32>
    %c1_122 = arith.constant 1 : index
    %c0_123 = arith.constant 0 : index
    %c0_124 = arith.constant 0 : index
    %283 = vector.load %arg13[%c1_122, %c0_123, %c0_124] : memref<2x1x32xf32, #tpu.memory_space<vmem>>, vector<1x1x32xf32>
    %284 = vector.shape_cast %283 : vector<1x1x32xf32> to vector<1x32xf32>
    %285 = vector.broadcast %284 : vector<1x32xf32> to vector<8x32xf32>
    %286 = arith.addf %282, %285 : vector<8x32xf32>
    %287 = arith.addf %286, %270 : vector<8x32xf32>
    %c1_125 = arith.constant 1 : index
    %c0_126 = arith.constant 0 : index
    %c0_127 = arith.constant 0 : index
    %288 = vector.load %arg8[%c1_125, %c0_126, %c0_127] : memref<2x1x32xf32, #tpu.memory_space<vmem>>, vector<1x1x32xf32>
    %289 = vector.shape_cast %288 : vector<1x1x32xf32> to vector<1x32xf32>
    %c1_128 = arith.constant 1 : index
    %c0_129 = arith.constant 0 : index
    %c0_130 = arith.constant 0 : index
    %290 = vector.load %arg9[%c1_128, %c0_129, %c0_130] : memref<2x1x32xf32, #tpu.memory_space<vmem>>, vector<1x1x32xf32>
    %291 = vector.shape_cast %290 : vector<1x1x32xf32> to vector<1x32xf32>
    %cst_131 = arith.constant dense<0.000000e+00> : vector<8xf32>
    %292 = vector.multi_reduction <add>, %287, %cst_131 [1] : vector<8x32xf32> to vector<8xf32>
    %293 = vector.shape_cast %292 : vector<8xf32> to vector<8x1xf32>
    %cst_132 = arith.constant 3.200000e+01 : f32
    %294 = vector.broadcast %cst_132 : f32 to vector<8x1xf32>
    %295 = arith.divf %293, %294 : vector<8x1xf32>
    %296 = vector.broadcast %295 : vector<8x1xf32> to vector<8x32xf32>
    %297 = arith.subf %287, %296 : vector<8x32xf32>
    %298 = arith.mulf %297, %297 : vector<8x32xf32>
    %cst_133 = arith.constant dense<0.000000e+00> : vector<8xf32>
    %299 = vector.multi_reduction <add>, %298, %cst_133 [1] : vector<8x32xf32> to vector<8xf32>
    %300 = vector.shape_cast %299 : vector<8xf32> to vector<8x1xf32>
    %cst_134 = arith.constant 3.200000e+01 : f32
    %301 = vector.broadcast %cst_134 : f32 to vector<8x1xf32>
    %302 = arith.divf %300, %301 : vector<8x1xf32>
    %303 = vector.broadcast %295 : vector<8x1xf32> to vector<8x32xf32>
    %304 = arith.subf %287, %303 : vector<8x32xf32>
    %cst_135 = arith.constant 9.99999974E-6 : f32
    %305 = vector.broadcast %cst_135 : f32 to vector<8x1xf32>
    %306 = arith.addf %302, %305 : vector<8x1xf32>
    %307 = math.rsqrt %306 : vector<8x1xf32>
    %308 = vector.broadcast %307 : vector<8x1xf32> to vector<8x32xf32>
    %309 = arith.mulf %304, %308 : vector<8x32xf32>
    %310 = vector.broadcast %289 : vector<1x32xf32> to vector<8x32xf32>
    %311 = arith.mulf %309, %310 : vector<8x32xf32>
    %312 = vector.broadcast %291 : vector<1x32xf32> to vector<8x32xf32>
    %313 = arith.addf %311, %312 : vector<8x32xf32>
    %314 = vector.extract_strided_slice %313 {offsets = [7, 0], sizes = [1, 32], strides = [1, 1]} : vector<8x32xf32> to vector<1x32xf32>
    %c0_136 = arith.constant 0 : index
    %c0_137 = arith.constant 0 : index
    %315 = vector.load %arg14[%c0_136, %c0_137] : memref<1x32xf32, #tpu.memory_space<vmem>>, vector<1x32xf32>
    %c0_138 = arith.constant 0 : index
    %c0_139 = arith.constant 0 : index
    %316 = vector.load %arg15[%c0_138, %c0_139] : memref<1x32xf32, #tpu.memory_space<vmem>>, vector<1x32xf32>
    %cst_140 = arith.constant dense<0.000000e+00> : vector<1xf32>
    %317 = vector.multi_reduction <add>, %314, %cst_140 [1] : vector<1x32xf32> to vector<1xf32>
    %318 = vector.shape_cast %317 : vector<1xf32> to vector<1x1xf32>
    %cst_141 = arith.constant 3.200000e+01 : f32
    %319 = vector.broadcast %cst_141 : f32 to vector<1x1xf32>
    %320 = arith.divf %318, %319 : vector<1x1xf32>
    %321 = vector.broadcast %320 : vector<1x1xf32> to vector<1x32xf32>
    %322 = arith.subf %314, %321 : vector<1x32xf32>
    %323 = arith.mulf %322, %322 : vector<1x32xf32>
    %cst_142 = arith.constant dense<0.000000e+00> : vector<1xf32>
    %324 = vector.multi_reduction <add>, %323, %cst_142 [1] : vector<1x32xf32> to vector<1xf32>
    %325 = vector.shape_cast %324 : vector<1xf32> to vector<1x1xf32>
    %cst_143 = arith.constant 3.200000e+01 : f32
    %326 = vector.broadcast %cst_143 : f32 to vector<1x1xf32>
    %327 = arith.divf %325, %326 : vector<1x1xf32>
    %328 = vector.broadcast %320 : vector<1x1xf32> to vector<1x32xf32>
    %329 = arith.subf %314, %328 : vector<1x32xf32>
    %cst_144 = arith.constant 9.99999974E-6 : f32
    %330 = vector.broadcast %cst_144 : f32 to vector<1x1xf32>
    %331 = arith.addf %327, %330 : vector<1x1xf32>
    %332 = math.rsqrt %331 : vector<1x1xf32>
    %333 = vector.broadcast %332 : vector<1x1xf32> to vector<1x32xf32>
    %334 = arith.mulf %329, %333 : vector<1x32xf32>
    %335 = arith.mulf %334, %315 : vector<1x32xf32>
    %336 = arith.addf %335, %316 : vector<1x32xf32>
    %c0_145 = arith.constant 0 : index
    %c0_146 = arith.constant 0 : index
    %337 = vector.load %arg16[%c0_145, %c0_146] : memref<32x128xf32, #tpu.memory_space<vmem>>, vector<32x128xf32>
    %cst_147 = arith.constant dense<0.000000e+00> : vector<1x128xf32>
    %338 = tpu.matmul %336, %337, %cst_147 {dimension_numbers = #tpu.dot_dimension_numbers<[1], [0], [0], [1], [0, 0, 1, 1], [], []>} : vector<1x32xf32>, vector<32x128xf32>, vector<1x128xf32> -> vector<1x128xf32>
    %c0_148 = arith.constant 0 : index
    %c0_149 = arith.constant 0 : index
    %339 = vector.load %arg17[%c0_148, %c0_149] : memref<1x128xf32, #tpu.memory_space<vmem>>, vector<1x128xf32>
    %340 = arith.addf %338, %339 : vector<1x128xf32>
    %341 = vector.shape_cast %340 : vector<1x128xf32> to vector<1x1x128xf32>
    %c0_150 = arith.constant 0 : index
    %c0_151 = arith.constant 0 : index
    %c0_152 = arith.constant 0 : index
    %342 = vector.load %arg18[%c0_150, %c0_151, %c0_152] : memref<1x1x128xf32, #tpu.memory_space<vmem>>, vector<1x1x128xf32>
    tpu.vector_store %arg18[%c0_150, %c0_151, %c0_152], %341 {strides = array<i32>} : memref<1x1x128xf32, #tpu.memory_space<vmem>>, vector<1x1x128xf32>,
    return
  }
  func.func @transform_0(%arg0: i32) -> (i32, i32) {
    %c0_i32 = arith.constant 0 : i32
    %c0_i32_0 = arith.constant 0 : i32
    return %arg0, %c0_i32 : i32, i32
  }
  func.func @transform_1(%arg0: i32) -> (i32, i32) {
    %c0_i32 = arith.constant 0 : i32
    %c0_i32_0 = arith.constant 0 : i32
    %c0_i32_1 = arith.constant 0 : i32
    return %c0_i32, %c0_i32_0 : i32, i32
  }
  func.func @transform_2(%arg0: i32) -> (i32, i32) {
    %c0_i32 = arith.constant 0 : i32
    %c0_i32_0 = arith.constant 0 : i32
    %c0_i32_1 = arith.constant 0 : i32
    return %c0_i32, %c0_i32_0 : i32, i32
  }
  func.func @transform_3(%arg0: i32) -> (i32, i32, i32) {
    %c0_i32 = arith.constant 0 : i32
    %c0_i32_0 = arith.constant 0 : i32
    %c0_i32_1 = arith.constant 0 : i32
    %c0_i32_2 = arith.constant 0 : i32
    return %c0_i32, %c0_i32_0, %c0_i32_1 : i32, i32, i32
  }
  func.func @transform_4(%arg0: i32) -> (i32, i32, i32) {
    %c0_i32 = arith.constant 0 : i32
    %c0_i32_0 = arith.constant 0 : i32
    %c0_i32_1 = arith.constant 0 : i32
    %c0_i32_2 = arith.constant 0 : i32
    return %c0_i32, %c0_i32_0, %c0_i32_1 : i32, i32, i32
  }
  func.func @transform_5(%arg0: i32) -> (i32, i32, i32) {
    %c0_i32 = arith.constant 0 : i32
    %c0_i32_0 = arith.constant 0 : i32
    %c0_i32_1 = arith.constant 0 : i32
    %c0_i32_2 = arith.constant 0 : i32
    return %c0_i32, %c0_i32_0, %c0_i32_1 : i32, i32, i32
  }
  func.func @transform_6(%arg0: i32) -> (i32, i32, i32) {
    %c0_i32 = arith.constant 0 : i32
    %c0_i32_0 = arith.constant 0 : i32
    %c0_i32_1 = arith.constant 0 : i32
    %c0_i32_2 = arith.constant 0 : i32
    return %c0_i32, %c0_i32_0, %c0_i32_1 : i32, i32, i32
  }
  func.func @transform_7(%arg0: i32) -> (i32, i32, i32) {
    %c0_i32 = arith.constant 0 : i32
    %c0_i32_0 = arith.constant 0 : i32
    %c0_i32_1 = arith.constant 0 : i32
    %c0_i32_2 = arith.constant 0 : i32
    return %c0_i32, %c0_i32_0, %c0_i32_1 : i32, i32, i32
  }
  func.func @transform_8(%arg0: i32) -> (i32, i32, i32) {
    %c0_i32 = arith.constant 0 : i32
    %c0_i32_0 = arith.constant 0 : i32
    %c0_i32_1 = arith.constant 0 : i32
    %c0_i32_2 = arith.constant 0 : i32
    return %c0_i32, %c0_i32_0, %c0_i32_1 : i32, i32, i32
  }
  func.func @transform_9(%arg0: i32) -> (i32, i32, i32) {
    %c0_i32 = arith.constant 0 : i32
    %c0_i32_0 = arith.constant 0 : i32
    %c0_i32_1 = arith.constant 0 : i32
    %c0_i32_2 = arith.constant 0 : i32
    return %c0_i32, %c0_i32_0, %c0_i32_1 : i32, i32, i32
  }
  func.func @transform_10(%arg0: i32) -> (i32, i32, i32) {
    %c0_i32 = arith.constant 0 : i32
    %c0_i32_0 = arith.constant 0 : i32
    %c0_i32_1 = arith.constant 0 : i32
    %c0_i32_2 = arith.constant 0 : i32
    return %c0_i32, %c0_i32_0, %c0_i32_1 : i32, i32, i32
  }
  func.func @transform_11(%arg0: i32) -> (i32, i32, i32) {
    %c0_i32 = arith.constant 0 : i32
    %c0_i32_0 = arith.constant 0 : i32
    %c0_i32_1 = arith.constant 0 : i32
    %c0_i32_2 = arith.constant 0 : i32
    return %c0_i32, %c0_i32_0, %c0_i32_1 : i32, i32, i32
  }
  func.func @transform_12(%arg0: i32) -> (i32, i32, i32) {
    %c0_i32 = arith.constant 0 : i32
    %c0_i32_0 = arith.constant 0 : i32
    %c0_i32_1 = arith.constant 0 : i32
    %c0_i32_2 = arith.constant 0 : i32
    return %c0_i32, %c0_i32_0, %c0_i32_1 : i32, i32, i32
  }
  func.func @transform_13(%arg0: i32) -> (i32, i32) {
    %c0_i32 = arith.constant 0 : i32
    %c0_i32_0 = arith.constant 0 : i32
    %c0_i32_1 = arith.constant 0 : i32
    return %c0_i32, %c0_i32_0 : i32, i32
  }
  func.func @transform_14(%arg0: i32) -> (i32, i32) {
    %c0_i32 = arith.constant 0 : i32
    %c0_i32_0 = arith.constant 0 : i32
    %c0_i32_1 = arith.constant 0 : i32
    return %c0_i32, %c0_i32_0 : i32, i32
  }
  func.func @transform_15(%arg0: i32) -> (i32, i32) {
    %c0_i32 = arith.constant 0 : i32
    %c0_i32_0 = arith.constant 0 : i32
    %c0_i32_1 = arith.constant 0 : i32
    return %c0_i32, %c0_i32_0 : i32, i32
  }
  func.func @transform_16(%arg0: i32) -> (i32, i32) {
    %c0_i32 = arith.constant 0 : i32
    %c0_i32_0 = arith.constant 0 : i32
    %c0_i32_1 = arith.constant 0 : i32
    return %c0_i32, %c0_i32_0 : i32, i32
  }
  func.func @transform_17(%arg0: i32) -> (i32, i32, i32) {
    %c0_i32 = arith.constant 0 : i32
    %c0_i32_0 = arith.constant 0 : i32
    %c0_i32_1 = arith.constant 0 : i32
    return %arg0, %c0_i32, %c0_i32_0 : i32, i32, i32
  }
}

</mosaic_0001>

<llo_original>
// kernel: tpu_custom_call.1
$region0: #{tpu_custom_call.1}
  #allocation0 [shape = 'u32[]', space=smem, size = 0x4, offset = 0x4, fixed_abs, tag = 'smem constant byte address 0x4 - core index']
  #allocation1 [shape = 'u32[144,128]{1,0:T(1,128)}', space=vmem, size = 0x12000, scoped, tag = 'internal scratch']
  %s0 = inlined_call_operand.vmem [shape: s32[16,1], index: 0, kind: input, shape index: {}]
  %s1 = inlined_call_operand.vmem [shape: f32[128,32], index: 1, kind: input, shape index: {}]
  %s2 = inlined_call_operand.vmem [shape: f32[8,32], index: 2, kind: input, shape index: {}]
  %s3 = inlined_call_operand.vmem [shape: f32[2,32,96], index: 3, kind: input, shape index: {}]
  %s4 = inlined_call_operand.vmem [shape: f32[2,32,32], index: 4, kind: input, shape index: {}]
  %s5 = inlined_call_operand.vmem [shape: f32[2,1,32], index: 5, kind: input, shape index: {}]
  %s6 = inlined_call_operand.vmem [shape: f32[2,1,32], index: 6, kind: input, shape index: {}]
  %s7 = inlined_call_operand.vmem [shape: f32[2,1,32], index: 7, kind: input, shape index: {}]
  %s8 = inlined_call_operand.vmem [shape: f32[2,1,32], index: 8, kind: input, shape index: {}]
  %s9 = inlined_call_operand.vmem [shape: f32[2,32,64], index: 9, kind: input, shape index: {}]
  %s10 = inlined_call_operand.vmem [shape: f32[2,1,64], index: 10, kind: input, shape index: {}]
  %s11 = inlined_call_operand.vmem [shape: f32[2,64,32], index: 11, kind: input, shape index: {}]
  %s12 = inlined_call_operand.vmem [shape: f32[2,1,32], index: 12, kind: input, shape index: {}]
  %s13 = inlined_call_operand.vmem [shape: f32[1,32], index: 13, kind: input, shape index: {}]
  %s14 = inlined_call_operand.vmem [shape: f32[1,32], index: 14, kind: input, shape index: {}]
  %s15 = inlined_call_operand.vmem [shape: f32[32,128], index: 15, kind: input, shape index: {}]
  %s16 = inlined_call_operand.vmem [shape: f32[1,128], index: 16, kind: input, shape index: {}]
  %s17 = inlined_call_operand.hbm [shape: f32[2,1,128], index: 17, kind: output, shape index: {}]
  %s18 = sld [smem:[#allocation0]]
  $region101: #{tpu_custom_call.1} parent=0
    _
  %s20 = ssub.s32 1, %s18
  %s21 = scalar_select 0, %s20, %s18
  $region1: #{tpu_custom_call.1} parent=0
    #allocation2 [shape = 'u8[1024]{0}', space=vmem, size = 0x400, scoped, tag = 'output window, operand 0']
    #allocation3 [shape = 's32[2]{0}', space=sflag, size = 0x8, scoped, tag = 'scoped memory for tpu_custom_call.1']
    %22 = vsyncpa [#allocation3], 0
    %s23 = scalar_lea.sflag [#allocation3], 1
    %24 = vsyncpa %s23, 0
    loop: start=0, step=1, limit=4
    $region2: #{tpu_custom_call.1} parent=1 // loop_pre_header
      _
    $region3: #{tpu_custom_call.1} parent=1 // loop_header
      %s26 = sphi 0, %s30
      %p27 = scmp.ge.s32.totalorder %s26, 4
      %s36 = sphi 0, %s38
      %s39 = sphi 0, %s36
      %s40 = sphi 0, %s39
      %s56 = sphi 0, %s40
      %s60 = sphi 0, %s60
      %s62 = sphi 0, %s60
      %s63 = sphi 0, %s62
      %s77 = sphi 0, %s63
      %s81 = sphi 0, %s81
      %s83 = sphi 0, %s81
      %s84 = sphi 0, %s83
      %s98 = sphi 0, %s84
      %s102 = sphi 0, %s102
      %s104 = sphi 0, %s102
      %s105 = sphi 0, %s104
      %s119 = sphi 0, %s105
      %s123 = sphi 0, %s123
      %s125 = sphi 0, %s123
      %s126 = sphi 0, %s125
      %s140 = sphi 0, %s126
      %s144 = sphi 0, %s144
      %s146 = sphi 0, %s144
      %s147 = sphi 0, %s146
      %s161 = sphi 0, %s147
      %s165 = sphi 0, %s165
      %s167 = sphi 0, %s165
      %s168 = sphi 0, %s167
      %s182 = sphi 0, %s168
      %s186 = sphi 0, %s186
      %s188 = sphi 0, %s186
      %s189 = sphi 0, %s188
      %s203 = sphi 0, %s189
      %s207 = sphi 0, %s207
      %s209 = sphi 0, %s207
      %s210 = sphi 0, %s209
      %s224 = sphi 0, %s210
      %s228 = sphi 0, %s228
      %s230 = sphi 0, %s228
      %s231 = sphi 0, %s230
      %s245 = sphi 0, %s231
      %s249 = sphi 0, %s249
      %s251 = sphi 0, %s249
      %s252 = sphi 0, %s251
      %s266 = sphi 0, %s252
      %s270 = sphi 0, %s270
      %s272 = sphi 0, %s270
      %s273 = sphi 0, %s272
      %s287 = sphi 0, %s273
      %s291 = sphi 0, %s291
      %s293 = sphi 0, %s291
      %s294 = sphi 0, %s293
      %s308 = sphi 0, %s294
      %s312 = sphi 0, %s312
      %s314 = sphi 0, %s312
      %s315 = sphi 0, %s314
      %s329 = sphi 0, %s315
      %s333 = sphi 0, %s333
      %s335 = sphi 0, %s333
      %s336 = sphi 0, %s335
      %s350 = sphi 0, %s336
      %s354 = sphi 0, %s354
      %s356 = sphi 0, %s354
      %s357 = sphi 0, %s356
      %s371 = sphi 0, %s357
      %s375 = sphi 0, %s375
      %s377 = sphi 0, %s375
      %s378 = sphi 0, %s377
      %s392 = sphi 0, %s378
      %s398 = sphi 0, %s400
      %s401 = sphi 0, %s398
      %s402 = sphi 0, %s401
      %s418 = sphi 0, %s402
    $region4: #{tpu_custom_call.1} parent=1 // loop_header_branch
      %29 = sbr.rel (%p27) target = $region8
    $region5: #{tpu_custom_call.1} parent=1 // loop_body
      %s31 = ssub.s32 %s26, 1
      %s32 = ssub.s32 %s26, 2
      %s33 = sadd.s32 %s26, 1
      %s34 = ssub.s32 %s26, %s33
      %p35 = scmp.eq.s32.totalorder %s34, 0
      %s37 = sadd.s32 %s36, 1
      %s38 = scalar_select %p35, %s36, %s37
      %p41 = pneg %p35
      %p42 = scmp.eq.s32.totalorder %s26, 1
      %p43 = por %p41, %p42
      %p44 = scmp.ne.s32.totalorder %s36, %s39
      %p45 = scmp.eq.s32.totalorder %s26, 0
      %p46 = por %p44, %p45
      %p47 = scmp.ne.s32.totalorder %s36, %s39
      %p48 = scmp.eq.s32.totalorder %s31, 1
      %p49 = por %p47, %p48
      %p50 = scmp.ne.s32.totalorder %s39, %s40
      %p51 = scmp.eq.s32.totalorder %s31, 0
      %p52 = por %p50, %p51
      %p53 = scmp.ne.s32.totalorder %s39, %s40
      %p54 = scmp.eq.s32.totalorder %s32, 1
      %p55 = por %p53, %p54
      %p57 = scmp.ne.s32.totalorder %s40, %s56
      %p58 = scmp.eq.s32.totalorder %s32, 0
      %p59 = por %p57, %p58
      %s61 = sadd.s32 %s60, 1
      %p64 = scmp.eq.s32.totalorder %s26, 1
      %p65 = scmp.ne.s32.totalorder %s60, %s62
      %p66 = scmp.eq.s32.totalorder %s26, 0
      %p67 = por %p65, %p66
      %p68 = scmp.ne.s32.totalorder %s60, %s62
      %p69 = scmp.eq.s32.totalorder %s31, 1
      %p70 = por %p68, %p69
      %p71 = scmp.ne.s32.totalorder %s62, %s63
      %p72 = scmp.eq.s32.totalorder %s31, 0
      %p73 = por %p71, %p72
      %p74 = scmp.ne.s32.totalorder %s62, %s63
      %p75 = scmp.eq.s32.totalorder %s32, 1
      %p76 = por %p74, %p75
      %p78 = scmp.ne.s32.totalorder %s63, %s77
      %p79 = scmp.eq.s32.totalorder %s32, 0
      %p80 = por %p78, %p79
      %s82 = sadd.s32 %s81, 1
      %p85 = scmp.eq.s32.totalorder %s26, 1
      %p86 = scmp.ne.s32.totalorder %s81, %s83
      %p87 = scmp.eq.s32.totalorder %s26, 0
      %p88 = por %p86, %p87
      %p89 = scmp.ne.s32.totalorder %s81, %s83
      %p90 = scmp.eq.s32.totalorder %s31, 1
      %p91 = por %p89, %p90
      %p92 = scmp.ne.s32.totalorder %s83, %s84
      %p93 = scmp.eq.s32.totalorder %s31, 0
      %p94 = por %p92, %p93
      %p95 = scmp.ne.s32.totalorder %s83, %s84
      %p96 = scmp.eq.s32.totalorder %s32, 1
      %p97 = por %p95, %p96
      %p99 = scmp.ne.s32.totalorder %s84, %s98
      %p100 = scmp.eq.s32.totalorder %s32, 0
      %p101 = por %p99, %p100
      %s103 = sadd.s32 %s102, 1
      %p106 = scmp.eq.s32.totalorder %s26, 1
      %p107 = scmp.ne.s32.totalorder %s102, %s104
      %p108 = scmp.eq.s32.totalorder %s26, 0
      %p109 = por %p107, %p108
      %p110 = scmp.ne.s32.totalorder %s102, %s104
      %p111 = scmp.eq.s32.totalorder %s31, 1
      %p112 = por %p110, %p111
      %p113 = scmp.ne.s32.totalorder %s104, %s105
      %p114 = scmp.eq.s32.totalorder %s31, 0
      %p115 = por %p113, %p114
      %p116 = scmp.ne.s32.totalorder %s104, %s105
      %p117 = scmp.eq.s32.totalorder %s32, 1
      %p118 = por %p116, %p117
      %p120 = scmp.ne.s32.totalorder %s105, %s119
      %p121 = scmp.eq.s32.totalorder %s32, 0
      %p122 = por %p120, %p121
      %s124 = sadd.s32 %s123, 1
      %p127 = scmp.eq.s32.totalorder %s26, 1
      %p128 = scmp.ne.s32.totalorder %s123, %s125
      %p129 = scmp.eq.s32.totalorder %s26, 0
      %p130 = por %p128, %p129
      %p131 = scmp.ne.s32.totalorder %s123, %s125
      %p132 = scmp.eq.s32.totalorder %s31, 1
      %p133 = por %p131, %p132
      %p134 = scmp.ne.s32.totalorder %s125, %s126
      %p135 = scmp.eq.s32.totalorder %s31, 0
      %p136 = por %p134, %p135
      %p137 = scmp.ne.s32.totalorder %s125, %s126
      %p138 = scmp.eq.s32.totalorder %s32, 1
      %p139 = por %p137, %p138
      %p141 = scmp.ne.s32.totalorder %s126, %s140
      %p142 = scmp.eq.s32.totalorder %s32, 0
      %p143 = por %p141, %p142
      %s145 = sadd.s32 %s144, 1
      %p148 = scmp.eq.s32.totalorder %s26, 1
      %p149 = scmp.ne.s32.totalorder %s144, %s146
      %p150 = scmp.eq.s32.totalorder %s26, 0
      %p151 = por %p149, %p150
      %p152 = scmp.ne.s32.totalorder %s144, %s146
      %p153 = scmp.eq.s32.totalorder %s31, 1
      %p154 = por %p152, %p153
      %p155 = scmp.ne.s32.totalorder %s146, %s147
      %p156 = scmp.eq.s32.totalorder %s31, 0
      %p157 = por %p155, %p156
      %p158 = scmp.ne.s32.totalorder %s146, %s147
      %p159 = scmp.eq.s32.totalorder %s32, 1
      %p160 = por %p158, %p159
      %p162 = scmp.ne.s32.totalorder %s147, %s161
      %p163 = scmp.eq.s32.totalorder %s32, 0
      %p164 = por %p162, %p163
      %s166 = sadd.s32 %s165, 1
      %p169 = scmp.eq.s32.totalorder %s26, 1
      %p170 = scmp.ne.s32.totalorder %s165, %s167
      %p171 = scmp.eq.s32.totalorder %s26, 0
      %p172 = por %p170, %p171
      %p173 = scmp.ne.s32.totalorder %s165, %s167
      %p174 = scmp.eq.s32.totalorder %s31, 1
      %p175 = por %p173, %p174
      %p176 = scmp.ne.s32.totalorder %s167, %s168
      %p177 = scmp.eq.s32.totalorder %s31, 0
      %p178 = por %p176, %p177
      %p179 = scmp.ne.s32.totalorder %s167, %s168
      %p180 = scmp.eq.s32.totalorder %s32, 1
      %p181 = por %p179, %p180
      %p183 = scmp.ne.s32.totalorder %s168, %s182
      %p184 = scmp.eq.s32.totalorder %s32, 0
      %p185 = por %p183, %p184
      %s187 = sadd.s32 %s186, 1
      %p190 = scmp.eq.s32.totalorder %s26, 1
      %p191 = scmp.ne.s32.totalorder %s186, %s188
      %p192 = scmp.eq.s32.totalorder %s26, 0
      %p193 = por %p191, %p192
      %p194 = scmp.ne.s32.totalorder %s186, %s188
      %p195 = scmp.eq.s32.totalorder %s31, 1
      %p196 = por %p194, %p195
      %p197 = scmp.ne.s32.totalorder %s188, %s189
      %p198 = scmp.eq.s32.totalorder %s31, 0
      %p199 = por %p197, %p198
      %p200 = scmp.ne.s32.totalorder %s188, %s189
      %p201 = scmp.eq.s32.totalorder %s32, 1
      %p202 = por %p200, %p201
      %p204 = scmp.ne.s32.totalorder %s189, %s203
      %p205 = scmp.eq.s32.totalorder %s32, 0
      %p206 = por %p204, %p205
      %s208 = sadd.s32 %s207, 1
      %p211 = scmp.eq.s32.totalorder %s26, 1
      %p212 = scmp.ne.s32.totalorder %s207, %s209
      %p213 = scmp.eq.s32.totalorder %s26, 0
      %p214 = por %p212, %p213
      %p215 = scmp.ne.s32.totalorder %s207, %s209
      %p216 = scmp.eq.s32.totalorder %s31, 1
      %p217 = por %p215, %p216
      %p218 = scmp.ne.s32.totalorder %s209, %s210
      %p219 = scmp.eq.s32.totalorder %s31, 0
      %p220 = por %p218, %p219
      %p221 = scmp.ne.s32.totalorder %s209, %s210
      %p222 = scmp.eq.s32.totalorder %s32, 1
      %p223 = por %p221, %p222
      %p225 = scmp.ne.s32.totalorder %s210, %s224
      %p226 = scmp.eq.s32.totalorder %s32, 0
      %p227 = por %p225, %p226
      %s229 = sadd.s32 %s228, 1
      %p232 = scmp.eq.s32.totalorder %s26, 1
      %p233 = scmp.ne.s32.totalorder %s228, %s230
      %p234 = scmp.eq.s32.totalorder %s26, 0
      %p235 = por %p233, %p234
      %p236 = scmp.ne.s32.totalorder %s228, %s230
      %p237 = scmp.eq.s32.totalorder %s31, 1
      %p238 = por %p236, %p237
      %p239 = scmp.ne.s32.totalorder %s230, %s231
      %p240 = scmp.eq.s32.totalorder %s31, 0
      %p241 = por %p239, %p240
      %p242 = scmp.ne.s32.totalorder %s230, %s231
      %p243 = scmp.eq.s32.totalorder %s32, 1
      %p244 = por %p242, %p243
      %p246 = scmp.ne.s32.totalorder %s231, %s245
      %p247 = scmp.eq.s32.totalorder %s32, 0
      %p248 = por %p246, %p247
      %s250 = sadd.s32 %s249, 1
      %p253 = scmp.eq.s32.totalorder %s26, 1
      %p254 = scmp.ne.s32.totalorder %s249, %s251
      %p255 = scmp.eq.s32.totalorder %s26, 0
      %p256 = por %p254, %p255
      %p257 = scmp.ne.s32.totalorder %s249, %s251
      %p258 = scmp.eq.s32.totalorder %s31, 1
      %p259 = por %p257, %p258
      %p260 = scmp.ne.s32.totalorder %s251, %s252
      %p261 = scmp.eq.s32.totalorder %s31, 0
      %p262 = por %p260, %p261
      %p263 = scmp.ne.s32.totalorder %s251, %s252
      %p264 = scmp.eq.s32.totalorder %s32, 1
      %p265 = por %p263, %p264
      %p267 = scmp.ne.s32.totalorder %s252, %s266
      %p268 = scmp.eq.s32.totalorder %s32, 0
      %p269 = por %p267, %p268
      %s271 = sadd.s32 %s270, 1
      %p274 = scmp.eq.s32.totalorder %s26, 1
      %p275 = scmp.ne.s32.totalorder %s270, %s272
      %p276 = scmp.eq.s32.totalorder %s26, 0
      %p277 = por %p275, %p276
      %p278 = scmp.ne.s32.totalorder %s270, %s272
      %p279 = scmp.eq.s32.totalorder %s31, 1
      %p280 = por %p278, %p279
      %p281 = scmp.ne.s32.totalorder %s272, %s273
      %p282 = scmp.eq.s32.totalorder %s31, 0
      %p283 = por %p281, %p282
      %p284 = scmp.ne.s32.totalorder %s272, %s273
      %p285 = scmp.eq.s32.totalorder %s32, 1
      %p286 = por %p284, %p285
      %p288 = scmp.ne.s32.totalorder %s273, %s287
      %p289 = scmp.eq.s32.totalorder %s32, 0
      %p290 = por %p288, %p289
      %s292 = sadd.s32 %s291, 1
      %p295 = scmp.eq.s32.totalorder %s26, 1
      %p296 = scmp.ne.s32.totalorder %s291, %s293
      %p297 = scmp.eq.s32.totalorder %s26, 0
      %p298 = por %p296, %p297
      %p299 = scmp.ne.s32.totalorder %s291, %s293
      %p300 = scmp.eq.s32.totalorder %s31, 1
      %p301 = por %p299, %p300
      %p302 = scmp.ne.s32.totalorder %s293, %s294
      %p303 = scmp.eq.s32.totalorder %s31, 0
      %p304 = por %p302, %p303
      %p305 = scmp.ne.s32.totalorder %s293, %s294
      %p306 = scmp.eq.s32.totalorder %s32, 1
      %p307 = por %p305, %p306
      %p309 = scmp.ne.s32.totalorder %s294, %s308
      %p310 = scmp.eq.s32.totalorder %s32, 0
      %p311 = por %p309, %p310
      %s313 = sadd.s32 %s312, 1
      %p316 = scmp.eq.s32.totalorder %s26, 1
      %p317 = scmp.ne.s32.totalorder %s312, %s314
      %p318 = scmp.eq.s32.totalorder %s26, 0
      %p319 = por %p317, %p318
      %p320 = scmp.ne.s32.totalorder %s312, %s314
      %p321 = scmp.eq.s32.totalorder %s31, 1
      %p322 = por %p320, %p321
      %p323 = scmp.ne.s32.totalorder %s314, %s315
      %p324 = scmp.eq.s32.totalorder %s31, 0
      %p325 = por %p323, %p324
      %p326 = scmp.ne.s32.totalorder %s314, %s315
      %p327 = scmp.eq.s32.totalorder %s32, 1
      %p328 = por %p326, %p327
      %p330 = scmp.ne.s32.totalorder %s315, %s329
      %p331 = scmp.eq.s32.totalorder %s32, 0
      %p332 = por %p330, %p331
      %s334 = sadd.s32 %s333, 1
      %p337 = scmp.eq.s32.totalorder %s26, 1
      %p338 = scmp.ne.s32.totalorder %s333, %s335
      %p339 = scmp.eq.s32.totalorder %s26, 0
      %p340 = por %p338, %p339
      %p341 = scmp.ne.s32.totalorder %s333, %s335
      %p342 = scmp.eq.s32.totalorder %s31, 1
      %p343 = por %p341, %p342
      %p344 = scmp.ne.s32.totalorder %s335, %s336
      %p345 = scmp.eq.s32.totalorder %s31, 0
      %p346 = por %p344, %p345
      %p347 = scmp.ne.s32.totalorder %s335, %s336
      %p348 = scmp.eq.s32.totalorder %s32, 1
      %p349 = por %p347, %p348
      %p351 = scmp.ne.s32.totalorder %s336, %s350
      %p352 = scmp.eq.s32.totalorder %s32, 0
      %p353 = por %p351, %p352
      %s355 = sadd.s32 %s354, 1
      %p358 = scmp.eq.s32.totalorder %s26, 1
      %p359 = scmp.ne.s32.totalorder %s354, %s356
      %p360 = scmp.eq.s32.totalorder %s26, 0
      %p361 = por %p359, %p360
      %p362 = scmp.ne.s32.totalorder %s354, %s356
      %p363 = scmp.eq.s32.totalorder %s31, 1
      %p364 = por %p362, %p363
      %p365 = scmp.ne.s32.totalorder %s356, %s357
      %p366 = scmp.eq.s32.totalorder %s31, 0
      %p367 = por %p365, %p366
      %p368 = scmp.ne.s32.totalorder %s356, %s357
      %p369 = scmp.eq.s32.totalorder %s32, 1
      %p370 = por %p368, %p369
      %p372 = scmp.ne.s32.totalorder %s357, %s371
      %p373 = scmp.eq.s32.totalorder %s32, 0
      %p374 = por %p372, %p373
      %s376 = sadd.s32 %s375, 1
      %p379 = scmp.eq.s32.totalorder %s26, 1
      %p380 = scmp.ne.s32.totalorder %s375, %s377
      %p381 = scmp.eq.s32.totalorder %s26, 0
      %p382 = por %p380, %p381
      %p383 = scmp.ne.s32.totalorder %s375, %s377
      %p384 = scmp.eq.s32.totalorder %s31, 1
      %p385 = por %p383, %p384
      %p386 = scmp.ne.s32.totalorder %s377, %s378
      %p387 = scmp.eq.s32.totalorder %s31, 0
      %p388 = por %p386, %p387
      %p389 = scmp.ne.s32.totalorder %s377, %s378
      %p390 = scmp.eq.s32.totalorder %s32, 1
      %p391 = por %p389, %p390
      %p393 = scmp.ne.s32.totalorder %s378, %s392
      %p394 = scmp.eq.s32.totalorder %s32, 0
      %p395 = por %p393, %p394
      %s396 = ssub.s32 %s26, %s33
      %p397 = scmp.eq.s32.totalorder %s396, 0
      %s399 = sadd.s32 %s398, 1
      %s400 = scalar_select %p397, %s398, %s399
      %p403 = pneg %p397
      %p404 = scmp.eq.s32.totalorder %s26, 1
      %p405 = por %p403, %p404
      %p406 = scmp.ne.s32.totalorder %s398, %s401
      %p407 = scmp.eq.s32.totalorder %s26, 0
      %p408 = por %p406, %p407
      %p409 = scmp.ne.s32.totalorder %s398, %s401
      %p410 = scmp.eq.s32.totalorder %s31, 1
      %p411 = por %p409, %p410
      %p412 = scmp.ne.s32.totalorder %s401, %s402
      %p413 = scmp.eq.s32.totalorder %s31, 0
      %p414 = por %p412, %p413
      %p415 = scmp.ne.s32.totalorder %s401, %s402
      %p416 = scmp.eq.s32.totalorder %s32, 1
      %p417 = por %p415, %p416
      %p419 = scmp.ne.s32.totalorder %s402, %s418
      %p420 = scmp.eq.s32.totalorder %s32, 0
      %p421 = por %p419, %p420
      %p422 = scmp.le.s32.totalorder 1, %s26
      %p423 = scmp.lt.s32.totalorder %s26, 3
      %p424 = pnand %p422, %p423
      %p425 = pneg %p424
      // Predicated region
      $region9: #{tpu_custom_call.1} parent=5 // pred_check
        _
      $region10: #{tpu_custom_call.1} parent=5 // pred_check_branch
        %427 = sbr.rel (%p424) target = $region12
      $region11: #{tpu_custom_call.1} parent=5 // pred_region
        %s428 = ssub.s32 %s26, 1
        // Predicated region
        $region13: #{tpu_custom_call.1} parent=11 // pred_check
          %p429 = pneg %p73
        $region14: #{tpu_custom_call.1} parent=11 // pred_check_branch
          %431 = sbr.rel (%p429) target = $region16
        $region15: #{tpu_custom_call.1} parent=11 // pred_region
          _
        $region16: #{tpu_custom_call.1} parent=11 // pred_fallthru
          _
        // Predicated region
        $region17: #{tpu_custom_call.1} parent=11 // pred_check
          %p432 = pneg %p94
        $region18: #{tpu_custom_call.1} parent=11 // pred_check_branch
          %434 = sbr.rel (%p432) target = $region20
        $region19: #{tpu_custom_call.1} parent=11 // pred_region
          _
        $region20: #{tpu_custom_call.1} parent=11 // pred_fallthru
          _
        // Predicated region
        $region21: #{tpu_custom_call.1} parent=11 // pred_check
          %p435 = pneg %p115
        $region22: #{tpu_custom_call.1} parent=11 // pred_check_branch
          %437 = sbr.rel (%p435) target = $region24
        $region23: #{tpu_custom_call.1} parent=11 // pred_region
          _
        $region24: #{tpu_custom_call.1} parent=11 // pred_fallthru
          _
        // Predicated region
        $region25: #{tpu_custom_call.1} parent=11 // pred_check
          %p438 = pneg %p136
        $region26: #{tpu_custom_call.1} parent=11 // pred_check_branch
          %440 = sbr.rel (%p438) target = $region28
        $region27: #{tpu_custom_call.1} parent=11 // pred_region
          _
        $region28: #{tpu_custom_call.1} parent=11 // pred_fallthru
          _
        // Predicated region
        $region29: #{tpu_custom_call.1} parent=11 // pred_check
          %p441 = pneg %p157
        $region30: #{tpu_custom_call.1} parent=11 // pred_check_branch
          %443 = sbr.rel (%p441) target = $region32
        $region31: #{tpu_custom_call.1} parent=11 // pred_region
          _
        $region32: #{tpu_custom_call.1} parent=11 // pred_fallthru
          _
        // Predicated region
        $region33: #{tpu_custom_call.1} parent=11 // pred_check
          %p444 = pneg %p178
        $region34: #{tpu_custom_call.1} parent=11 // pred_check_branch
          %446 = sbr.rel (%p444) target = $region36
        $region35: #{tpu_custom_call.1} parent=11 // pred_region
          _
        $region36: #{tpu_custom_call.1} parent=11 // pred_fallthru
          _
        // Predicated region
        $region37: #{tpu_custom_call.1} parent=11 // pred_check
          %p447 = pneg %p199
        $region38: #{tpu_custom_call.1} parent=11 // pred_check_branch
          %449 = sbr.rel (%p447) target = $region40
        $region39: #{tpu_custom_call.1} parent=11 // pred_region
          _
        $region40: #{tpu_custom_call.1} parent=11 // pred_fallthru
          _
        // Predicated region
        $region41: #{tpu_custom_call.1} parent=11 // pred_check
          %p450 = pneg %p220
        $region42: #{tpu_custom_call.1} parent=11 // pred_check_branch
          %452 = sbr.rel (%p450) target = $region44
        $region43: #{tpu_custom_call.1} parent=11 // pred_region
          _
        $region44: #{tpu_custom_call.1} parent=11 // pred_fallthru
          _
        // Predicated region
        $region45: #{tpu_custom_call.1} parent=11 // pred_check
          %p453 = pneg %p241
        $region46: #{tpu_custom_call.1} parent=11 // pred_check_branch
          %455 = sbr.rel (%p453) target = $region48
        $region47: #{tpu_custom_call.1} parent=11 // pred_region
          _
        $region48: #{tpu_custom_call.1} parent=11 // pred_fallthru
          _
        // Predicated region
        $region49: #{tpu_custom_call.1} parent=11 // pred_check
          %p456 = pneg %p262
        $region50: #{tpu_custom_call.1} parent=11 // pred_check_branch
          %458 = sbr.rel (%p456) target = $region52
        $region51: #{tpu_custom_call.1} parent=11 // pred_region
          _
        $region52: #{tpu_custom_call.1} parent=11 // pred_fallthru
          _
        // Predicated region
        $region53: #{tpu_custom_call.1} parent=11 // pred_check
          %p459 = pneg %p283
        $region54: #{tpu_custom_call.1} parent=11 // pred_check_branch
          %461 = sbr.rel (%p459) target = $region56
        $region55: #{tpu_custom_call.1} parent=11 // pred_region
          _
        $region56: #{tpu_custom_call.1} parent=11 // pred_fallthru
          _
        // Predicated region
        $region57: #{tpu_custom_call.1} parent=11 // pred_check
          %p462 = pneg %p304
        $region58: #{tpu_custom_call.1} parent=11 // pred_check_branch
          %464 = sbr.rel (%p462) target = $region60
        $region59: #{tpu_custom_call.1} parent=11 // pred_region
          _
        $region60: #{tpu_custom_call.1} parent=11 // pred_fallthru
          _
        // Predicated region
        $region61: #{tpu_custom_call.1} parent=11 // pred_check
          %p465 = pneg %p325
        $region62: #{tpu_custom_call.1} parent=11 // pred_check_branch
          %467 = sbr.rel (%p465) target = $region64
        $region63: #{tpu_custom_call.1} parent=11 // pred_region
          _
        $region64: #{tpu_custom_call.1} parent=11 // pred_fallthru
          _
        // Predicated region
        $region65: #{tpu_custom_call.1} parent=11 // pred_check
          %p468 = pneg %p346
        $region66: #{tpu_custom_call.1} parent=11 // pred_check_branch
          %470 = sbr.rel (%p468) target = $region68
        $region67: #{tpu_custom_call.1} parent=11 // pred_region
          _
        $region68: #{tpu_custom_call.1} parent=11 // pred_fallthru
          _
        // Predicated region
        $region69: #{tpu_custom_call.1} parent=11 // pred_check
          %p471 = pneg %p367
        $region70: #{tpu_custom_call.1} parent=11 // pred_check_branch
          %473 = sbr.rel (%p471) target = $region72
        $region71: #{tpu_custom_call.1} parent=11 // pred_region
          _
        $region72: #{tpu_custom_call.1} parent=11 // pred_fallthru
          _
        // Predicated region
        $region73: #{tpu_custom_call.1} parent=11 // pred_check
          %p474 = pneg %p388
        $region74: #{tpu_custom_call.1} parent=11 // pred_check_branch
          %476 = sbr.rel (%p474) target = $region76
        $region75: #{tpu_custom_call.1} parent=11 // pred_region
          _
        $region76: #{tpu_custom_call.1} parent=11 // pred_fallthru
          _
      $region12: #{tpu_custom_call.1} parent=5 // pred_fallthru
        _
      %p477 = scmp.lt.s32.totalorder %s26, 2
      // Predicated region
      $region77: #{tpu_custom_call.1} parent=5 // pred_check
        %p478 = pneg %p477
      $region78: #{tpu_custom_call.1} parent=5 // pred_check_branch
        %480 = sbr.rel (%p478) target = $region80
      $region79: #{tpu_custom_call.1} parent=5 // pred_region
        // Predicated region
        $region81: #{tpu_custom_call.1} parent=79 // pred_check
          %p481 = pneg %p46
        $region82: #{tpu_custom_call.1} parent=79 // pred_check_branch
          %483 = sbr.rel (%p481) target = $region84
        $region83: #{tpu_custom_call.1} parent=79 // pred_region
          %p484 = scmp.lt.s32.totalorder %s26, 1
          %s485 = scalar_select %p484, %s26, 1
          %s486 = smul.addr %s485, 8
          %s487 = scalar_lea.vmem %s0, %s486
        $region84: #{tpu_custom_call.1} parent=79 // pred_fallthru
          _
      $region80: #{tpu_custom_call.1} parent=5 // pred_fallthru
        _
      %p488 = scmp.le.s32.totalorder 1, %s26
      %p489 = scmp.lt.s32.totalorder %s26, 3
      %p490 = pnand %p488, %p489
      %p491 = pneg %p490
      // Predicated region
      $region85: #{tpu_custom_call.1} parent=5 // pred_check
        _
      $region86: #{tpu_custom_call.1} parent=5 // pred_check_branch
        %493 = sbr.rel (%p490) target = $region88
      $region87: #{tpu_custom_call.1} parent=5 // pred_region
        %s494 = ssub.s32 %s26, 1
        %p495 = scmp.lt.s32.totalorder %s31, 1
        %s496 = scalar_select %p495, %s31, 1
        %s497 = smul.addr %s496, 8
        %s498 = scalar_lea.vmem %s0, %s497
        %p499 = pneg %p52
        %p500 = pneg %p49
        %p501 = pneg %p73
        %p502 = pneg %p70
        %p503 = pneg %p94
        %p504 = pneg %p91
        %p505 = pneg %p115
        %p506 = pneg %p112
        %p507 = pneg %p136
        %p508 = pneg %p133
        %p509 = pneg %p157
        %p510 = pneg %p154
        %p511 = pneg %p178
        %p512 = pneg %p175
        %p513 = pneg %p199
        %p514 = pneg %p196
        %p515 = pneg %p220
        %p516 = pneg %p217
        %p517 = pneg %p241
        %p518 = pneg %p238
        %p519 = pneg %p262
        %p520 = pneg %p259
        %p521 = pneg %p283
        %p522 = pneg %p280
        %p523 = pneg %p304
        %p524 = pneg %p301
        %p525 = pneg %p325
        %p526 = pneg %p322
        %p527 = pneg %p346
        %p528 = pneg %p343
        %p529 = pneg %p367
        %p530 = pneg %p364
        %p531 = pneg %p388
        %p532 = pneg %p385
        %p533 = pneg %p414
        %p534 = pneg %p411
        %s535 = sand.u32 %s401, 1
        %s536 = scalar_lea.sflag [#allocation3], %s535
        %s537 = sand.u32 %s401, 1
        %s538 = scalar_lea.vmem [#allocation2], %s537
        %p539 = scmp.lt.s32.totalorder %s31, 1
        %s540 = scalar_select %p539, %s31, 1
        %s541 = smul.addr %s540, 8
        %s542 = scalar_lea.vmem %s0, %s541
        %v543 = vld [vmem:[%s542] sm:$0xff]
        %v544 = vlaneseq
        %v545 = vand.u32 %v544, 127
        %546 = vset.pattern.permute.xlu0 0
        %547 = vperm.xlu0 %546, %v543
        %v548 = vpop.permute.xlu0 %547
        %vm549 = vcmp.eq.s32.totalorder %v545, %v548
        %v550 = vsel %vm549, 1, 0
        %v551 = vcvt.s32.f32 %v550
        %v552 = vld [vmem:[%s1] sm:$0xff]
        %v553 = vld [vmem:[%s1 + $0x8] sm:$0xff]
        %v554 = vld [vmem:[%s1 + $0x10] sm:$0xff]
        %v555 = vld [vmem:[%s1 + $0x18] sm:$0xff]
        %v556 = vld [vmem:[%s1 + $0x20] sm:$0xff]
        %v557 = vld [vmem:[%s1 + $0x28] sm:$0xff]
        %v558 = vld [vmem:[%s1 + $0x30] sm:$0xff]
        %v559 = vld [vmem:[%s1 + $0x38] sm:$0xff]
        %v560 = vld [vmem:[%s1 + $0x40] sm:$0xff]
        %v561 = vld [vmem:[%s1 + $0x48] sm:$0xff]
        %v562 = vld [vmem:[%s1 + $0x50] sm:$0xff]
        %v563 = vld [vmem:[%s1 + $0x58] sm:$0xff]
        %v564 = vld [vmem:[%s1 + $0x60] sm:$0xff]
        %v565 = vld [vmem:[%s1 + $0x68] sm:$0xff]
        %v566 = vld [vmem:[%s1 + $0x70] sm:$0xff]
        %v567 = vld [vmem:[%s1 + $0x78] sm:$0xff]
        %v568 = vld [vmem:[%s2] sm:$0xff]
        %569 = vmatprep.subr.mxu0 0.0
        %570 = vmatpush1.msra.mxu0 %v552
        %571 = vmatprep.subr.mxu0 0.0
        %572 = vmatpush1.msra.mxu0 %v553
        %573 = vmatprep.subr.mxu0 0.0
        %574 = vmatpush1.msra.mxu0 %v554
        %575 = vmatprep.subr.mxu0 0.0
        %576 = vmatpush1.msra.mxu0 %v555
        %577 = vmatprep.subr.mxu0 0.0
        %578 = vmatpush1.msra.mxu0 %v556
        %579 = vmatprep.subr.mxu0 0.0
        %580 = vmatpush1.msra.mxu0 %v557
        %581 = vmatprep.subr.mxu0 0.0
        %582 = vmatpush1.msra.mxu0 %v558
        %583 = vmatprep.subr.mxu0 0.0
        %584 = vmatpush1.msra.mxu0 %v559
        %585 = vmatprep.subr.mxu0 0.0
        %586 = vmatpush1.msra.mxu0 %v560
        %587 = vmatprep.subr.mxu0 0.0
        %588 = vmatpush1.msra.mxu0 %v561
        %589 = vmatprep.subr.mxu0 0.0
        %590 = vmatpush1.msra.mxu0 %v562
        %591 = vmatprep.subr.mxu0 0.0
        %592 = vmatpush1.msra.mxu0 %v563
        %593 = vmatprep.subr.mxu0 0.0
        %594 = vmatpush1.msra.mxu0 %v564
        %595 = vmatprep.subr.mxu0 0.0
        %596 = vmatpush1.msra.mxu0 %v565
        %597 = vmatprep.subr.mxu0 0.0
        %598 = vmatpush1.msra.mxu0 %v566
        %599 = vmatprep.subr.mxu0 0.0
        %600 = vmatpush1.msra.mxu0 %v567
        %601 = vmatprep.subr.mxu0 0.0
        %602 = vmatpush1.msra.mxu0 0.0
        %603 = vmatprep.subr.mxu0 0.0
        %604 = vmatpush1.msra.mxu0 0.0
        %605 = vmatprep.subr.mxu0 0.0
        %606 = vmatpush1.msra.mxu0 0.0
        %607 = vmatprep.subr.mxu0 0.0
        %608 = vmatpush1.msra.mxu0 0.0
        %609 = vmatprep.subr.mxu0 0.0
        %610 = vmatpush1.msra.mxu0 0.0
        %611 = vmatprep.subr.mxu0 0.0
        %612 = vmatpush1.msra.mxu0 0.0
        %613 = vmatprep.subr.mxu0 0.0
        %614 = vmatpush1.msra.mxu0 0.0
        %615 = vmatprep.subr.mxu0 0.0
        %616 = vmatpush1.msra.mxu0 0.0
        %617 = vmatprep.subr.mxu0 0.0
        %618 = vmatpush1.msra.mxu0 0.0
        %619 = vmatprep.subr.mxu0 0.0
        %620 = vmatpush1.msra.mxu0 0.0
        %621 = vmatprep.subr.mxu0 0.0
        %622 = vmatpush1.msra.mxu0 0.0
        %623 = vmatprep.subr.mxu0 0.0
        %624 = vmatpush1.msra.mxu0 0.0
        %625 = vmatprep.subr.mxu0 0.0
        %626 = vmatpush1.msra.mxu0 0.0
        %627 = vmatprep.subr.mxu0 0.0
        %628 = vmatpush1.msra.mxu0 0.0
        %629 = vmatprep.subr.mxu0 0.0
        %630 = vmatpush1.msra.mxu0 0.0
        %631 = vmatprep.subr.mxu0 0.0
        %632 = vmatpush1.msra.mxu0 0.0
        %633 = vmatprep.mubr.f32.mxu0 0.0
        %634 = vmatmul.mubr.f32.gmra.mrb[0].mxu0 %v551
        %v635 = vpop.f32.mrb[0].mxu0
        %v636 = vadd.f32 %v568, %v635
        %v637 = vpop.f32.mrb[0].mxu0
        %638 = vdwg.mxu0
        %v639 = vlaneseq
        %v640 = vshrl.u32 %v639, 7
        %vm641 = vcmp.le.s32.totalorder %v545, %v640
        %v642 = vsel %vm641, 0.0, -1e+30
        %v643 = vld [vmem:[%s3] sm:$0xff]
        %v644 = vld [vmem:[%s3 + $0x8] sm:$0xff]
        %v645 = vld [vmem:[%s3 + $0x10] sm:$0xff]
        %v646 = vld [vmem:[%s3 + $0x18] sm:$0xff]
        %vm647 = vcmask 261120
        %v649 = vsel %vm647, %v636, 0
        %651 = vmatprep.subr.mxu0 0.0
        %652 = vmatpush1.msra.mxu0 %v643
        %653 = vmatprep.subr.mxu0 0.0
        %654 = vmatpush1.msra.mxu0 %v644
        %655 = vmatprep.subr.mxu0 0.0
        %656 = vmatpush1.msra.mxu0 %v645
        %657 = vmatprep.subr.mxu0 0.0
        %658 = vmatpush1.msra.mxu0 %v646
        %659 = vmatprep.subr.mxu0 0.0
        %660 = vmatpush1.msra.mxu0 0.0
        %661 = vmatprep.subr.mxu0 0.0
        %662 = vmatpush1.msra.mxu0 0.0
        %663 = vmatprep.subr.mxu0 0.0
        %664 = vmatpush1.msra.mxu0 0.0
        %665 = vmatprep.subr.mxu0 0.0
        %666 = vmatpush1.msra.mxu0 0.0
        %667 = vmatprep.subr.mxu0 0.0
        %668 = vmatpush1.msra.mxu0 0.0
        %669 = vmatprep.subr.mxu0 0.0
        %670 = vmatpush1.msra.mxu0 0.0
        %671 = vmatprep.subr.mxu0 0.0
        %672 = vmatpush1.msra.mxu0 0.0
        %673 = vmatprep.subr.mxu0 0.0
        %674 = vmatpush1.msra.mxu0 0.0
        %675 = vmatprep.subr.mxu0 0.0
        %676 = vmatpush1.msra.mxu0 0.0
        %677 = vmatprep.subr.mxu0 0.0
        %678 = vmatpush1.msra.mxu0 0.0
        %679 = vmatprep.subr.mxu0 0.0
        %680 = vmatpush1.msra.mxu0 0.0
        %681 = vmatprep.subr.mxu0 0.0
        %682 = vmatpush1.msra.mxu0 0.0
        %683 = vmatprep.subr.mxu0 0.0
        %684 = vmatpush1.msra.mxu0 0.0
        %685 = vmatprep.subr.mxu0 0.0
        %686 = vmatpush1.msra.mxu0 0.0
        %687 = vmatprep.subr.mxu0 0.0
        %688 = vmatpush1.msra.mxu0 0.0
        %689 = vmatprep.subr.mxu0 0.0
        %690 = vmatpush1.msra.mxu0 0.0
        %691 = vmatprep.subr.mxu0 0.0
        %692 = vmatpush1.msra.mxu0 0.0
        %693 = vmatprep.subr.mxu0 0.0
        %694 = vmatpush1.msra.mxu0 0.0
        %695 = vmatprep.subr.mxu0 0.0
        %696 = vmatpush1.msra.mxu0 0.0
        %697 = vmatprep.subr.mxu0 0.0
        %698 = vmatpush1.msra.mxu0 0.0
        %699 = vmatprep.subr.mxu0 0.0
        %700 = vmatpush1.msra.mxu0 0.0
        %701 = vmatprep.subr.mxu0 0.0
        %702 = vmatpush1.msra.mxu0 0.0
        %703 = vmatprep.subr.mxu0 0.0
        %704 = vmatpush1.msra.mxu0 0.0
        %705 = vmatprep.subr.mxu0 0.0
        %706 = vmatpush1.msra.mxu0 0.0
        %707 = vmatprep.subr.mxu0 0.0
        %708 = vmatpush1.msra.mxu0 0.0
        %709 = vmatprep.subr.mxu0 0.0
        %710 = vmatpush1.msra.mxu0 0.0
        %711 = vmatprep.subr.mxu0 0.0
        %712 = vmatpush1.msra.mxu0 0.0
        %713 = vmatprep.subr.mxu0 0.0
        %714 = vmatpush1.msra.mxu0 0.0
        %715 = vmatprep.mubr.f32.mxu0 0.0
        %716 = vmatmul.mubr.f32.gmra.mrb[0].mxu0 %v649
        %v717 = vpop.f32.mrb[0].mxu0
        %v718 = vadd.f32 0.0, %v717
        %v719 = vpop.f32.mrb[0].mxu0
        %720 = vdwg.mxu0
        %722 = vrot.lane.b32.xlu0 %v718, 96
        %v723 = vpop.permute.xlu0 %722
        %vm724 = vcmask 64512
        %v725 = vsel %vm724, %v718, 0
        %v727 = vsel %vm724, %v723, 0
        %729 = vmatprep.subr.mxu0 0.0
        %730 = vmatpush1.xpose.msra.mxu0 %v727
        %731 = vmatprep.subr.mxu0 0.0
        %732 = vmatpush1.xpose.msra.mxu0 0.0
        %733 = vmatprep.subr.mxu0 0.0
        %734 = vmatpush1.xpose.msra.mxu0 0.0
        %735 = vmatprep.subr.mxu0 0.0
        %736 = vmatpush1.xpose.msra.mxu0 0.0
        %737 = vmatprep.subr.mxu0 0.0
        %738 = vmatpush1.xpose.msra.mxu0 0.0
        %739 = vmatprep.subr.mxu0 0.0
        %740 = vmatpush1.xpose.msra.mxu0 0.0
        %741 = vmatprep.subr.mxu0 0.0
        %742 = vmatpush1.xpose.msra.mxu0 0.0
        %743 = vmatprep.subr.mxu0 0.0
        %744 = vmatpush1.xpose.msra.mxu0 0.0
        %745 = vmatprep.subr.mxu0 0.0
        %746 = vmatpush1.xpose.msra.mxu0 0.0
        %747 = vmatprep.subr.mxu0 0.0
        %748 = vmatpush1.xpose.msra.mxu0 0.0
        %749 = vmatprep.subr.mxu0 0.0
        %750 = vmatpush1.xpose.msra.mxu0 0.0
        %751 = vmatprep.subr.mxu0 0.0
        %752 = vmatpush1.xpose.msra.mxu0 0.0
        %753 = vmatprep.subr.mxu0 0.0
        %754 = vmatpush1.xpose.msra.mxu0 0.0
        %755 = vmatprep.subr.mxu0 0.0
        %756 = vmatpush1.xpose.msra.mxu0 0.0
        %757 = vmatprep.subr.mxu0 0.0
        %758 = vmatpush1.xpose.msra.mxu0 0.0
        %759 = vmatprep.subr.mxu0 0.0
        %760 = vmatpush1.xpose.msra.mxu0 0.0
        %761 = vmatprep.subr.mxu0 0.0
        %762 = vmatpush1.xpose.msra.mxu0 0.0
        %763 = vmatprep.subr.mxu0 0.0
        %764 = vmatpush1.xpose.msra.mxu0 0.0
        %765 = vmatprep.subr.mxu0 0.0
        %766 = vmatpush1.xpose.msra.mxu0 0.0
        %767 = vmatprep.subr.mxu0 0.0
        %768 = vmatpush1.xpose.msra.mxu0 0.0
        %769 = vmatprep.subr.mxu0 0.0
        %770 = vmatpush1.xpose.msra.mxu0 0.0
        %771 = vmatprep.subr.mxu0 0.0
        %772 = vmatpush1.xpose.msra.mxu0 0.0
        %773 = vmatprep.subr.mxu0 0.0
        %774 = vmatpush1.xpose.msra.mxu0 0.0
        %775 = vmatprep.subr.mxu0 0.0
        %776 = vmatpush1.xpose.msra.mxu0 0.0
        %777 = vmatprep.subr.mxu0 0.0
        %778 = vmatpush1.xpose.msra.mxu0 0.0
        %779 = vmatprep.subr.mxu0 0.0
        %780 = vmatpush1.xpose.msra.mxu0 0.0
        %781 = vmatprep.subr.mxu0 0.0
        %782 = vmatpush1.xpose.msra.mxu0 0.0
        %783 = vmatprep.subr.mxu0 0.0
        %784 = vmatpush1.xpose.msra.mxu0 0.0
        %785 = vmatprep.subr.mxu0 0.0
        %786 = vmatpush1.xpose.msra.mxu0 0.0
        %787 = vmatprep.subr.mxu0 0.0
        %788 = vmatpush1.xpose.msra.mxu0 0.0
        %789 = vmatprep.subr.mxu0 0.0
        %790 = vmatpush1.xpose.msra.mxu0 0.0
        %791 = vmatprep.subr.mxu0 0.0
        %792 = vmatpush1.xpose.msra.mxu0 0.0
        %793 = vmatprep.mubr.f32.mxu0 0.0
        %794 = vmatmul.mubr.f32.gmra.mrb[0].mxu0 %v725
        %v795 = vpop.f32.mrb[0].mxu0
        %v796 = vadd.f32 0.0, %v795
        %v797 = vpop.f32.mrb[0].mxu0
        %798 = vdwg.mxu0
        %v799 = vmul.f32 %v796, 0.35355338
        %v800 = vadd.f32 %v799, %v642
        %v801 = vsel %vm724, %v800, -inf
        %802 = vmax.xlane.f32.xlu0 %v801
        %v803 = vpop.xlane.xlu0 %802
        %v804 = vsub.f32 %v800, %v803
        %v805 = vmul.f32 %v804, 1.442695
        %v806 = vpow.pop %v805
        %v807 = vsel %vm724, %v806, 0.0
        %808 = vadd.xlane.f32.xlu0 %v807
        %v809 = vpop.xlane.xlu0 %808
        %v810 = vrcp.pop %v809
        %v811 = vmul.f32 %v806, %v810
        %812 = vrot.lane.b32.xlu0 %v718, 64
        %v813 = vpop.permute.xlu0 %812
        %v816 = vsel %vm724, %v811, 0
        %818 = vmatprep.subr.mxu0 0.0
        %819 = vmatpush1.msra.mxu0 %v813
        %820 = vmatprep.subr.mxu0 0.0
        %821 = vmatpush1.msra.mxu0 0.0
        %822 = vmatprep.subr.mxu0 0.0
        %823 = vmatpush1.msra.mxu0 0.0
        %824 = vmatprep.subr.mxu0 0.0
        %825 = vmatpush1.msra.mxu0 0.0
        %826 = vmatprep.subr.mxu0 0.0
        %827 = vmatpush1.msra.mxu0 0.0
        %828 = vmatprep.subr.mxu0 0.0
        %829 = vmatpush1.msra.mxu0 0.0
        %830 = vmatprep.subr.mxu0 0.0
        %831 = vmatpush1.msra.mxu0 0.0
        %832 = vmatprep.subr.mxu0 0.0
        %833 = vmatpush1.msra.mxu0 0.0
        %834 = vmatprep.subr.mxu0 0.0
        %835 = vmatpush1.msra.mxu0 0.0
        %836 = vmatprep.subr.mxu0 0.0
        %837 = vmatpush1.msra.mxu0 0.0
        %838 = vmatprep.subr.mxu0 0.0
        %839 = vmatpush1.msra.mxu0 0.0
        %840 = vmatprep.subr.mxu0 0.0
        %841 = vmatpush1.msra.mxu0 0.0
        %842 = vmatprep.subr.mxu0 0.0
        %843 = vmatpush1.msra.mxu0 0.0
        %844 = vmatprep.subr.mxu0 0.0
        %845 = vmatpush1.msra.mxu0 0.0
        %846 = vmatprep.subr.mxu0 0.0
        %847 = vmatpush1.msra.mxu0 0.0
        %848 = vmatprep.subr.mxu0 0.0
        %849 = vmatpush1.msra.mxu0 0.0
        %850 = vmatprep.subr.mxu0 0.0
        %851 = vmatpush1.msra.mxu0 0.0
        %852 = vmatprep.subr.mxu0 0.0
        %853 = vmatpush1.msra.mxu0 0.0
        %854 = vmatprep.subr.mxu0 0.0
        %855 = vmatpush1.msra.mxu0 0.0
        %856 = vmatprep.subr.mxu0 0.0
        %857 = vmatpush1.msra.mxu0 0.0
        %858 = vmatprep.subr.mxu0 0.0
        %859 = vmatpush1.msra.mxu0 0.0
        %860 = vmatprep.subr.mxu0 0.0
        %861 = vmatpush1.msra.mxu0 0.0
        %862 = vmatprep.subr.mxu0 0.0
        %863 = vmatpush1.msra.mxu0 0.0
        %864 = vmatprep.subr.mxu0 0.0
        %865 = vmatpush1.msra.mxu0 0.0
        %866 = vmatprep.subr.mxu0 0.0
        %867 = vmatpush1.msra.mxu0 0.0
        %868 = vmatprep.subr.mxu0 0.0
        %869 = vmatpush1.msra.mxu0 0.0
        %870 = vmatprep.subr.mxu0 0.0
        %871 = vmatpush1.msra.mxu0 0.0
        %872 = vmatprep.subr.mxu0 0.0
        %873 = vmatpush1.msra.mxu0 0.0
        %874 = vmatprep.subr.mxu0 0.0
        %875 = vmatpush1.msra.mxu0 0.0
        %876 = vmatprep.subr.mxu0 0.0
        %877 = vmatpush1.msra.mxu0 0.0
        %878 = vmatprep.subr.mxu0 0.0
        %879 = vmatpush1.msra.mxu0 0.0
        %880 = vmatprep.subr.mxu0 0.0
        %881 = vmatpush1.msra.mxu0 0.0
        %882 = vmatprep.mubr.f32.mxu0 0.0
        %883 = vmatmul.mubr.f32.gmra.mrb[0].mxu0 %v816
        %v884 = vpop.f32.mrb[0].mxu0
        %v885 = vadd.f32 0.0, %v884
        %v886 = vpop.f32.mrb[0].mxu0
        %887 = vdwg.mxu0
        %888 = vrot.lane.b32.xlu0 %v718, 120
        %v889 = vpop.permute.xlu0 %888
        %890 = vrot.lane.b32.xlu0 %v718, 88
        %v891 = vpop.permute.xlu0 %890
        %v892 = vsel %vm724, %v889, 0
        %v894 = vsel %vm724, %v891, 0
        %896 = vmatprep.subr.mxu0 0.0
        %897 = vmatpush1.xpose.msra.mxu0 %v894
        %898 = vmatprep.subr.mxu0 0.0
        %899 = vmatpush1.xpose.msra.mxu0 0.0
        %900 = vmatprep.subr.mxu0 0.0
        %901 = vmatpush1.xpose.msra.mxu0 0.0
        %902 = vmatprep.subr.mxu0 0.0
        %903 = vmatpush1.xpose.msra.mxu0 0.0
        %904 = vmatprep.subr.mxu0 0.0
        %905 = vmatpush1.xpose.msra.mxu0 0.0
        %906 = vmatprep.subr.mxu0 0.0
        %907 = vmatpush1.xpose.msra.mxu0 0.0
        %908 = vmatprep.subr.mxu0 0.0
        %909 = vmatpush1.xpose.msra.mxu0 0.0
        %910 = vmatprep.subr.mxu0 0.0
        %911 = vmatpush1.xpose.msra.mxu0 0.0
        %912 = vmatprep.subr.mxu0 0.0
        %913 = vmatpush1.xpose.msra.mxu0 0.0
        %914 = vmatprep.subr.mxu0 0.0
        %915 = vmatpush1.xpose.msra.mxu0 0.0
        %916 = vmatprep.subr.mxu0 0.0
        %917 = vmatpush1.xpose.msra.mxu0 0.0
        %918 = vmatprep.subr.mxu0 0.0
        %919 = vmatpush1.xpose.msra.mxu0 0.0
        %920 = vmatprep.subr.mxu0 0.0
        %921 = vmatpush1.xpose.msra.mxu0 0.0
        %922 = vmatprep.subr.mxu0 0.0
        %923 = vmatpush1.xpose.msra.mxu0 0.0
        %924 = vmatprep.subr.mxu0 0.0
        %925 = vmatpush1.xpose.msra.mxu0 0.0
        %926 = vmatprep.subr.mxu0 0.0
        %927 = vmatpush1.xpose.msra.mxu0 0.0
        %928 = vmatprep.subr.mxu0 0.0
        %929 = vmatpush1.xpose.msra.mxu0 0.0
        %930 = vmatprep.subr.mxu0 0.0
        %931 = vmatpush1.xpose.msra.mxu0 0.0
        %932 = vmatprep.subr.mxu0 0.0
        %933 = vmatpush1.xpose.msra.mxu0 0.0
        %934 = vmatprep.subr.mxu0 0.0
        %935 = vmatpush1.xpose.msra.mxu0 0.0
        %936 = vmatprep.subr.mxu0 0.0
        %937 = vmatpush1.xpose.msra.mxu0 0.0
        %938 = vmatprep.subr.mxu0 0.0
        %939 = vmatpush1.xpose.msra.mxu0 0.0
        %940 = vmatprep.subr.mxu0 0.0
        %941 = vmatpush1.xpose.msra.mxu0 0.0
        %942 = vmatprep.subr.mxu0 0.0
        %943 = vmatpush1.xpose.msra.mxu0 0.0
        %944 = vmatprep.subr.mxu0 0.0
        %945 = vmatpush1.xpose.msra.mxu0 0.0
        %946 = vmatprep.subr.mxu0 0.0
        %947 = vmatpush1.xpose.msra.mxu0 0.0
        %948 = vmatprep.subr.mxu0 0.0
        %949 = vmatpush1.xpose.msra.mxu0 0.0
        %950 = vmatprep.subr.mxu0 0.0
        %951 = vmatpush1.xpose.msra.mxu0 0.0
        %952 = vmatprep.subr.mxu0 0.0
        %953 = vmatpush1.xpose.msra.mxu0 0.0
        %954 = vmatprep.subr.mxu0 0.0
        %955 = vmatpush1.xpose.msra.mxu0 0.0
        %956 = vmatprep.subr.mxu0 0.0
        %957 = vmatpush1.xpose.msra.mxu0 0.0
        %958 = vmatprep.subr.mxu0 0.0
        %959 = vmatpush1.xpose.msra.mxu0 0.0
        %960 = vmatprep.mubr.f32.mxu0 0.0
        %961 = vmatmul.mubr.f32.gmra.mrb[0].mxu0 %v892
        %v962 = vpop.f32.mrb[0].mxu0
        %v963 = vadd.f32 0.0, %v962
        %v964 = vpop.f32.mrb[0].mxu0
        %965 = vdwg.mxu0
        %v966 = vmul.f32 %v963, 0.35355338
        %v967 = vadd.f32 %v966, %v642
        %v968 = vsel %vm724, %v967, -inf
        %969 = vmax.xlane.f32.xlu0 %v968
        %v970 = vpop.xlane.xlu0 %969
        %v971 = vsub.f32 %v967, %v970
        %v972 = vmul.f32 %v971, 1.442695
        %v973 = vpow.pop %v972
        %v974 = vsel %vm724, %v973, 0.0
        %975 = vadd.xlane.f32.xlu0 %v974
        %v976 = vpop.xlane.xlu0 %975
        %v977 = vrcp.pop %v976
        %v978 = vmul.f32 %v973, %v977
        %979 = vrot.lane.b32.xlu0 %v718, 56
        %v980 = vpop.permute.xlu0 %979
        %v983 = vsel %vm724, %v978, 0
        %985 = vmatprep.subr.mxu0 0.0
        %986 = vmatpush1.msra.mxu0 %v980
        %987 = vmatprep.subr.mxu0 0.0
        %988 = vmatpush1.msra.mxu0 0.0
        %989 = vmatprep.subr.mxu0 0.0
        %990 = vmatpush1.msra.mxu0 0.0
        %991 = vmatprep.subr.mxu0 0.0
        %992 = vmatpush1.msra.mxu0 0.0
        %993 = vmatprep.subr.mxu0 0.0
        %994 = vmatpush1.msra.mxu0 0.0
        %995 = vmatprep.subr.mxu0 0.0
        %996 = vmatpush1.msra.mxu0 0.0
        %997 = vmatprep.subr.mxu0 0.0
        %998 = vmatpush1.msra.mxu0 0.0
        %999 = vmatprep.subr.mxu0 0.0
        %1000 = vmatpush1.msra.mxu0 0.0
        %1001 = vmatprep.subr.mxu0 0.0
        %1002 = vmatpush1.msra.mxu0 0.0
        %1003 = vmatprep.subr.mxu0 0.0
        %1004 = vmatpush1.msra.mxu0 0.0
        %1005 = vmatprep.subr.mxu0 0.0
        %1006 = vmatpush1.msra.mxu0 0.0
        %1007 = vmatprep.subr.mxu0 0.0
        %1008 = vmatpush1.msra.mxu0 0.0
        %1009 = vmatprep.subr.mxu0 0.0
        %1010 = vmatpush1.msra.mxu0 0.0
        %1011 = vmatprep.subr.mxu0 0.0
        %1012 = vmatpush1.msra.mxu0 0.0
        %1013 = vmatprep.subr.mxu0 0.0
        %1014 = vmatpush1.msra.mxu0 0.0
        %1015 = vmatprep.subr.mxu0 0.0
        %1016 = vmatpush1.msra.mxu0 0.0
        %1017 = vmatprep.subr.mxu0 0.0
        %1018 = vmatpush1.msra.mxu0 0.0
        %1019 = vmatprep.subr.mxu0 0.0
        %1020 = vmatpush1.msra.mxu0 0.0
        %1021 = vmatprep.subr.mxu0 0.0
        %1022 = vmatpush1.msra.mxu0 0.0
        %1023 = vmatprep.subr.mxu0 0.0
        %1024 = vmatpush1.msra.mxu0 0.0
        %1025 = vmatprep.subr.mxu0 0.0
        %1026 = vmatpush1.msra.mxu0 0.0
        %1027 = vmatprep.subr.mxu0 0.0
        %1028 = vmatpush1.msra.mxu0 0.0
        %1029 = vmatprep.subr.mxu0 0.0
        %1030 = vmatpush1.msra.mxu0 0.0
        %1031 = vmatprep.subr.mxu0 0.0
        %1032 = vmatpush1.msra.mxu0 0.0
        %1033 = vmatprep.subr.mxu0 0.0
        %1034 = vmatpush1.msra.mxu0 0.0
        %1035 = vmatprep.subr.mxu0 0.0
        %1036 = vmatpush1.msra.mxu0 0.0
        %1037 = vmatprep.subr.mxu0 0.0
        %1038 = vmatpush1.msra.mxu0 0.0
        %1039 = vmatprep.subr.mxu0 0.0
        %1040 = vmatpush1.msra.mxu0 0.0
        %1041 = vmatprep.subr.mxu0 0.0
        %1042 = vmatpush1.msra.mxu0 0.0
        %1043 = vmatprep.subr.mxu0 0.0
        %1044 = vmatpush1.msra.mxu0 0.0
        %1045 = vmatprep.subr.mxu0 0.0
        %1046 = vmatpush1.msra.mxu0 0.0
        %1047 = vmatprep.subr.mxu0 0.0
        %1048 = vmatpush1.msra.mxu0 0.0
        %1049 = vmatprep.mubr.f32.mxu0 0.0
        %1050 = vmatmul.mubr.f32.gmra.mrb[0].mxu0 %v983
        %v1051 = vpop.f32.mrb[0].mxu0
        %v1052 = vadd.f32 0.0, %v1051
        %v1053 = vpop.f32.mrb[0].mxu0
        %1054 = vdwg.mxu0
        %1055 = vrot.lane.b32.xlu0 %v718, 112
        %v1056 = vpop.permute.xlu0 %1055
        %1057 = vrot.lane.b32.xlu0 %v718, 80
        %v1058 = vpop.permute.xlu0 %1057
        %v1059 = vsel %vm724, %v1056, 0
        %v1061 = vsel %vm724, %v1058, 0
        %1063 = vmatprep.subr.mxu0 0.0
        %1064 = vmatpush1.xpose.msra.mxu0 %v1061
        %1065 = vmatprep.subr.mxu0 0.0
        %1066 = vmatpush1.xpose.msra.mxu0 0.0
        %1067 = vmatprep.subr.mxu0 0.0
        %1068 = vmatpush1.xpose.msra.mxu0 0.0
        %1069 = vmatprep.subr.mxu0 0.0
        %1070 = vmatpush1.xpose.msra.mxu0 0.0
        %1071 = vmatprep.subr.mxu0 0.0
        %1072 = vmatpush1.xpose.msra.mxu0 0.0
        %1073 = vmatprep.subr.mxu0 0.0
        %1074 = vmatpush1.xpose.msra.mxu0 0.0
        %1075 = vmatprep.subr.mxu0 0.0
        %1076 = vmatpush1.xpose.msra.mxu0 0.0
        %1077 = vmatprep.subr.mxu0 0.0
        %1078 = vmatpush1.xpose.msra.mxu0 0.0
        %1079 = vmatprep.subr.mxu0 0.0
        %1080 = vmatpush1.xpose.msra.mxu0 0.0
        %1081 = vmatprep.subr.mxu0 0.0
        %1082 = vmatpush1.xpose.msra.mxu0 0.0
        %1083 = vmatprep.subr.mxu0 0.0
        %1084 = vmatpush1.xpose.msra.mxu0 0.0
        %1085 = vmatprep.subr.mxu0 0.0
        %1086 = vmatpush1.xpose.msra.mxu0 0.0
        %1087 = vmatprep.subr.mxu0 0.0
        %1088 = vmatpush1.xpose.msra.mxu0 0.0
        %1089 = vmatprep.subr.mxu0 0.0
        %1090 = vmatpush1.xpose.msra.mxu0 0.0
        %1091 = vmatprep.subr.mxu0 0.0
        %1092 = vmatpush1.xpose.msra.mxu0 0.0
        %1093 = vmatprep.subr.mxu0 0.0
        %1094 = vmatpush1.xpose.msra.mxu0 0.0
        %1095 = vmatprep.subr.mxu0 0.0
        %1096 = vmatpush1.xpose.msra.mxu0 0.0
        %1097 = vmatprep.subr.mxu0 0.0
        %1098 = vmatpush1.xpose.msra.mxu0 0.0
        %1099 = vmatprep.subr.mxu0 0.0
        %1100 = vmatpush1.xpose.msra.mxu0 0.0
        %1101 = vmatprep.subr.mxu0 0.0
        %1102 = vmatpush1.xpose.msra.mxu0 0.0
        %1103 = vmatprep.subr.mxu0 0.0
        %1104 = vmatpush1.xpose.msra.mxu0 0.0
        %1105 = vmatprep.subr.mxu0 0.0
        %1106 = vmatpush1.xpose.msra.mxu0 0.0
        %1107 = vmatprep.subr.mxu0 0.0
        %1108 = vmatpush1.xpose.msra.mxu0 0.0
        %1109 = vmatprep.subr.mxu0 0.0
        %1110 = vmatpush1.xpose.msra.mxu0 0.0
        %1111 = vmatprep.subr.mxu0 0.0
        %1112 = vmatpush1.xpose.msra.mxu0 0.0
        %1113 = vmatprep.subr.mxu0 0.0
        %1114 = vmatpush1.xpose.msra.mxu0 0.0
        %1115 = vmatprep.subr.mxu0 0.0
        %1116 = vmatpush1.xpose.msra.mxu0 0.0
        %1117 = vmatprep.subr.mxu0 0.0
        %1118 = vmatpush1.xpose.msra.mxu0 0.0
        %1119 = vmatprep.subr.mxu0 0.0
        %1120 = vmatpush1.xpose.msra.mxu0 0.0
        %1121 = vmatprep.subr.mxu0 0.0
        %1122 = vmatpush1.xpose.msra.mxu0 0.0
        %1123 = vmatprep.subr.mxu0 0.0
        %1124 = vmatpush1.xpose.msra.mxu0 0.0
        %1125 = vmatprep.subr.mxu0 0.0
        %1126 = vmatpush1.xpose.msra.mxu0 0.0
        %1127 = vmatprep.mubr.f32.mxu0 0.0
        %1128 = vmatmul.mubr.f32.gmra.mrb[0].mxu0 %v1059
        %v1129 = vpop.f32.mrb[0].mxu0
        %v1130 = vadd.f32 0.0, %v1129
        %v1131 = vpop.f32.mrb[0].mxu0
        %1132 = vdwg.mxu0
        %v1133 = vmul.f32 %v1130, 0.35355338
        %v1134 = vadd.f32 %v1133, %v642
        %v1135 = vsel %vm724, %v1134, -inf
        %1136 = vmax.xlane.f32.xlu0 %v1135
        %v1137 = vpop.xlane.xlu0 %1136
        %v1138 = vsub.f32 %v1134, %v1137
        %v1139 = vmul.f32 %v1138, 1.442695
        %v1140 = vpow.pop %v1139
        %v1141 = vsel %vm724, %v1140, 0.0
        %1142 = vadd.xlane.f32.xlu0 %v1141
        %v1143 = vpop.xlane.xlu0 %1142
        %v1144 = vrcp.pop %v1143
        %v1145 = vmul.f32 %v1140, %v1144
        %1146 = vrot.lane.b32.xlu0 %v718, 48
        %v1147 = vpop.permute.xlu0 %1146
        %v1150 = vsel %vm724, %v1145, 0
        %1152 = vmatprep.subr.mxu0 0.0
        %1153 = vmatpush1.msra.mxu0 %v1147
        %1154 = vmatprep.subr.mxu0 0.0
        %1155 = vmatpush1.msra.mxu0 0.0
        %1156 = vmatprep.subr.mxu0 0.0
        %1157 = vmatpush1.msra.mxu0 0.0
        %1158 = vmatprep.subr.mxu0 0.0
        %1159 = vmatpush1.msra.mxu0 0.0
        %1160 = vmatprep.subr.mxu0 0.0
        %1161 = vmatpush1.msra.mxu0 0.0
        %1162 = vmatprep.subr.mxu0 0.0
        %1163 = vmatpush1.msra.mxu0 0.0
        %1164 = vmatprep.subr.mxu0 0.0
        %1165 = vmatpush1.msra.mxu0 0.0
        %1166 = vmatprep.subr.mxu0 0.0
        %1167 = vmatpush1.msra.mxu0 0.0
        %1168 = vmatprep.subr.mxu0 0.0
        %1169 = vmatpush1.msra.mxu0 0.0
        %1170 = vmatprep.subr.mxu0 0.0
        %1171 = vmatpush1.msra.mxu0 0.0
        %1172 = vmatprep.subr.mxu0 0.0
        %1173 = vmatpush1.msra.mxu0 0.0
        %1174 = vmatprep.subr.mxu0 0.0
        %1175 = vmatpush1.msra.mxu0 0.0
        %1176 = vmatprep.subr.mxu0 0.0
        %1177 = vmatpush1.msra.mxu0 0.0
        %1178 = vmatprep.subr.mxu0 0.0
        %1179 = vmatpush1.msra.mxu0 0.0
        %1180 = vmatprep.subr.mxu0 0.0
        %1181 = vmatpush1.msra.mxu0 0.0
        %1182 = vmatprep.subr.mxu0 0.0
        %1183 = vmatpush1.msra.mxu0 0.0
        %1184 = vmatprep.subr.mxu0 0.0
        %1185 = vmatpush1.msra.mxu0 0.0
        %1186 = vmatprep.subr.mxu0 0.0
        %1187 = vmatpush1.msra.mxu0 0.0
        %1188 = vmatprep.subr.mxu0 0.0
        %1189 = vmatpush1.msra.mxu0 0.0
        %1190 = vmatprep.subr.mxu0 0.0
        %1191 = vmatpush1.msra.mxu0 0.0
        %1192 = vmatprep.subr.mxu0 0.0
        %1193 = vmatpush1.msra.mxu0 0.0
        %1194 = vmatprep.subr.mxu0 0.0
        %1195 = vmatpush1.msra.mxu0 0.0
        %1196 = vmatprep.subr.mxu0 0.0
        %1197 = vmatpush1.msra.mxu0 0.0
        %1198 = vmatprep.subr.mxu0 0.0
        %1199 = vmatpush1.msra.mxu0 0.0
        %1200 = vmatprep.subr.mxu0 0.0
        %1201 = vmatpush1.msra.mxu0 0.0
        %1202 = vmatprep.subr.mxu0 0.0
        %1203 = vmatpush1.msra.mxu0 0.0
        %1204 = vmatprep.subr.mxu0 0.0
        %1205 = vmatpush1.msra.mxu0 0.0
        %1206 = vmatprep.subr.mxu0 0.0
        %1207 = vmatpush1.msra.mxu0 0.0
        %1208 = vmatprep.subr.mxu0 0.0
        %1209 = vmatpush1.msra.mxu0 0.0
        %1210 = vmatprep.subr.mxu0 0.0
        %1211 = vmatpush1.msra.mxu0 0.0
        %1212 = vmatprep.subr.mxu0 0.0
        %1213 = vmatpush1.msra.mxu0 0.0
        %1214 = vmatprep.subr.mxu0 0.0
        %1215 = vmatpush1.msra.mxu0 0.0
        %1216 = vmatprep.mubr.f32.mxu0 0.0
        %1217 = vmatmul.mubr.f32.gmra.mrb[0].mxu0 %v1150
        %v1218 = vpop.f32.mrb[0].mxu0
        %v1219 = vadd.f32 0.0, %v1218
        %v1220 = vpop.f32.mrb[0].mxu0
        %1221 = vdwg.mxu0
        %1222 = vrot.lane.b32.xlu0 %v718, 104
        %v1223 = vpop.permute.xlu0 %1222
        %1224 = vrot.lane.b32.xlu0 %v718, 72
        %v1225 = vpop.permute.xlu0 %1224
        %v1226 = vsel %vm724, %v1223, 0
        %v1228 = vsel %vm724, %v1225, 0
        %1230 = vmatprep.subr.mxu0 0.0
        %1231 = vmatpush1.xpose.msra.mxu0 %v1228
        %1232 = vmatprep.subr.mxu0 0.0
        %1233 = vmatpush1.xpose.msra.mxu0 0.0
        %1234 = vmatprep.subr.mxu0 0.0
        %1235 = vmatpush1.xpose.msra.mxu0 0.0
        %1236 = vmatprep.subr.mxu0 0.0
        %1237 = vmatpush1.xpose.msra.mxu0 0.0
        %1238 = vmatprep.subr.mxu0 0.0
        %1239 = vmatpush1.xpose.msra.mxu0 0.0
        %1240 = vmatprep.subr.mxu0 0.0
        %1241 = vmatpush1.xpose.msra.mxu0 0.0
        %1242 = vmatprep.subr.mxu0 0.0
        %1243 = vmatpush1.xpose.msra.mxu0 0.0
        %1244 = vmatprep.subr.mxu0 0.0
        %1245 = vmatpush1.xpose.msra.mxu0 0.0
        %1246 = vmatprep.subr.mxu0 0.0
        %1247 = vmatpush1.xpose.msra.mxu0 0.0
        %1248 = vmatprep.subr.mxu0 0.0
        %1249 = vmatpush1.xpose.msra.mxu0 0.0
        %1250 = vmatprep.subr.mxu0 0.0
        %1251 = vmatpush1.xpose.msra.mxu0 0.0
        %1252 = vmatprep.subr.mxu0 0.0
        %1253 = vmatpush1.xpose.msra.mxu0 0.0
        %1254 = vmatprep.subr.mxu0 0.0
        %1255 = vmatpush1.xpose.msra.mxu0 0.0
        %1256 = vmatprep.subr.mxu0 0.0
        %1257 = vmatpush1.xpose.msra.mxu0 0.0
        %1258 = vmatprep.subr.mxu0 0.0
        %1259 = vmatpush1.xpose.msra.mxu0 0.0
        %1260 = vmatprep.subr.mxu0 0.0
        %1261 = vmatpush1.xpose.msra.mxu0 0.0
        %1262 = vmatprep.subr.mxu0 0.0
        %1263 = vmatpush1.xpose.msra.mxu0 0.0
        %1264 = vmatprep.subr.mxu0 0.0
        %1265 = vmatpush1.xpose.msra.mxu0 0.0
        %1266 = vmatprep.subr.mxu0 0.0
        %1267 = vmatpush1.xpose.msra.mxu0 0.0
        %1268 = vmatprep.subr.mxu0 0.0
        %1269 = vmatpush1.xpose.msra.mxu0 0.0
        %1270 = vmatprep.subr.mxu0 0.0
        %1271 = vmatpush1.xpose.msra.mxu0 0.0
        %1272 = vmatprep.subr.mxu0 0.0
        %1273 = vmatpush1.xpose.msra.mxu0 0.0
        %1274 = vmatprep.subr.mxu0 0.0
        %1275 = vmatpush1.xpose.msra.mxu0 0.0
        %1276 = vmatprep.subr.mxu0 0.0
        %1277 = vmatpush1.xpose.msra.mxu0 0.0
        %1278 = vmatprep.subr.mxu0 0.0
        %1279 = vmatpush1.xpose.msra.mxu0 0.0
        %1280 = vmatprep.subr.mxu0 0.0
        %1281 = vmatpush1.xpose.msra.mxu0 0.0
        %1282 = vmatprep.subr.mxu0 0.0
        %1283 = vmatpush1.xpose.msra.mxu0 0.0
        %1284 = vmatprep.subr.mxu0 0.0
        %1285 = vmatpush1.xpose.msra.mxu0 0.0
        %1286 = vmatprep.subr.mxu0 0.0
        %1287 = vmatpush1.xpose.msra.mxu0 0.0
        %1288 = vmatprep.subr.mxu0 0.0
        %1289 = vmatpush1.xpose.msra.mxu0 0.0
        %1290 = vmatprep.subr.mxu0 0.0
        %1291 = vmatpush1.xpose.msra.mxu0 0.0
        %1292 = vmatprep.subr.mxu0 0.0
        %1293 = vmatpush1.xpose.msra.mxu0 0.0
        %1294 = vmatprep.mubr.f32.mxu0 0.0
        %1295 = vmatmul.mubr.f32.gmra.mrb[0].mxu0 %v1226
        %v1296 = vpop.f32.mrb[0].mxu0
        %v1297 = vadd.f32 0.0, %v1296
        %v1298 = vpop.f32.mrb[0].mxu0
        %1299 = vdwg.mxu0
        %v1300 = vmul.f32 %v1297, 0.35355338
        %v1301 = vadd.f32 %v1300, %v642
        %v1302 = vsel %vm724, %v1301, -inf
        %1303 = vmax.xlane.f32.xlu0 %v1302
        %v1304 = vpop.xlane.xlu0 %1303
        %v1305 = vsub.f32 %v1301, %v1304
        %v1306 = vmul.f32 %v1305, 1.442695
        %v1307 = vpow.pop %v1306
        %v1308 = vsel %vm724, %v1307, 0.0
        %1309 = vadd.xlane.f32.xlu0 %v1308
        %v1310 = vpop.xlane.xlu0 %1309
        %v1311 = vrcp.pop %v1310
        %v1312 = vmul.f32 %v1307, %v1311
        %1313 = vrot.lane.b32.xlu0 %v718, 40
        %v1314 = vpop.permute.xlu0 %1313
        %v1317 = vsel %vm724, %v1312, 0
        %1319 = vmatprep.subr.mxu0 0.0
        %1320 = vmatpush1.msra.mxu0 %v1314
        %1321 = vmatprep.subr.mxu0 0.0
        %1322 = vmatpush1.msra.mxu0 0.0
        %1323 = vmatprep.subr.mxu0 0.0
        %1324 = vmatpush1.msra.mxu0 0.0
        %1325 = vmatprep.subr.mxu0 0.0
        %1326 = vmatpush1.msra.mxu0 0.0
        %1327 = vmatprep.subr.mxu0 0.0
        %1328 = vmatpush1.msra.mxu0 0.0
        %1329 = vmatprep.subr.mxu0 0.0
        %1330 = vmatpush1.msra.mxu0 0.0
        %1331 = vmatprep.subr.mxu0 0.0
        %1332 = vmatpush1.msra.mxu0 0.0
        %1333 = vmatprep.subr.mxu0 0.0
        %1334 = vmatpush1.msra.mxu0 0.0
        %1335 = vmatprep.subr.mxu0 0.0
        %1336 = vmatpush1.msra.mxu0 0.0
        %1337 = vmatprep.subr.mxu0 0.0
        %1338 = vmatpush1.msra.mxu0 0.0
        %1339 = vmatprep.subr.mxu0 0.0
        %1340 = vmatpush1.msra.mxu0 0.0
        %1341 = vmatprep.subr.mxu0 0.0
        %1342 = vmatpush1.msra.mxu0 0.0
        %1343 = vmatprep.subr.mxu0 0.0
        %1344 = vmatpush1.msra.mxu0 0.0
        %1345 = vmatprep.subr.mxu0 0.0
        %1346 = vmatpush1.msra.mxu0 0.0
        %1347 = vmatprep.subr.mxu0 0.0
        %1348 = vmatpush1.msra.mxu0 0.0
        %1349 = vmatprep.subr.mxu0 0.0
        %1350 = vmatpush1.msra.mxu0 0.0
        %1351 = vmatprep.subr.mxu0 0.0
        %1352 = vmatpush1.msra.mxu0 0.0
        %1353 = vmatprep.subr.mxu0 0.0
        %1354 = vmatpush1.msra.mxu0 0.0
        %1355 = vmatprep.subr.mxu0 0.0
        %1356 = vmatpush1.msra.mxu0 0.0
        %1357 = vmatprep.subr.mxu0 0.0
        %1358 = vmatpush1.msra.mxu0 0.0
        %1359 = vmatprep.subr.mxu0 0.0
        %1360 = vmatpush1.msra.mxu0 0.0
        %1361 = vmatprep.subr.mxu0 0.0
        %1362 = vmatpush1.msra.mxu0 0.0
        %1363 = vmatprep.subr.mxu0 0.0
        %1364 = vmatpush1.msra.mxu0 0.0
        %1365 = vmatprep.subr.mxu0 0.0
        %1366 = vmatpush1.msra.mxu0 0.0
        %1367 = vmatprep.subr.mxu0 0.0
        %1368 = vmatpush1.msra.mxu0 0.0
        %1369 = vmatprep.subr.mxu0 0.0
        %1370 = vmatpush1.msra.mxu0 0.0
        %1371 = vmatprep.subr.mxu0 0.0
        %1372 = vmatpush1.msra.mxu0 0.0
        %1373 = vmatprep.subr.mxu0 0.0
        %1374 = vmatpush1.msra.mxu0 0.0
        %1375 = vmatprep.subr.mxu0 0.0
        %1376 = vmatpush1.msra.mxu0 0.0
        %1377 = vmatprep.subr.mxu0 0.0
        %1378 = vmatpush1.msra.mxu0 0.0
        %1379 = vmatprep.subr.mxu0 0.0
        %1380 = vmatpush1.msra.mxu0 0.0
        %1381 = vmatprep.subr.mxu0 0.0
        %1382 = vmatpush1.msra.mxu0 0.0
        %1383 = vmatprep.mubr.f32.mxu0 0.0
        %1384 = vmatmul.mubr.f32.gmra.mrb[0].mxu0 %v1317
        %v1385 = vpop.f32.mrb[0].mxu0
        %v1386 = vadd.f32 0.0, %v1385
        %v1387 = vpop.f32.mrb[0].mxu0
        %1388 = vdwg.mxu0
        %1390 = vrot.lane.b32.xlu0 %v1052, 8
        %v1391 = vpop.permute.xlu0 %1390
        %1394 = vrot.lane.b32.xlu0 %v1219, 16
        %v1395 = vpop.permute.xlu0 %1394
        %1398 = vrot.lane.b32.xlu0 %v1386, 24
        %v1399 = vpop.permute.xlu0 %1398
        %v1401 = vsel %vm724, %v885, %v1391
        %vm1402 = vcmask 130048
        %v1403 = vsel %vm1402, %v1401, %v1395
        %vm1404 = vcmask 195584
        %v1405 = vsel %vm1404, %v1403, %v1399
        %v1406 = vld [vmem:[%s4] sm:$0xff]
        %v1407 = vld [vmem:[%s4 + $0x8] sm:$0xff]
        %v1408 = vld [vmem:[%s4 + $0x10] sm:$0xff]
        %v1409 = vld [vmem:[%s4 + $0x18] sm:$0xff]
        %v1411 = vsel %vm647, %v1405, 0
        %1413 = vmatprep.subr.mxu0 0.0
        %1414 = vmatpush1.msra.mxu0 %v1406
        %1415 = vmatprep.subr.mxu0 0.0
        %1416 = vmatpush1.msra.mxu0 %v1407
        %1417 = vmatprep.subr.mxu0 0.0
        %1418 = vmatpush1.msra.mxu0 %v1408
        %1419 = vmatprep.subr.mxu0 0.0
        %1420 = vmatpush1.msra.mxu0 %v1409
        %1421 = vmatprep.subr.mxu0 0.0
        %1422 = vmatpush1.msra.mxu0 0.0
        %1423 = vmatprep.subr.mxu0 0.0
        %1424 = vmatpush1.msra.mxu0 0.0
        %1425 = vmatprep.subr.mxu0 0.0
        %1426 = vmatpush1.msra.mxu0 0.0
        %1427 = vmatprep.subr.mxu0 0.0
        %1428 = vmatpush1.msra.mxu0 0.0
        %1429 = vmatprep.subr.mxu0 0.0
        %1430 = vmatpush1.msra.mxu0 0.0
        %1431 = vmatprep.subr.mxu0 0.0
        %1432 = vmatpush1.msra.mxu0 0.0
        %1433 = vmatprep.subr.mxu0 0.0
        %1434 = vmatpush1.msra.mxu0 0.0
        %1435 = vmatprep.subr.mxu0 0.0
        %1436 = vmatpush1.msra.mxu0 0.0
        %1437 = vmatprep.subr.mxu0 0.0
        %1438 = vmatpush1.msra.mxu0 0.0
        %1439 = vmatprep.subr.mxu0 0.0
        %1440 = vmatpush1.msra.mxu0 0.0
        %1441 = vmatprep.subr.mxu0 0.0
        %1442 = vmatpush1.msra.mxu0 0.0
        %1443 = vmatprep.subr.mxu0 0.0
        %1444 = vmatpush1.msra.mxu0 0.0
        %1445 = vmatprep.subr.mxu0 0.0
        %1446 = vmatpush1.msra.mxu0 0.0
        %1447 = vmatprep.subr.mxu0 0.0
        %1448 = vmatpush1.msra.mxu0 0.0
        %1449 = vmatprep.subr.mxu0 0.0
        %1450 = vmatpush1.msra.mxu0 0.0
        %1451 = vmatprep.subr.mxu0 0.0
        %1452 = vmatpush1.msra.mxu0 0.0
        %1453 = vmatprep.subr.mxu0 0.0
        %1454 = vmatpush1.msra.mxu0 0.0
        %1455 = vmatprep.subr.mxu0 0.0
        %1456 = vmatpush1.msra.mxu0 0.0
        %1457 = vmatprep.subr.mxu0 0.0
        %1458 = vmatpush1.msra.mxu0 0.0
        %1459 = vmatprep.subr.mxu0 0.0
        %1460 = vmatpush1.msra.mxu0 0.0
        %1461 = vmatprep.subr.mxu0 0.0
        %1462 = vmatpush1.msra.mxu0 0.0
        %1463 = vmatprep.subr.mxu0 0.0
        %1464 = vmatpush1.msra.mxu0 0.0
        %1465 = vmatprep.subr.mxu0 0.0
        %1466 = vmatpush1.msra.mxu0 0.0
        %1467 = vmatprep.subr.mxu0 0.0
        %1468 = vmatpush1.msra.mxu0 0.0
        %1469 = vmatprep.subr.mxu0 0.0
        %1470 = vmatpush1.msra.mxu0 0.0
        %1471 = vmatprep.subr.mxu0 0.0
        %1472 = vmatpush1.msra.mxu0 0.0
        %1473 = vmatprep.subr.mxu0 0.0
        %1474 = vmatpush1.msra.mxu0 0.0
        %1475 = vmatprep.subr.mxu0 0.0
        %1476 = vmatpush1.msra.mxu0 0.0
        %1477 = vmatprep.mubr.f32.mxu0 0.0
        %1478 = vmatmul.mubr.f32.gmra.mrb[0].mxu0 %v1411
        %v1479 = vpop.f32.mrb[0].mxu0
        %v1480 = vadd.f32 %v636, %v1479
        %v1481 = vpop.f32.mrb[0].mxu0
        %1482 = vdwg.mxu0
        %v1483 = vld [vmem:[%s5] sm:$0x1]
        %v1484 = vld [vmem:[%s6] sm:$0x1]
        %v1485 = vsel %vm647, %v1480, 0.0
        %1486 = vadd.xlane.f32.xlu0 %v1485
        %v1487 = vpop.xlane.xlu0 %1486
        %v1488 = vrcp.pop 32.0
        %v1489 = vmul.f32 %v1487, %v1488
        %v1490 = vsub.f32 %v1480, %v1489
        %v1491 = vmul.f32 %v1490, %v1490
        %v1492 = vsel %vm647, %v1491, 0.0
        %1493 = vadd.xlane.f32.xlu0 %v1492
        %v1494 = vpop.xlane.xlu0 %1493
        %v1495 = vmul.f32 %v1494, %v1488
        %v1496 = vadd.f32 %v1495, 1e-05
        %v1497 = vrsqrt.pop %v1496
        %v1498 = vmul.f32 %v1490, %v1497
        %v1500 = vlaneseq
        %v1501 = vshrl.u32 %v1500, 7
        %v1502 = vsub.s32 0, %v1501
        %v1503 = vrot.slane %v1483, %v1502
        %v1505 = vmul.f32 %v1498, %v1503
        %v1507 = vlaneseq
        %v1508 = vshrl.u32 %v1507, 7
        %v1509 = vsub.s32 0, %v1508
        %v1510 = vrot.slane %v1484, %v1509
        %v1512 = vadd.f32 %v1505, %v1510
        %v1513 = vld [vmem:[%s9] sm:$0xff]
        %v1514 = vld [vmem:[%s9 + $0x8] sm:$0xff]
        %v1515 = vld [vmem:[%s9 + $0x10] sm:$0xff]
        %v1516 = vld [vmem:[%s9 + $0x18] sm:$0xff]
        %v1517 = vld [vmem:[%s10] sm:$0x1]
        %v1519 = vlaneseq
        %v1520 = vshrl.u32 %v1519, 7
        %v1521 = vsub.s32 0, %v1520
        %v1522 = vrot.slane %v1517, %v1521
        %v1525 = vsel %vm647, %v1512, 0
        %1527 = vmatprep.subr.mxu0 0.0
        %1528 = vmatpush1.msra.mxu0 %v1513
        %1529 = vmatprep.subr.mxu0 0.0
        %1530 = vmatpush1.msra.mxu0 %v1514
        %1531 = vmatprep.subr.mxu0 0.0
        %1532 = vmatpush1.msra.mxu0 %v1515
        %1533 = vmatprep.subr.mxu0 0.0
        %1534 = vmatpush1.msra.mxu0 %v1516
        %1535 = vmatprep.subr.mxu0 0.0
        %1536 = vmatpush1.msra.mxu0 0.0
        %1537 = vmatprep.subr.mxu0 0.0
        %1538 = vmatpush1.msra.mxu0 0.0
        %1539 = vmatprep.subr.mxu0 0.0
        %1540 = vmatpush1.msra.mxu0 0.0
        %1541 = vmatprep.subr.mxu0 0.0
        %1542 = vmatpush1.msra.mxu0 0.0
        %1543 = vmatprep.subr.mxu0 0.0
        %1544 = vmatpush1.msra.mxu0 0.0
        %1545 = vmatprep.subr.mxu0 0.0
        %1546 = vmatpush1.msra.mxu0 0.0
        %1547 = vmatprep.subr.mxu0 0.0
        %1548 = vmatpush1.msra.mxu0 0.0
        %1549 = vmatprep.subr.mxu0 0.0
        %1550 = vmatpush1.msra.mxu0 0.0
        %1551 = vmatprep.subr.mxu0 0.0
        %1552 = vmatpush1.msra.mxu0 0.0
        %1553 = vmatprep.subr.mxu0 0.0
        %1554 = vmatpush1.msra.mxu0 0.0
        %1555 = vmatprep.subr.mxu0 0.0
        %1556 = vmatpush1.msra.mxu0 0.0
        %1557 = vmatprep.subr.mxu0 0.0
        %1558 = vmatpush1.msra.mxu0 0.0
        %1559 = vmatprep.subr.mxu0 0.0
        %1560 = vmatpush1.msra.mxu0 0.0
        %1561 = vmatprep.subr.mxu0 0.0
        %1562 = vmatpush1.msra.mxu0 0.0
        %1563 = vmatprep.subr.mxu0 0.0
        %1564 = vmatpush1.msra.mxu0 0.0
        %1565 = vmatprep.subr.mxu0 0.0
        %1566 = vmatpush1.msra.mxu0 0.0
        %1567 = vmatprep.subr.mxu0 0.0
        %1568 = vmatpush1.msra.mxu0 0.0
        %1569 = vmatprep.subr.mxu0 0.0
        %1570 = vmatpush1.msra.mxu0 0.0
        %1571 = vmatprep.subr.mxu0 0.0
        %1572 = vmatpush1.msra.mxu0 0.0
        %1573 = vmatprep.subr.mxu0 0.0
        %1574 = vmatpush1.msra.mxu0 0.0
        %1575 = vmatprep.subr.mxu0 0.0
        %1576 = vmatpush1.msra.mxu0 0.0
        %1577 = vmatprep.subr.mxu0 0.0
        %1578 = vmatpush1.msra.mxu0 0.0
        %1579 = vmatprep.subr.mxu0 0.0
        %1580 = vmatpush1.msra.mxu0 0.0
        %1581 = vmatprep.subr.mxu0 0.0
        %1582 = vmatpush1.msra.mxu0 0.0
        %1583 = vmatprep.subr.mxu0 0.0
        %1584 = vmatpush1.msra.mxu0 0.0
        %1585 = vmatprep.subr.mxu0 0.0
        %1586 = vmatpush1.msra.mxu0 0.0
        %1587 = vmatprep.subr.mxu0 0.0
        %1588 = vmatpush1.msra.mxu0 0.0
        %1589 = vmatprep.subr.mxu0 0.0
        %1590 = vmatpush1.msra.mxu0 0.0
        %1591 = vmatprep.mubr.f32.mxu0 0.0
        %1592 = vmatmul.mubr.f32.gmra.mrb[0].mxu0 %v1525
        %v1593 = vpop.f32.mrb[0].mxu0
        %v1594 = vadd.f32 %v1522, %v1593
        %v1595 = vpop.f32.mrb[0].mxu0
        %1596 = vdwg.mxu0
        %v1597 = vmax.f32 %v1594, 0.0
        %v1598 = vld [vmem:[%s11] sm:$0xff]
        %v1599 = vld [vmem:[%s11 + $0x8] sm:$0xff]
        %v1600 = vld [vmem:[%s11 + $0x10] sm:$0xff]
        %v1601 = vld [vmem:[%s11 + $0x18] sm:$0xff]
        %v1602 = vld [vmem:[%s11 + $0x20] sm:$0xff]
        %v1603 = vld [vmem:[%s11 + $0x28] sm:$0xff]
        %v1604 = vld [vmem:[%s11 + $0x30] sm:$0xff]
        %v1605 = vld [vmem:[%s11 + $0x38] sm:$0xff]
        %v1606 = vld [vmem:[%s12] sm:$0x1]
        %v1608 = vlaneseq
        %v1609 = vshrl.u32 %v1608, 7
        %v1610 = vsub.s32 0, %v1609
        %v1611 = vrot.slane %v1606, %v1610
        %vm1613 = vcmask 523264
        %v1615 = vsel %vm1613, %v1597, 0
        %1617 = vmatprep.subr.mxu0 0.0
        %1618 = vmatpush1.msra.mxu0 %v1598
        %1619 = vmatprep.subr.mxu0 0.0
        %1620 = vmatpush1.msra.mxu0 %v1599
        %1621 = vmatprep.subr.mxu0 0.0
        %1622 = vmatpush1.msra.mxu0 %v1600
        %1623 = vmatprep.subr.mxu0 0.0
        %1624 = vmatpush1.msra.mxu0 %v1601
        %1625 = vmatprep.subr.mxu0 0.0
        %1626 = vmatpush1.msra.mxu0 %v1602
        %1627 = vmatprep.subr.mxu0 0.0
        %1628 = vmatpush1.msra.mxu0 %v1603
        %1629 = vmatprep.subr.mxu0 0.0
        %1630 = vmatpush1.msra.mxu0 %v1604
        %1631 = vmatprep.subr.mxu0 0.0
        %1632 = vmatpush1.msra.mxu0 %v1605
        %1633 = vmatprep.subr.mxu0 0.0
        %1634 = vmatpush1.msra.mxu0 0.0
        %1635 = vmatprep.subr.mxu0 0.0
        %1636 = vmatpush1.msra.mxu0 0.0
        %1637 = vmatprep.subr.mxu0 0.0
        %1638 = vmatpush1.msra.mxu0 0.0
        %1639 = vmatprep.subr.mxu0 0.0
        %1640 = vmatpush1.msra.mxu0 0.0
        %1641 = vmatprep.subr.mxu0 0.0
        %1642 = vmatpush1.msra.mxu0 0.0
        %1643 = vmatprep.subr.mxu0 0.0
        %1644 = vmatpush1.msra.mxu0 0.0
        %1645 = vmatprep.subr.mxu0 0.0
        %1646 = vmatpush1.msra.mxu0 0.0
        %1647 = vmatprep.subr.mxu0 0.0
        %1648 = vmatpush1.msra.mxu0 0.0
        %1649 = vmatprep.subr.mxu0 0.0
        %1650 = vmatpush1.msra.mxu0 0.0
        %1651 = vmatprep.subr.mxu0 0.0
        %1652 = vmatpush1.msra.mxu0 0.0
        %1653 = vmatprep.subr.mxu0 0.0
        %1654 = vmatpush1.msra.mxu0 0.0
        %1655 = vmatprep.subr.mxu0 0.0
        %1656 = vmatpush1.msra.mxu0 0.0
        %1657 = vmatprep.subr.mxu0 0.0
        %1658 = vmatpush1.msra.mxu0 0.0
        %1659 = vmatprep.subr.mxu0 0.0
        %1660 = vmatpush1.msra.mxu0 0.0
        %1661 = vmatprep.subr.mxu0 0.0
        %1662 = vmatpush1.msra.mxu0 0.0
        %1663 = vmatprep.subr.mxu0 0.0
        %1664 = vmatpush1.msra.mxu0 0.0
        %1665 = vmatprep.subr.mxu0 0.0
        %1666 = vmatpush1.msra.mxu0 0.0
        %1667 = vmatprep.subr.mxu0 0.0
        %1668 = vmatpush1.msra.mxu0 0.0
        %1669 = vmatprep.subr.mxu0 0.0
        %1670 = vmatpush1.msra.mxu0 0.0
        %1671 = vmatprep.subr.mxu0 0.0
        %1672 = vmatpush1.msra.mxu0 0.0
        %1673 = vmatprep.subr.mxu0 0.0
        %1674 = vmatpush1.msra.mxu0 0.0
        %1675 = vmatprep.subr.mxu0 0.0
        %1676 = vmatpush1.msra.mxu0 0.0
        %1677 = vmatprep.subr.mxu0 0.0
        %1678 = vmatpush1.msra.mxu0 0.0
        %1679 = vmatprep.subr.mxu0 0.0
        %1680 = vmatpush1.msra.mxu0 0.0
        %1681 = vmatprep.mubr.f32.mxu0 0.0
        %1682 = vmatmul.mubr.f32.gmra.mrb[0].mxu0 %v1615
        %v1683 = vpop.f32.mrb[0].mxu0
        %v1684 = vadd.f32 %v1611, %v1683
        %v1685 = vpop.f32.mrb[0].mxu0
        %1686 = vdwg.mxu0
        %v1687 = vadd.f32 %v1684, %v1512
        %v1688 = vld [vmem:[%s7] sm:$0x1]
        %v1689 = vld [vmem:[%s8] sm:$0x1]
        %v1690 = vsel %vm647, %v1687, 0.0
        %1691 = vadd.xlane.f32.xlu0 %v1690
        %v1692 = vpop.xlane.xlu0 %1691
        %v1693 = vmul.f32 %v1692, %v1488
        %v1694 = vsub.f32 %v1687, %v1693
        %v1695 = vmul.f32 %v1694, %v1694
        %v1696 = vsel %vm647, %v1695, 0.0
        %1697 = vadd.xlane.f32.xlu0 %v1696
        %v1698 = vpop.xlane.xlu0 %1697
        %v1699 = vmul.f32 %v1698, %v1488
        %v1700 = vadd.f32 %v1699, 1e-05
        %v1701 = vrsqrt.pop %v1700
        %v1702 = vmul.f32 %v1694, %v1701
        %v1704 = vlaneseq
        %v1705 = vshrl.u32 %v1704, 7
        %v1706 = vsub.s32 0, %v1705
        %v1707 = vrot.slane %v1688, %v1706
        %v1709 = vmul.f32 %v1702, %v1707
        %v1711 = vlaneseq
        %v1712 = vshrl.u32 %v1711, 7
        %v1713 = vsub.s32 0, %v1712
        %v1714 = vrot.slane %v1689, %v1713
        %v1716 = vadd.f32 %v1709, %v1714
        %s1717 = scalar_lea.vmem %s3, 32
        %v1718 = vld [vmem:[%s1717] sm:$0xff]
        %v1719 = vld [vmem:[%s1717 + $0x8] sm:$0xff]
        %v1720 = vld [vmem:[%s1717 + $0x10] sm:$0xff]
        %v1721 = vld [vmem:[%s1717 + $0x18] sm:$0xff]
        %v1723 = vsel %vm647, %v1716, 0
        %1725 = vmatprep.subr.mxu0 0.0
        %1726 = vmatpush1.msra.mxu0 %v1718
        %1727 = vmatprep.subr.mxu0 0.0
        %1728 = vmatpush1.msra.mxu0 %v1719
        %1729 = vmatprep.subr.mxu0 0.0
        %1730 = vmatpush1.msra.mxu0 %v1720
        %1731 = vmatprep.subr.mxu0 0.0
        %1732 = vmatpush1.msra.mxu0 %v1721
        %1733 = vmatprep.subr.mxu0 0.0
        %1734 = vmatpush1.msra.mxu0 0.0
        %1735 = vmatprep.subr.mxu0 0.0
        %1736 = vmatpush1.msra.mxu0 0.0
        %1737 = vmatprep.subr.mxu0 0.0
        %1738 = vmatpush1.msra.mxu0 0.0
        %1739 = vmatprep.subr.mxu0 0.0
        %1740 = vmatpush1.msra.mxu0 0.0
        %1741 = vmatprep.subr.mxu0 0.0
        %1742 = vmatpush1.msra.mxu0 0.0
        %1743 = vmatprep.subr.mxu0 0.0
        %1744 = vmatpush1.msra.mxu0 0.0
        %1745 = vmatprep.subr.mxu0 0.0
        %1746 = vmatpush1.msra.mxu0 0.0
        %1747 = vmatprep.subr.mxu0 0.0
        %1748 = vmatpush1.msra.mxu0 0.0
        %1749 = vmatprep.subr.mxu0 0.0
        %1750 = vmatpush1.msra.mxu0 0.0
        %1751 = vmatprep.subr.mxu0 0.0
        %1752 = vmatpush1.msra.mxu0 0.0
        %1753 = vmatprep.subr.mxu0 0.0
        %1754 = vmatpush1.msra.mxu0 0.0
        %1755 = vmatprep.subr.mxu0 0.0
        %1756 = vmatpush1.msra.mxu0 0.0
        %1757 = vmatprep.subr.mxu0 0.0
        %1758 = vmatpush1.msra.mxu0 0.0
        %1759 = vmatprep.subr.mxu0 0.0
        %1760 = vmatpush1.msra.mxu0 0.0
        %1761 = vmatprep.subr.mxu0 0.0
        %1762 = vmatpush1.msra.mxu0 0.0
        %1763 = vmatprep.subr.mxu0 0.0
        %1764 = vmatpush1.msra.mxu0 0.0
        %1765 = vmatprep.subr.mxu0 0.0
        %1766 = vmatpush1.msra.mxu0 0.0
        %1767 = vmatprep.subr.mxu0 0.0
        %1768 = vmatpush1.msra.mxu0 0.0
        %1769 = vmatprep.subr.mxu0 0.0
        %1770 = vmatpush1.msra.mxu0 0.0
        %1771 = vmatprep.subr.mxu0 0.0
        %1772 = vmatpush1.msra.mxu0 0.0
        %1773 = vmatprep.subr.mxu0 0.0
        %1774 = vmatpush1.msra.mxu0 0.0
        %1775 = vmatprep.subr.mxu0 0.0
        %1776 = vmatpush1.msra.mxu0 0.0
        %1777 = vmatprep.subr.mxu0 0.0
        %1778 = vmatpush1.msra.mxu0 0.0
        %1779 = vmatprep.subr.mxu0 0.0
        %1780 = vmatpush1.msra.mxu0 0.0
        %1781 = vmatprep.subr.mxu0 0.0
        %1782 = vmatpush1.msra.mxu0 0.0
        %1783 = vmatprep.subr.mxu0 0.0
        %1784 = vmatpush1.msra.mxu0 0.0
        %1785 = vmatprep.subr.mxu0 0.0
        %1786 = vmatpush1.msra.mxu0 0.0
        %1787 = vmatprep.subr.mxu0 0.0
        %1788 = vmatpush1.msra.mxu0 0.0
        %1789 = vmatprep.mubr.f32.mxu0 0.0
        %1790 = vmatmul.mubr.f32.gmra.mrb[0].mxu0 %v1723
        %v1791 = vpop.f32.mrb[0].mxu0
        %v1792 = vadd.f32 0.0, %v1791
        %v1793 = vpop.f32.mrb[0].mxu0
        %1794 = vdwg.mxu0
        %1796 = vrot.lane.b32.xlu0 %v1792, 96
        %v1797 = vpop.permute.xlu0 %1796
        %v1798 = vsel %vm724, %v1792, 0
        %v1800 = vsel %vm724, %v1797, 0
        %1802 = vmatprep.subr.mxu0 0.0
        %1803 = vmatpush1.xpose.msra.mxu0 %v1800
        %1804 = vmatprep.subr.mxu0 0.0
        %1805 = vmatpush1.xpose.msra.mxu0 0.0
        %1806 = vmatprep.subr.mxu0 0.0
        %1807 = vmatpush1.xpose.msra.mxu0 0.0
        %1808 = vmatprep.subr.mxu0 0.0
        %1809 = vmatpush1.xpose.msra.mxu0 0.0
        %1810 = vmatprep.subr.mxu0 0.0
        %1811 = vmatpush1.xpose.msra.mxu0 0.0
        %1812 = vmatprep.subr.mxu0 0.0
        %1813 = vmatpush1.xpose.msra.mxu0 0.0
        %1814 = vmatprep.subr.mxu0 0.0
        %1815 = vmatpush1.xpose.msra.mxu0 0.0
        %1816 = vmatprep.subr.mxu0 0.0
        %1817 = vmatpush1.xpose.msra.mxu0 0.0
        %1818 = vmatprep.subr.mxu0 0.0
        %1819 = vmatpush1.xpose.msra.mxu0 0.0
        %1820 = vmatprep.subr.mxu0 0.0
        %1821 = vmatpush1.xpose.msra.mxu0 0.0
        %1822 = vmatprep.subr.mxu0 0.0
        %1823 = vmatpush1.xpose.msra.mxu0 0.0
        %1824 = vmatprep.subr.mxu0 0.0
        %1825 = vmatpush1.xpose.msra.mxu0 0.0
        %1826 = vmatprep.subr.mxu0 0.0
        %1827 = vmatpush1.xpose.msra.mxu0 0.0
        %1828 = vmatprep.subr.mxu0 0.0
        %1829 = vmatpush1.xpose.msra.mxu0 0.0
        %1830 = vmatprep.subr.mxu0 0.0
        %1831 = vmatpush1.xpose.msra.mxu0 0.0
        %1832 = vmatprep.subr.mxu0 0.0
        %1833 = vmatpush1.xpose.msra.mxu0 0.0
        %1834 = vmatprep.subr.mxu0 0.0
        %1835 = vmatpush1.xpose.msra.mxu0 0.0
        %1836 = vmatprep.subr.mxu0 0.0
        %1837 = vmatpush1.xpose.msra.mxu0 0.0
        %1838 = vmatprep.subr.mxu0 0.0
        %1839 = vmatpush1.xpose.msra.mxu0 0.0
        %1840 = vmatprep.subr.mxu0 0.0
        %1841 = vmatpush1.xpose.msra.mxu0 0.0
        %1842 = vmatprep.subr.mxu0 0.0
        %1843 = vmatpush1.xpose.msra.mxu0 0.0
        %1844 = vmatprep.subr.mxu0 0.0
        %1845 = vmatpush1.xpose.msra.mxu0 0.0
        %1846 = vmatprep.subr.mxu0 0.0
        %1847 = vmatpush1.xpose.msra.mxu0 0.0
        %1848 = vmatprep.subr.mxu0 0.0
        %1849 = vmatpush1.xpose.msra.mxu0 0.0
        %1850 = vmatprep.subr.mxu0 0.0
        %1851 = vmatpush1.xpose.msra.mxu0 0.0
        %1852 = vmatprep.subr.mxu0 0.0
        %1853 = vmatpush1.xpose.msra.mxu0 0.0
        %1854 = vmatprep.subr.mxu0 0.0
        %1855 = vmatpush1.xpose.msra.mxu0 0.0
        %1856 = vmatprep.subr.mxu0 0.0
        %1857 = vmatpush1.xpose.msra.mxu0 0.0
        %1858 = vmatprep.subr.mxu0 0.0
        %1859 = vmatpush1.xpose.msra.mxu0 0.0
        %1860 = vmatprep.subr.mxu0 0.0
        %1861 = vmatpush1.xpose.msra.mxu0 0.0
        %1862 = vmatprep.subr.mxu0 0.0
        %1863 = vmatpush1.xpose.msra.mxu0 0.0
        %1864 = vmatprep.subr.mxu0 0.0
        %1865 = vmatpush1.xpose.msra.mxu0 0.0
        %1866 = vmatprep.mubr.f32.mxu0 0.0
        %1867 = vmatmul.mubr.f32.gmra.mrb[0].mxu0 %v1798
        %v1868 = vpop.f32.mrb[0].mxu0
        %v1869 = vadd.f32 0.0, %v1868
        %v1870 = vpop.f32.mrb[0].mxu0
        %1871 = vdwg.mxu0
        %v1872 = vmul.f32 %v1869, 0.35355338
        %v1873 = vadd.f32 %v1872, %v642
        %v1874 = vsel %vm724, %v1873, -inf
        %1875 = vmax.xlane.f32.xlu0 %v1874
        %v1876 = vpop.xlane.xlu0 %1875
        %v1877 = vsub.f32 %v1873, %v1876
        %v1878 = vmul.f32 %v1877, 1.442695
        %v1879 = vpow.pop %v1878
        %v1880 = vsel %vm724, %v1879, 0.0
        %1881 = vadd.xlane.f32.xlu0 %v1880
        %v1882 = vpop.xlane.xlu0 %1881
        %v1883 = vrcp.pop %v1882
        %v1884 = vmul.f32 %v1879, %v1883
        %1885 = vrot.lane.b32.xlu0 %v1792, 64
        %v1886 = vpop.permute.xlu0 %1885
        %v1889 = vsel %vm724, %v1884, 0
        %1891 = vmatprep.subr.mxu0 0.0
        %1892 = vmatpush1.msra.mxu0 %v1886
        %1893 = vmatprep.subr.mxu0 0.0
        %1894 = vmatpush1.msra.mxu0 0.0
        %1895 = vmatprep.subr.mxu0 0.0
        %1896 = vmatpush1.msra.mxu0 0.0
        %1897 = vmatprep.subr.mxu0 0.0
        %1898 = vmatpush1.msra.mxu0 0.0
        %1899 = vmatprep.subr.mxu0 0.0
        %1900 = vmatpush1.msra.mxu0 0.0
        %1901 = vmatprep.subr.mxu0 0.0
        %1902 = vmatpush1.msra.mxu0 0.0
        %1903 = vmatprep.subr.mxu0 0.0
        %1904 = vmatpush1.msra.mxu0 0.0
        %1905 = vmatprep.subr.mxu0 0.0
        %1906 = vmatpush1.msra.mxu0 0.0
        %1907 = vmatprep.subr.mxu0 0.0
        %1908 = vmatpush1.msra.mxu0 0.0
        %1909 = vmatprep.subr.mxu0 0.0
        %1910 = vmatpush1.msra.mxu0 0.0
        %1911 = vmatprep.subr.mxu0 0.0
        %1912 = vmatpush1.msra.mxu0 0.0
        %1913 = vmatprep.subr.mxu0 0.0
        %1914 = vmatpush1.msra.mxu0 0.0
        %1915 = vmatprep.subr.mxu0 0.0
        %1916 = vmatpush1.msra.mxu0 0.0
        %1917 = vmatprep.subr.mxu0 0.0
        %1918 = vmatpush1.msra.mxu0 0.0
        %1919 = vmatprep.subr.mxu0 0.0
        %1920 = vmatpush1.msra.mxu0 0.0
        %1921 = vmatprep.subr.mxu0 0.0
        %1922 = vmatpush1.msra.mxu0 0.0
        %1923 = vmatprep.subr.mxu0 0.0
        %1924 = vmatpush1.msra.mxu0 0.0
        %1925 = vmatprep.subr.mxu0 0.0
        %1926 = vmatpush1.msra.mxu0 0.0
        %1927 = vmatprep.subr.mxu0 0.0
        %1928 = vmatpush1.msra.mxu0 0.0
        %1929 = vmatprep.subr.mxu0 0.0
        %1930 = vmatpush1.msra.mxu0 0.0
        %1931 = vmatprep.subr.mxu0 0.0
        %1932 = vmatpush1.msra.mxu0 0.0
        %1933 = vmatprep.subr.mxu0 0.0
        %1934 = vmatpush1.msra.mxu0 0.0
        %1935 = vmatprep.subr.mxu0 0.0
        %1936 = vmatpush1.msra.mxu0 0.0
        %1937 = vmatprep.subr.mxu0 0.0
        %1938 = vmatpush1.msra.mxu0 0.0
        %1939 = vmatprep.subr.mxu0 0.0
        %1940 = vmatpush1.msra.mxu0 0.0
        %1941 = vmatprep.subr.mxu0 0.0
        %1942 = vmatpush1.msra.mxu0 0.0
        %1943 = vmatprep.subr.mxu0 0.0
        %1944 = vmatpush1.msra.mxu0 0.0
        %1945 = vmatprep.subr.mxu0 0.0
        %1946 = vmatpush1.msra.mxu0 0.0
        %1947 = vmatprep.subr.mxu0 0.0
        %1948 = vmatpush1.msra.mxu0 0.0
        %1949 = vmatprep.subr.mxu0 0.0
        %1950 = vmatpush1.msra.mxu0 0.0
        %1951 = vmatprep.subr.mxu0 0.0
        %1952 = vmatpush1.msra.mxu0 0.0
        %1953 = vmatprep.subr.mxu0 0.0
        %1954 = vmatpush1.msra.mxu0 0.0
        %1955 = vmatprep.mubr.f32.mxu0 0.0
        %1956 = vmatmul.mubr.f32.gmra.mrb[0].mxu0 %v1889
        %v1957 = vpop.f32.mrb[0].mxu0
        %v1958 = vadd.f32 0.0, %v1957
        %v1959 = vpop.f32.mrb[0].mxu0
        %1960 = vdwg.mxu0
        %1961 = vrot.lane.b32.xlu0 %v1792, 120
        %v1962 = vpop.permute.xlu0 %1961
        %1963 = vrot.lane.b32.xlu0 %v1792, 88
        %v1964 = vpop.permute.xlu0 %1963
        %v1965 = vsel %vm724, %v1962, 0
        %v1967 = vsel %vm724, %v1964, 0
        %1969 = vmatprep.subr.mxu0 0.0
        %1970 = vmatpush1.xpose.msra.mxu0 %v1967
        %1971 = vmatprep.subr.mxu0 0.0
        %1972 = vmatpush1.xpose.msra.mxu0 0.0
        %1973 = vmatprep.subr.mxu0 0.0
        %1974 = vmatpush1.xpose.msra.mxu0 0.0
        %1975 = vmatprep.subr.mxu0 0.0
        %1976 = vmatpush1.xpose.msra.mxu0 0.0
        %1977 = vmatprep.subr.mxu0 0.0
        %1978 = vmatpush1.xpose.msra.mxu0 0.0
        %1979 = vmatprep.subr.mxu0 0.0
        %1980 = vmatpush1.xpose.msra.mxu0 0.0
        %1981 = vmatprep.subr.mxu0 0.0
        %1982 = vmatpush1.xpose.msra.mxu0 0.0
        %1983 = vmatprep.subr.mxu0 0.0
        %1984 = vmatpush1.xpose.msra.mxu0 0.0
        %1985 = vmatprep.subr.mxu0 0.0
        %1986 = vmatpush1.xpose.msra.mxu0 0.0
        %1987 = vmatprep.subr.mxu0 0.0
        %1988 = vmatpush1.xpose.msra.mxu0 0.0
        %1989 = vmatprep.subr.mxu0 0.0
        %1990 = vmatpush1.xpose.msra.mxu0 0.0
        %1991 = vmatprep.subr.mxu0 0.0
        %1992 = vmatpush1.xpose.msra.mxu0 0.0
        %1993 = vmatprep.subr.mxu0 0.0
        %1994 = vmatpush1.xpose.msra.mxu0 0.0
        %1995 = vmatprep.subr.mxu0 0.0
        %1996 = vmatpush1.xpose.msra.mxu0 0.0
        %1997 = vmatprep.subr.mxu0 0.0
        %1998 = vmatpush1.xpose.msra.mxu0 0.0
        %1999 = vmatprep.subr.mxu0 0.0
        %2000 = vmatpush1.xpose.msra.mxu0 0.0
        %2001 = vmatprep.subr.mxu0 0.0
        %2002 = vmatpush1.xpose.msra.mxu0 0.0
        %2003 = vmatprep.subr.mxu0 0.0
        %2004 = vmatpush1.xpose.msra.mxu0 0.0
        %2005 = vmatprep.subr.mxu0 0.0
        %2006 = vmatpush1.xpose.msra.mxu0 0.0
        %2007 = vmatprep.subr.mxu0 0.0
        %2008 = vmatpush1.xpose.msra.mxu0 0.0
        %2009 = vmatprep.subr.mxu0 0.0
        %2010 = vmatpush1.xpose.msra.mxu0 0.0
        %2011 = vmatprep.subr.mxu0 0.0
        %2012 = vmatpush1.xpose.msra.mxu0 0.0
        %2013 = vmatprep.subr.mxu0 0.0
        %2014 = vmatpush1.xpose.msra.mxu0 0.0
        %2015 = vmatprep.subr.mxu0 0.0
        %2016 = vmatpush1.xpose.msra.mxu0 0.0
        %2017 = vmatprep.subr.mxu0 0.0
        %2018 = vmatpush1.xpose.msra.mxu0 0.0
        %2019 = vmatprep.subr.mxu0 0.0
        %2020 = vmatpush1.xpose.msra.mxu0 0.0
        %2021 = vmatprep.subr.mxu0 0.0
        %2022 = vmatpush1.xpose.msra.mxu0 0.0
        %2023 = vmatprep.subr.mxu0 0.0
        %2024 = vmatpush1.xpose.msra.mxu0 0.0
        %2025 = vmatprep.subr.mxu0 0.0
        %2026 = vmatpush1.xpose.msra.mxu0 0.0
        %2027 = vmatprep.subr.mxu0 0.0
        %2028 = vmatpush1.xpose.msra.mxu0 0.0
        %2029 = vmatprep.subr.mxu0 0.0
        %2030 = vmatpush1.xpose.msra.mxu0 0.0
        %2031 = vmatprep.subr.mxu0 0.0
        %2032 = vmatpush1.xpose.msra.mxu0 0.0
        %2033 = vmatprep.mubr.f32.mxu0 0.0
        %2034 = vmatmul.mubr.f32.gmra.mrb[0].mxu0 %v1965
        %v2035 = vpop.f32.mrb[0].mxu0
        %v2036 = vadd.f32 0.0, %v2035
        %v2037 = vpop.f32.mrb[0].mxu0
        %2038 = vdwg.mxu0
        %v2039 = vmul.f32 %v2036, 0.35355338
        %v2040 = vadd.f32 %v2039, %v642
        %v2041 = vsel %vm724, %v2040, -inf
        %2042 = vmax.xlane.f32.xlu0 %v2041
        %v2043 = vpop.xlane.xlu0 %2042
        %v2044 = vsub.f32 %v2040, %v2043
        %v2045 = vmul.f32 %v2044, 1.442695
        %v2046 = vpow.pop %v2045
        %v2047 = vsel %vm724, %v2046, 0.0
        %2048 = vadd.xlane.f32.xlu0 %v2047
        %v2049 = vpop.xlane.xlu0 %2048
        %v2050 = vrcp.pop %v2049
        %v2051 = vmul.f32 %v2046, %v2050
        %2052 = vrot.lane.b32.xlu0 %v1792, 56
        %v2053 = vpop.permute.xlu0 %2052
        %v2056 = vsel %vm724, %v2051, 0
        %2058 = vmatprep.subr.mxu0 0.0
        %2059 = vmatpush1.msra.mxu0 %v2053
        %2060 = vmatprep.subr.mxu0 0.0
        %2061 = vmatpush1.msra.mxu0 0.0
        %2062 = vmatprep.subr.mxu0 0.0
        %2063 = vmatpush1.msra.mxu0 0.0
        %2064 = vmatprep.subr.mxu0 0.0
        %2065 = vmatpush1.msra.mxu0 0.0
        %2066 = vmatprep.subr.mxu0 0.0
        %2067 = vmatpush1.msra.mxu0 0.0
        %2068 = vmatprep.subr.mxu0 0.0
        %2069 = vmatpush1.msra.mxu0 0.0
        %2070 = vmatprep.subr.mxu0 0.0
        %2071 = vmatpush1.msra.mxu0 0.0
        %2072 = vmatprep.subr.mxu0 0.0
        %2073 = vmatpush1.msra.mxu0 0.0
        %2074 = vmatprep.subr.mxu0 0.0
        %2075 = vmatpush1.msra.mxu0 0.0
        %2076 = vmatprep.subr.mxu0 0.0
        %2077 = vmatpush1.msra.mxu0 0.0
        %2078 = vmatprep.subr.mxu0 0.0
        %2079 = vmatpush1.msra.mxu0 0.0
        %2080 = vmatprep.subr.mxu0 0.0
        %2081 = vmatpush1.msra.mxu0 0.0
        %2082 = vmatprep.subr.mxu0 0.0
        %2083 = vmatpush1.msra.mxu0 0.0
        %2084 = vmatprep.subr.mxu0 0.0
        %2085 = vmatpush1.msra.mxu0 0.0
        %2086 = vmatprep.subr.mxu0 0.0
        %2087 = vmatpush1.msra.mxu0 0.0
        %2088 = vmatprep.subr.mxu0 0.0
        %2089 = vmatpush1.msra.mxu0 0.0
        %2090 = vmatprep.subr.mxu0 0.0
        %2091 = vmatpush1.msra.mxu0 0.0
        %2092 = vmatprep.subr.mxu0 0.0
        %2093 = vmatpush1.msra.mxu0 0.0
        %2094 = vmatprep.subr.mxu0 0.0
        %2095 = vmatpush1.msra.mxu0 0.0
        %2096 = vmatprep.subr.mxu0 0.0
        %2097 = vmatpush1.msra.mxu0 0.0
        %2098 = vmatprep.subr.mxu0 0.0
        %2099 = vmatpush1.msra.mxu0 0.0
        %2100 = vmatprep.subr.mxu0 0.0
        %2101 = vmatpush1.msra.mxu0 0.0
        %2102 = vmatprep.subr.mxu0 0.0
        %2103 = vmatpush1.msra.mxu0 0.0
        %2104 = vmatprep.subr.mxu0 0.0
        %2105 = vmatpush1.msra.mxu0 0.0
        %2106 = vmatprep.subr.mxu0 0.0
        %2107 = vmatpush1.msra.mxu0 0.0
        %2108 = vmatprep.subr.mxu0 0.0
        %2109 = vmatpush1.msra.mxu0 0.0
        %2110 = vmatprep.subr.mxu0 0.0
        %2111 = vmatpush1.msra.mxu0 0.0
        %2112 = vmatprep.subr.mxu0 0.0
        %2113 = vmatpush1.msra.mxu0 0.0
        %2114 = vmatprep.subr.mxu0 0.0
        %2115 = vmatpush1.msra.mxu0 0.0
        %2116 = vmatprep.subr.mxu0 0.0
        %2117 = vmatpush1.msra.mxu0 0.0
        %2118 = vmatprep.subr.mxu0 0.0
        %2119 = vmatpush1.msra.mxu0 0.0
        %2120 = vmatprep.subr.mxu0 0.0
        %2121 = vmatpush1.msra.mxu0 0.0
        %2122 = vmatprep.mubr.f32.mxu0 0.0
        %2123 = vmatmul.mubr.f32.gmra.mrb[0].mxu0 %v2056
        %v2124 = vpop.f32.mrb[0].mxu0
        %v2125 = vadd.f32 0.0, %v2124
        %v2126 = vpop.f32.mrb[0].mxu0
        %2127 = vdwg.mxu0
        %2128 = vrot.lane.b32.xlu0 %v1792, 112
        %v2129 = vpop.permute.xlu0 %2128
        %2130 = vrot.lane.b32.xlu0 %v1792, 80
        %v2131 = vpop.permute.xlu0 %2130
        %v2132 = vsel %vm724, %v2129, 0
        %v2134 = vsel %vm724, %v2131, 0
        %2136 = vmatprep.subr.mxu0 0.0
        %2137 = vmatpush1.xpose.msra.mxu0 %v2134
        %2138 = vmatprep.subr.mxu0 0.0
        %2139 = vmatpush1.xpose.msra.mxu0 0.0
        %2140 = vmatprep.subr.mxu0 0.0
        %2141 = vmatpush1.xpose.msra.mxu0 0.0
        %2142 = vmatprep.subr.mxu0 0.0
        %2143 = vmatpush1.xpose.msra.mxu0 0.0
        %2144 = vmatprep.subr.mxu0 0.0
        %2145 = vmatpush1.xpose.msra.mxu0 0.0
        %2146 = vmatprep.subr.mxu0 0.0
        %2147 = vmatpush1.xpose.msra.mxu0 0.0
        %2148 = vmatprep.subr.mxu0 0.0
        %2149 = vmatpush1.xpose.msra.mxu0 0.0
        %2150 = vmatprep.subr.mxu0 0.0
        %2151 = vmatpush1.xpose.msra.mxu0 0.0
        %2152 = vmatprep.subr.mxu0 0.0
        %2153 = vmatpush1.xpose.msra.mxu0 0.0
        %2154 = vmatprep.subr.mxu0 0.0
        %2155 = vmatpush1.xpose.msra.mxu0 0.0
        %2156 = vmatprep.subr.mxu0 0.0
        %2157 = vmatpush1.xpose.msra.mxu0 0.0
        %2158 = vmatprep.subr.mxu0 0.0
        %2159 = vmatpush1.xpose.msra.mxu0 0.0
        %2160 = vmatprep.subr.mxu0 0.0
        %2161 = vmatpush1.xpose.msra.mxu0 0.0
        %2162 = vmatprep.subr.mxu0 0.0
        %2163 = vmatpush1.xpose.msra.mxu0 0.0
        %2164 = vmatprep.subr.mxu0 0.0
        %2165 = vmatpush1.xpose.msra.mxu0 0.0
        %2166 = vmatprep.subr.mxu0 0.0
        %2167 = vmatpush1.xpose.msra.mxu0 0.0
        %2168 = vmatprep.subr.mxu0 0.0
        %2169 = vmatpush1.xpose.msra.mxu0 0.0
        %2170 = vmatprep.subr.mxu0 0.0
        %2171 = vmatpush1.xpose.msra.mxu0 0.0
        %2172 = vmatprep.subr.mxu0 0.0
        %2173 = vmatpush1.xpose.msra.mxu0 0.0
        %2174 = vmatprep.subr.mxu0 0.0
        %2175 = vmatpush1.xpose.msra.mxu0 0.0
        %2176 = vmatprep.subr.mxu0 0.0
        %2177 = vmatpush1.xpose.msra.mxu0 0.0
        %2178 = vmatprep.subr.mxu0 0.0
        %2179 = vmatpush1.xpose.msra.mxu0 0.0
        %2180 = vmatprep.subr.mxu0 0.0
        %2181 = vmatpush1.xpose.msra.mxu0 0.0
        %2182 = vmatprep.subr.mxu0 0.0
        %2183 = vmatpush1.xpose.msra.mxu0 0.0
        %2184 = vmatprep.subr.mxu0 0.0
        %2185 = vmatpush1.xpose.msra.mxu0 0.0
        %2186 = vmatprep.subr.mxu0 0.0
        %2187 = vmatpush1.xpose.msra.mxu0 0.0
        %2188 = vmatprep.subr.mxu0 0.0
        %2189 = vmatpush1.xpose.msra.mxu0 0.0
        %2190 = vmatprep.subr.mxu0 0.0
        %2191 = vmatpush1.xpose.msra.mxu0 0.0
        %2192 = vmatprep.subr.mxu0 0.0
        %2193 = vmatpush1.xpose.msra.mxu0 0.0
        %2194 = vmatprep.subr.mxu0 0.0
        %2195 = vmatpush1.xpose.msra.mxu0 0.0
        %2196 = vmatprep.subr.mxu0 0.0
        %2197 = vmatpush1.xpose.msra.mxu0 0.0
        %2198 = vmatprep.subr.mxu0 0.0
        %2199 = vmatpush1.xpose.msra.mxu0 0.0
        %2200 = vmatprep.mubr.f32.mxu0 0.0
        %2201 = vmatmul.mubr.f32.gmra.mrb[0].mxu0 %v2132
        %v2202 = vpop.f32.mrb[0].mxu0
        %v2203 = vadd.f32 0.0, %v2202
        %v2204 = vpop.f32.mrb[0].mxu0
        %2205 = vdwg.mxu0
        %v2206 = vmul.f32 %v2203, 0.35355338
        %v2207 = vadd.f32 %v2206, %v642
        %v2208 = vsel %vm724, %v2207, -inf
        %2209 = vmax.xlane.f32.xlu0 %v2208
        %v2210 = vpop.xlane.xlu0 %2209
        %v2211 = vsub.f32 %v2207, %v2210
        %v2212 = vmul.f32 %v2211, 1.442695
        %v2213 = vpow.pop %v2212
        %v2214 = vsel %vm724, %v2213, 0.0
        %2215 = vadd.xlane.f32.xlu0 %v2214
        %v2216 = vpop.xlane.xlu0 %2215
        %v2217 = vrcp.pop %v2216
        %v2218 = vmul.f32 %v2213, %v2217
        %2219 = vrot.lane.b32.xlu0 %v1792, 48
        %v2220 = vpop.permute.xlu0 %2219
        %v2223 = vsel %vm724, %v2218, 0
        %2225 = vmatprep.subr.mxu0 0.0
        %2226 = vmatpush1.msra.mxu0 %v2220
        %2227 = vmatprep.subr.mxu0 0.0
        %2228 = vmatpush1.msra.mxu0 0.0
        %2229 = vmatprep.subr.mxu0 0.0
        %2230 = vmatpush1.msra.mxu0 0.0
        %2231 = vmatprep.subr.mxu0 0.0
        %2232 = vmatpush1.msra.mxu0 0.0
        %2233 = vmatprep.subr.mxu0 0.0
        %2234 = vmatpush1.msra.mxu0 0.0
        %2235 = vmatprep.subr.mxu0 0.0
        %2236 = vmatpush1.msra.mxu0 0.0
        %2237 = vmatprep.subr.mxu0 0.0
        %2238 = vmatpush1.msra.mxu0 0.0
        %2239 = vmatprep.subr.mxu0 0.0
        %2240 = vmatpush1.msra.mxu0 0.0
        %2241 = vmatprep.subr.mxu0 0.0
        %2242 = vmatpush1.msra.mxu0 0.0
        %2243 = vmatprep.subr.mxu0 0.0
        %2244 = vmatpush1.msra.mxu0 0.0
        %2245 = vmatprep.subr.mxu0 0.0
        %2246 = vmatpush1.msra.mxu0 0.0
        %2247 = vmatprep.subr.mxu0 0.0
        %2248 = vmatpush1.msra.mxu0 0.0
        %2249 = vmatprep.subr.mxu0 0.0
        %2250 = vmatpush1.msra.mxu0 0.0
        %2251 = vmatprep.subr.mxu0 0.0
        %2252 = vmatpush1.msra.mxu0 0.0
        %2253 = vmatprep.subr.mxu0 0.0
        %2254 = vmatpush1.msra.mxu0 0.0
        %2255 = vmatprep.subr.mxu0 0.0
        %2256 = vmatpush1.msra.mxu0 0.0
        %2257 = vmatprep.subr.mxu0 0.0
        %2258 = vmatpush1.msra.mxu0 0.0
        %2259 = vmatprep.subr.mxu0 0.0
        %2260 = vmatpush1.msra.mxu0 0.0
        %2261 = vmatprep.subr.mxu0 0.0
        %2262 = vmatpush1.msra.mxu0 0.0
        %2263 = vmatprep.subr.mxu0 0.0
        %2264 = vmatpush1.msra.mxu0 0.0
        %2265 = vmatprep.subr.mxu0 0.0
        %2266 = vmatpush1.msra.mxu0 0.0
        %2267 = vmatprep.subr.mxu0 0.0
        %2268 = vmatpush1.msra.mxu0 0.0
        %2269 = vmatprep.subr.mxu0 0.0
        %2270 = vmatpush1.msra.mxu0 0.0
        %2271 = vmatprep.subr.mxu0 0.0
        %2272 = vmatpush1.msra.mxu0 0.0
        %2273 = vmatprep.subr.mxu0 0.0
        %2274 = vmatpush1.msra.mxu0 0.0
        %2275 = vmatprep.subr.mxu0 0.0
        %2276 = vmatpush1.msra.mxu0 0.0
        %2277 = vmatprep.subr.mxu0 0.0
        %2278 = vmatpush1.msra.mxu0 0.0
        %2279 = vmatprep.subr.mxu0 0.0
        %2280 = vmatpush1.msra.mxu0 0.0
        %2281 = vmatprep.subr.mxu0 0.0
        %2282 = vmatpush1.msra.mxu0 0.0
        %2283 = vmatprep.subr.mxu0 0.0
        %2284 = vmatpush1.msra.mxu0 0.0
        %2285 = vmatprep.subr.mxu0 0.0
        %2286 = vmatpush1.msra.mxu0 0.0
        %2287 = vmatprep.subr.mxu0 0.0
        %2288 = vmatpush1.msra.mxu0 0.0
        %2289 = vmatprep.mubr.f32.mxu0 0.0
        %2290 = vmatmul.mubr.f32.gmra.mrb[0].mxu0 %v2223
        %v2291 = vpop.f32.mrb[0].mxu0
        %v2292 = vadd.f32 0.0, %v2291
        %v2293 = vpop.f32.mrb[0].mxu0
        %2294 = vdwg.mxu0
        %2295 = vrot.lane.b32.xlu0 %v1792, 104
        %v2296 = vpop.permute.xlu0 %2295
        %2297 = vrot.lane.b32.xlu0 %v1792, 72
        %v2298 = vpop.permute.xlu0 %2297
        %v2299 = vsel %vm724, %v2296, 0
        %v2301 = vsel %vm724, %v2298, 0
        %2303 = vmatprep.subr.mxu0 0.0
        %2304 = vmatpush1.xpose.msra.mxu0 %v2301
        %2305 = vmatprep.subr.mxu0 0.0
        %2306 = vmatpush1.xpose.msra.mxu0 0.0
        %2307 = vmatprep.subr.mxu0 0.0
        %2308 = vmatpush1.xpose.msra.mxu0 0.0
        %2309 = vmatprep.subr.mxu0 0.0
        %2310 = vmatpush1.xpose.msra.mxu0 0.0
        %2311 = vmatprep.subr.mxu0 0.0
        %2312 = vmatpush1.xpose.msra.mxu0 0.0
        %2313 = vmatprep.subr.mxu0 0.0
        %2314 = vmatpush1.xpose.msra.mxu0 0.0
        %2315 = vmatprep.subr.mxu0 0.0
        %2316 = vmatpush1.xpose.msra.mxu0 0.0
        %2317 = vmatprep.subr.mxu0 0.0
        %2318 = vmatpush1.xpose.msra.mxu0 0.0
        %2319 = vmatprep.subr.mxu0 0.0
        %2320 = vmatpush1.xpose.msra.mxu0 0.0
        %2321 = vmatprep.subr.mxu0 0.0
        %2322 = vmatpush1.xpose.msra.mxu0 0.0
        %2323 = vmatprep.subr.mxu0 0.0
        %2324 = vmatpush1.xpose.msra.mxu0 0.0
        %2325 = vmatprep.subr.mxu0 0.0
        %2326 = vmatpush1.xpose.msra.mxu0 0.0
        %2327 = vmatprep.subr.mxu0 0.0
        %2328 = vmatpush1.xpose.msra.mxu0 0.0
        %2329 = vmatprep.subr.mxu0 0.0
        %2330 = vmatpush1.xpose.msra.mxu0 0.0
        %2331 = vmatprep.subr.mxu0 0.0
        %2332 = vmatpush1.xpose.msra.mxu0 0.0
        %2333 = vmatprep.subr.mxu0 0.0
        %2334 = vmatpush1.xpose.msra.mxu0 0.0
        %2335 = vmatprep.subr.mxu0 0.0
        %2336 = vmatpush1.xpose.msra.mxu0 0.0
        %2337 = vmatprep.subr.mxu0 0.0
        %2338 = vmatpush1.xpose.msra.mxu0 0.0
        %2339 = vmatprep.subr.mxu0 0.0
        %2340 = vmatpush1.xpose.msra.mxu0 0.0
        %2341 = vmatprep.subr.mxu0 0.0
        %2342 = vmatpush1.xpose.msra.mxu0 0.0
        %2343 = vmatprep.subr.mxu0 0.0
        %2344 = vmatpush1.xpose.msra.mxu0 0.0
        %2345 = vmatprep.subr.mxu0 0.0
        %2346 = vmatpush1.xpose.msra.mxu0 0.0
        %2347 = vmatprep.subr.mxu0 0.0
        %2348 = vmatpush1.xpose.msra.mxu0 0.0
        %2349 = vmatprep.subr.mxu0 0.0
        %2350 = vmatpush1.xpose.msra.mxu0 0.0
        %2351 = vmatprep.subr.mxu0 0.0
        %2352 = vmatpush1.xpose.msra.mxu0 0.0
        %2353 = vmatprep.subr.mxu0 0.0
        %2354 = vmatpush1.xpose.msra.mxu0 0.0
        %2355 = vmatprep.subr.mxu0 0.0
        %2356 = vmatpush1.xpose.msra.mxu0 0.0
        %2357 = vmatprep.subr.mxu0 0.0
        %2358 = vmatpush1.xpose.msra.mxu0 0.0
        %2359 = vmatprep.subr.mxu0 0.0
        %2360 = vmatpush1.xpose.msra.mxu0 0.0
        %2361 = vmatprep.subr.mxu0 0.0
        %2362 = vmatpush1.xpose.msra.mxu0 0.0
        %2363 = vmatprep.subr.mxu0 0.0
        %2364 = vmatpush1.xpose.msra.mxu0 0.0
        %2365 = vmatprep.subr.mxu0 0.0
        %2366 = vmatpush1.xpose.msra.mxu0 0.0
        %2367 = vmatprep.mubr.f32.mxu0 0.0
        %2368 = vmatmul.mubr.f32.gmra.mrb[0].mxu0 %v2299
        %v2369 = vpop.f32.mrb[0].mxu0
        %v2370 = vadd.f32 0.0, %v2369
        %v2371 = vpop.f32.mrb[0].mxu0
        %2372 = vdwg.mxu0
        %v2373 = vmul.f32 %v2370, 0.35355338
        %v2374 = vadd.f32 %v2373, %v642
        %v2375 = vsel %vm724, %v2374, -inf
        %2376 = vmax.xlane.f32.xlu0 %v2375
        %v2377 = vpop.xlane.xlu0 %2376
        %v2378 = vsub.f32 %v2374, %v2377
        %v2379 = vmul.f32 %v2378, 1.442695
        %v2380 = vpow.pop %v2379
        %v2381 = vsel %vm724, %v2380, 0.0
        %2382 = vadd.xlane.f32.xlu0 %v2381
        %v2383 = vpop.xlane.xlu0 %2382
        %v2384 = vrcp.pop %v2383
        %v2385 = vmul.f32 %v2380, %v2384
        %2386 = vrot.lane.b32.xlu0 %v1792, 40
        %v2387 = vpop.permute.xlu0 %2386
        %v2390 = vsel %vm724, %v2385, 0
        %2392 = vmatprep.subr.mxu0 0.0
        %2393 = vmatpush1.msra.mxu0 %v2387
        %2394 = vmatprep.subr.mxu0 0.0
        %2395 = vmatpush1.msra.mxu0 0.0
        %2396 = vmatprep.subr.mxu0 0.0
        %2397 = vmatpush1.msra.mxu0 0.0
        %2398 = vmatprep.subr.mxu0 0.0
        %2399 = vmatpush1.msra.mxu0 0.0
        %2400 = vmatprep.subr.mxu0 0.0
        %2401 = vmatpush1.msra.mxu0 0.0
        %2402 = vmatprep.subr.mxu0 0.0
        %2403 = vmatpush1.msra.mxu0 0.0
        %2404 = vmatprep.subr.mxu0 0.0
        %2405 = vmatpush1.msra.mxu0 0.0
        %2406 = vmatprep.subr.mxu0 0.0
        %2407 = vmatpush1.msra.mxu0 0.0
        %2408 = vmatprep.subr.mxu0 0.0
        %2409 = vmatpush1.msra.mxu0 0.0
        %2410 = vmatprep.subr.mxu0 0.0
        %2411 = vmatpush1.msra.mxu0 0.0
        %2412 = vmatprep.subr.mxu0 0.0
        %2413 = vmatpush1.msra.mxu0 0.0
        %2414 = vmatprep.subr.mxu0 0.0
        %2415 = vmatpush1.msra.mxu0 0.0
        %2416 = vmatprep.subr.mxu0 0.0
        %2417 = vmatpush1.msra.mxu0 0.0
        %2418 = vmatprep.subr.mxu0 0.0
        %2419 = vmatpush1.msra.mxu0 0.0
        %2420 = vmatprep.subr.mxu0 0.0
        %2421 = vmatpush1.msra.mxu0 0.0
        %2422 = vmatprep.subr.mxu0 0.0
        %2423 = vmatpush1.msra.mxu0 0.0
        %2424 = vmatprep.subr.mxu0 0.0
        %2425 = vmatpush1.msra.mxu0 0.0
        %2426 = vmatprep.subr.mxu0 0.0
        %2427 = vmatpush1.msra.mxu0 0.0
        %2428 = vmatprep.subr.mxu0 0.0
        %2429 = vmatpush1.msra.mxu0 0.0
        %2430 = vmatprep.subr.mxu0 0.0
        %2431 = vmatpush1.msra.mxu0 0.0
        %2432 = vmatprep.subr.mxu0 0.0
        %2433 = vmatpush1.msra.mxu0 0.0
        %2434 = vmatprep.subr.mxu0 0.0
        %2435 = vmatpush1.msra.mxu0 0.0
        %2436 = vmatprep.subr.mxu0 0.0
        %2437 = vmatpush1.msra.mxu0 0.0
        %2438 = vmatprep.subr.mxu0 0.0
        %2439 = vmatpush1.msra.mxu0 0.0
        %2440 = vmatprep.subr.mxu0 0.0
        %2441 = vmatpush1.msra.mxu0 0.0
        %2442 = vmatprep.subr.mxu0 0.0
        %2443 = vmatpush1.msra.mxu0 0.0
        %2444 = vmatprep.subr.mxu0 0.0
        %2445 = vmatpush1.msra.mxu0 0.0
        %2446 = vmatprep.subr.mxu0 0.0
        %2447 = vmatpush1.msra.mxu0 0.0
        %2448 = vmatprep.subr.mxu0 0.0
        %2449 = vmatpush1.msra.mxu0 0.0
        %2450 = vmatprep.subr.mxu0 0.0
        %2451 = vmatpush1.msra.mxu0 0.0
        %2452 = vmatprep.subr.mxu0 0.0
        %2453 = vmatpush1.msra.mxu0 0.0
        %2454 = vmatprep.subr.mxu0 0.0
        %2455 = vmatpush1.msra.mxu0 0.0
        %2456 = vmatprep.mubr.f32.mxu0 0.0
        %2457 = vmatmul.mubr.f32.gmra.mrb[0].mxu0 %v2390
        %v2458 = vpop.f32.mrb[0].mxu0
        %v2459 = vadd.f32 0.0, %v2458
        %v2460 = vpop.f32.mrb[0].mxu0
        %2461 = vdwg.mxu0
        %2463 = vrot.lane.b32.xlu0 %v2125, 8
        %v2464 = vpop.permute.xlu0 %2463
        %2467 = vrot.lane.b32.xlu0 %v2292, 16
        %v2468 = vpop.permute.xlu0 %2467
        %2471 = vrot.lane.b32.xlu0 %v2459, 24
        %v2472 = vpop.permute.xlu0 %2471
        %v2474 = vsel %vm724, %v1958, %v2464
        %v2475 = vsel %vm1402, %v2474, %v2468
        %v2476 = vsel %vm1404, %v2475, %v2472
        %s2477 = scalar_lea.vmem %s4, 32
        %v2478 = vld [vmem:[%s2477] sm:$0xff]
        %v2479 = vld [vmem:[%s2477 + $0x8] sm:$0xff]
        %v2480 = vld [vmem:[%s2477 + $0x10] sm:$0xff]
        %v2481 = vld [vmem:[%s2477 + $0x18] sm:$0xff]
        %v2483 = vsel %vm647, %v2476, 0
        %2485 = vmatprep.subr.mxu0 0.0
        %2486 = vmatpush1.msra.mxu0 %v2478
        %2487 = vmatprep.subr.mxu0 0.0
        %2488 = vmatpush1.msra.mxu0 %v2479
        %2489 = vmatprep.subr.mxu0 0.0
        %2490 = vmatpush1.msra.mxu0 %v2480
        %2491 = vmatprep.subr.mxu0 0.0
        %2492 = vmatpush1.msra.mxu0 %v2481
        %2493 = vmatprep.subr.mxu0 0.0
        %2494 = vmatpush1.msra.mxu0 0.0
        %2495 = vmatprep.subr.mxu0 0.0
        %2496 = vmatpush1.msra.mxu0 0.0
        %2497 = vmatprep.subr.mxu0 0.0
        %2498 = vmatpush1.msra.mxu0 0.0
        %2499 = vmatprep.subr.mxu0 0.0
        %2500 = vmatpush1.msra.mxu0 0.0
        %2501 = vmatprep.subr.mxu0 0.0
        %2502 = vmatpush1.msra.mxu0 0.0
        %2503 = vmatprep.subr.mxu0 0.0
        %2504 = vmatpush1.msra.mxu0 0.0
        %2505 = vmatprep.subr.mxu0 0.0
        %2506 = vmatpush1.msra.mxu0 0.0
        %2507 = vmatprep.subr.mxu0 0.0
        %2508 = vmatpush1.msra.mxu0 0.0
        %2509 = vmatprep.subr.mxu0 0.0
        %2510 = vmatpush1.msra.mxu0 0.0
        %2511 = vmatprep.subr.mxu0 0.0
        %2512 = vmatpush1.msra.mxu0 0.0
        %2513 = vmatprep.subr.mxu0 0.0
        %2514 = vmatpush1.msra.mxu0 0.0
        %2515 = vmatprep.subr.mxu0 0.0
        %2516 = vmatpush1.msra.mxu0 0.0
        %2517 = vmatprep.subr.mxu0 0.0
        %2518 = vmatpush1.msra.mxu0 0.0
        %2519 = vmatprep.subr.mxu0 0.0
        %2520 = vmatpush1.msra.mxu0 0.0
        %2521 = vmatprep.subr.mxu0 0.0
        %2522 = vmatpush1.msra.mxu0 0.0
        %2523 = vmatprep.subr.mxu0 0.0
        %2524 = vmatpush1.msra.mxu0 0.0
        %2525 = vmatprep.subr.mxu0 0.0
        %2526 = vmatpush1.msra.mxu0 0.0
        %2527 = vmatprep.subr.mxu0 0.0
        %2528 = vmatpush1.msra.mxu0 0.0
        %2529 = vmatprep.subr.mxu0 0.0
        %2530 = vmatpush1.msra.mxu0 0.0
        %2531 = vmatprep.subr.mxu0 0.0
        %2532 = vmatpush1.msra.mxu0 0.0
        %2533 = vmatprep.subr.mxu0 0.0
        %2534 = vmatpush1.msra.mxu0 0.0
        %2535 = vmatprep.subr.mxu0 0.0
        %2536 = vmatpush1.msra.mxu0 0.0
        %2537 = vmatprep.subr.mxu0 0.0
        %2538 = vmatpush1.msra.mxu0 0.0
        %2539 = vmatprep.subr.mxu0 0.0
        %2540 = vmatpush1.msra.mxu0 0.0
        %2541 = vmatprep.subr.mxu0 0.0
        %2542 = vmatpush1.msra.mxu0 0.0
        %2543 = vmatprep.subr.mxu0 0.0
        %2544 = vmatpush1.msra.mxu0 0.0
        %2545 = vmatprep.subr.mxu0 0.0
        %2546 = vmatpush1.msra.mxu0 0.0
        %2547 = vmatprep.subr.mxu0 0.0
        %2548 = vmatpush1.msra.mxu0 0.0
        %2549 = vmatprep.mubr.f32.mxu0 0.0
        %2550 = vmatmul.mubr.f32.gmra.mrb[0].mxu0 %v2483
        %v2551 = vpop.f32.mrb[0].mxu0
        %v2552 = vadd.f32 %v1716, %v2551
        %v2553 = vpop.f32.mrb[0].mxu0
        %2554 = vdwg.mxu0
        %s2555 = scalar_lea.vmem %s5, 1
        %v2556 = vld [vmem:[%s2555] sm:$0x1]
        %s2557 = scalar_lea.vmem %s6, 1
        %v2558 = vld [vmem:[%s2557] sm:$0x1]
        %v2559 = vsel %vm647, %v2552, 0.0
        %2560 = vadd.xlane.f32.xlu0 %v2559
        %v2561 = vpop.xlane.xlu0 %2560
        %v2562 = vmul.f32 %v2561, %v1488
        %v2563 = vsub.f32 %v2552, %v2562
        %v2564 = vmul.f32 %v2563, %v2563
        %v2565 = vsel %vm647, %v2564, 0.0
        %2566 = vadd.xlane.f32.xlu0 %v2565
        %v2567 = vpop.xlane.xlu0 %2566
        %v2568 = vmul.f32 %v2567, %v1488
        %v2569 = vadd.f32 %v2568, 1e-05
        %v2570 = vrsqrt.pop %v2569
        %v2571 = vmul.f32 %v2563, %v2570
        %v2573 = vlaneseq
        %v2574 = vshrl.u32 %v2573, 7
        %v2575 = vsub.s32 0, %v2574
        %v2576 = vrot.slane %v2556, %v2575
        %v2578 = vmul.f32 %v2571, %v2576
        %v2580 = vlaneseq
        %v2581 = vshrl.u32 %v2580, 7
        %v2582 = vsub.s32 0, %v2581
        %v2583 = vrot.slane %v2558, %v2582
        %v2585 = vadd.f32 %v2578, %v2583
        %s2586 = scalar_lea.vmem %s9, 32
        %v2587 = vld [vmem:[%s2586] sm:$0xff]
        %v2588 = vld [vmem:[%s2586 + $0x8] sm:$0xff]
        %v2589 = vld [vmem:[%s2586 + $0x10] sm:$0xff]
        %v2590 = vld [vmem:[%s2586 + $0x18] sm:$0xff]
        %s2591 = scalar_lea.vmem %s10, 1
        %v2592 = vld [vmem:[%s2591] sm:$0x1]
        %v2594 = vlaneseq
        %v2595 = vshrl.u32 %v2594, 7
        %v2596 = vsub.s32 0, %v2595
        %v2597 = vrot.slane %v2592, %v2596
        %v2600 = vsel %vm647, %v2585, 0
        %2602 = vmatprep.subr.mxu0 0.0
        %2603 = vmatpush1.msra.mxu0 %v2587
        %2604 = vmatprep.subr.mxu0 0.0
        %2605 = vmatpush1.msra.mxu0 %v2588
        %2606 = vmatprep.subr.mxu0 0.0
        %2607 = vmatpush1.msra.mxu0 %v2589
        %2608 = vmatprep.subr.mxu0 0.0
        %2609 = vmatpush1.msra.mxu0 %v2590
        %2610 = vmatprep.subr.mxu0 0.0
        %2611 = vmatpush1.msra.mxu0 0.0
        %2612 = vmatprep.subr.mxu0 0.0
        %2613 = vmatpush1.msra.mxu0 0.0
        %2614 = vmatprep.subr.mxu0 0.0
        %2615 = vmatpush1.msra.mxu0 0.0
        %2616 = vmatprep.subr.mxu0 0.0
        %2617 = vmatpush1.msra.mxu0 0.0
        %2618 = vmatprep.subr.mxu0 0.0
        %2619 = vmatpush1.msra.mxu0 0.0
        %2620 = vmatprep.subr.mxu0 0.0
        %2621 = vmatpush1.msra.mxu0 0.0
        %2622 = vmatprep.subr.mxu0 0.0
        %2623 = vmatpush1.msra.mxu0 0.0
        %2624 = vmatprep.subr.mxu0 0.0
        %2625 = vmatpush1.msra.mxu0 0.0
        %2626 = vmatprep.subr.mxu0 0.0
        %2627 = vmatpush1.msra.mxu0 0.0
        %2628 = vmatprep.subr.mxu0 0.0
        %2629 = vmatpush1.msra.mxu0 0.0
        %2630 = vmatprep.subr.mxu0 0.0
        %2631 = vmatpush1.msra.mxu0 0.0
        %2632 = vmatprep.subr.mxu0 0.0
        %2633 = vmatpush1.msra.mxu0 0.0
        %2634 = vmatprep.subr.mxu0 0.0
        %2635 = vmatpush1.msra.mxu0 0.0
        %2636 = vmatprep.subr.mxu0 0.0
        %2637 = vmatpush1.msra.mxu0 0.0
        %2638 = vmatprep.subr.mxu0 0.0
        %2639 = vmatpush1.msra.mxu0 0.0
        %2640 = vmatprep.subr.mxu0 0.0
        %2641 = vmatpush1.msra.mxu0 0.0
        %2642 = vmatprep.subr.mxu0 0.0
        %2643 = vmatpush1.msra.mxu0 0.0
        %2644 = vmatprep.subr.mxu0 0.0
        %2645 = vmatpush1.msra.mxu0 0.0
        %2646 = vmatprep.subr.mxu0 0.0
        %2647 = vmatpush1.msra.mxu0 0.0
        %2648 = vmatprep.subr.mxu0 0.0
        %2649 = vmatpush1.msra.mxu0 0.0
        %2650 = vmatprep.subr.mxu0 0.0
        %2651 = vmatpush1.msra.mxu0 0.0
        %2652 = vmatprep.subr.mxu0 0.0
        %2653 = vmatpush1.msra.mxu0 0.0
        %2654 = vmatprep.subr.mxu0 0.0
        %2655 = vmatpush1.msra.mxu0 0.0
        %2656 = vmatprep.subr.mxu0 0.0
        %2657 = vmatpush1.msra.mxu0 0.0
        %2658 = vmatprep.subr.mxu0 0.0
        %2659 = vmatpush1.msra.mxu0 0.0
        %2660 = vmatprep.subr.mxu0 0.0
        %2661 = vmatpush1.msra.mxu0 0.0
        %2662 = vmatprep.subr.mxu0 0.0
        %2663 = vmatpush1.msra.mxu0 0.0
        %2664 = vmatprep.subr.mxu0 0.0
        %2665 = vmatpush1.msra.mxu0 0.0
        %2666 = vmatprep.mubr.f32.mxu0 0.0
        %2667 = vmatmul.mubr.f32.gmra.mrb[0].mxu0 %v2600
        %v2668 = vpop.f32.mrb[0].mxu0
        %v2669 = vadd.f32 %v2597, %v2668
        %v2670 = vpop.f32.mrb[0].mxu0
        %2671 = vdwg.mxu0
        %v2672 = vmax.f32 %v2669, 0.0
        %s2673 = scalar_lea.vmem %s11, 64
        %v2674 = vld [vmem:[%s2673] sm:$0xff]
        %v2675 = vld [vmem:[%s2673 + $0x8] sm:$0xff]
        %v2676 = vld [vmem:[%s2673 + $0x10] sm:$0xff]
        %v2677 = vld [vmem:[%s2673 + $0x18] sm:$0xff]
        %v2678 = vld [vmem:[%s2673 + $0x20] sm:$0xff]
        %v2679 = vld [vmem:[%s2673 + $0x28] sm:$0xff]
        %v2680 = vld [vmem:[%s2673 + $0x30] sm:$0xff]
        %v2681 = vld [vmem:[%s2673 + $0x38] sm:$0xff]
        %s2682 = scalar_lea.vmem %s12, 1
        %v2683 = vld [vmem:[%s2682] sm:$0x1]
        %v2685 = vlaneseq
        %v2686 = vshrl.u32 %v2685, 7
        %v2687 = vsub.s32 0, %v2686
        %v2688 = vrot.slane %v2683, %v2687
        %v2691 = vsel %vm1613, %v2672, 0
        %2693 = vmatprep.subr.mxu0 0.0
        %2694 = vmatpush1.msra.mxu0 %v2674
        %2695 = vmatprep.subr.mxu0 0.0
        %2696 = vmatpush1.msra.mxu0 %v2675
        %2697 = vmatprep.subr.mxu0 0.0
        %2698 = vmatpush1.msra.mxu0 %v2676
        %2699 = vmatprep.subr.mxu0 0.0
        %2700 = vmatpush1.msra.mxu0 %v2677
        %2701 = vmatprep.subr.mxu0 0.0
        %2702 = vmatpush1.msra.mxu0 %v2678
        %2703 = vmatprep.subr.mxu0 0.0
        %2704 = vmatpush1.msra.mxu0 %v2679
        %2705 = vmatprep.subr.mxu0 0.0
        %2706 = vmatpush1.msra.mxu0 %v2680
        %2707 = vmatprep.subr.mxu0 0.0
        %2708 = vmatpush1.msra.mxu0 %v2681
        %2709 = vmatprep.subr.mxu0 0.0
        %2710 = vmatpush1.msra.mxu0 0.0
        %2711 = vmatprep.subr.mxu0 0.0
        %2712 = vmatpush1.msra.mxu0 0.0
        %2713 = vmatprep.subr.mxu0 0.0
        %2714 = vmatpush1.msra.mxu0 0.0
        %2715 = vmatprep.subr.mxu0 0.0
        %2716 = vmatpush1.msra.mxu0 0.0
        %2717 = vmatprep.subr.mxu0 0.0
        %2718 = vmatpush1.msra.mxu0 0.0
        %2719 = vmatprep.subr.mxu0 0.0
        %2720 = vmatpush1.msra.mxu0 0.0
        %2721 = vmatprep.subr.mxu0 0.0
        %2722 = vmatpush1.msra.mxu0 0.0
        %2723 = vmatprep.subr.mxu0 0.0
        %2724 = vmatpush1.msra.mxu0 0.0
        %2725 = vmatprep.subr.mxu0 0.0
        %2726 = vmatpush1.msra.mxu0 0.0
        %2727 = vmatprep.subr.mxu0 0.0
        %2728 = vmatpush1.msra.mxu0 0.0
        %2729 = vmatprep.subr.mxu0 0.0
        %2730 = vmatpush1.msra.mxu0 0.0
        %2731 = vmatprep.subr.mxu0 0.0
        %2732 = vmatpush1.msra.mxu0 0.0
        %2733 = vmatprep.subr.mxu0 0.0
        %2734 = vmatpush1.msra.mxu0 0.0
        %2735 = vmatprep.subr.mxu0 0.0
        %2736 = vmatpush1.msra.mxu0 0.0
        %2737 = vmatprep.subr.mxu0 0.0
        %2738 = vmatpush1.msra.mxu0 0.0
        %2739 = vmatprep.subr.mxu0 0.0
        %2740 = vmatpush1.msra.mxu0 0.0
        %2741 = vmatprep.subr.mxu0 0.0
        %2742 = vmatpush1.msra.mxu0 0.0
        %2743 = vmatprep.subr.mxu0 0.0
        %2744 = vmatpush1.msra.mxu0 0.0
        %2745 = vmatprep.subr.mxu0 0.0
        %2746 = vmatpush1.msra.mxu0 0.0
        %2747 = vmatprep.subr.mxu0 0.0
        %2748 = vmatpush1.msra.mxu0 0.0
        %2749 = vmatprep.subr.mxu0 0.0
        %2750 = vmatpush1.msra.mxu0 0.0
        %2751 = vmatprep.subr.mxu0 0.0
        %2752 = vmatpush1.msra.mxu0 0.0
        %2753 = vmatprep.subr.mxu0 0.0
        %2754 = vmatpush1.msra.mxu0 0.0
        %2755 = vmatprep.subr.mxu0 0.0
        %2756 = vmatpush1.msra.mxu0 0.0
        %2757 = vmatprep.mubr.f32.mxu0 0.0
        %2758 = vmatmul.mubr.f32.gmra.mrb[0].mxu0 %v2691
        %v2759 = vpop.f32.mrb[0].mxu0
        %v2760 = vadd.f32 %v2688, %v2759
        %v2761 = vpop.f32.mrb[0].mxu0
        %2762 = vdwg.mxu0
        %v2763 = vadd.f32 %v2760, %v2585
        %s2764 = scalar_lea.vmem %s7, 1
        %v2765 = vld [vmem:[%s2764] sm:$0x1]
        %s2766 = scalar_lea.vmem %s8, 1
        %v2767 = vld [vmem:[%s2766] sm:$0x1]
        %v2768 = vsel %vm647, %v2763, 0.0
        %2769 = vadd.xlane.f32.xlu0 %v2768
        %v2770 = vpop.xlane.xlu0 %2769
        %v2771 = vmul.f32 %v2770, %v1488
        %v2772 = vsub.f32 %v2763, %v2771
        %v2773 = vmul.f32 %v2772, %v2772
        %v2774 = vsel %vm647, %v2773, 0.0
        %2775 = vadd.xlane.f32.xlu0 %v2774
        %v2776 = vpop.xlane.xlu0 %2775
        %v2777 = vmul.f32 %v2776, %v1488
        %v2778 = vadd.f32 %v2777, 1e-05
        %v2779 = vrsqrt.pop %v2778
        %v2780 = vmul.f32 %v2772, %v2779
        %v2782 = vlaneseq
        %v2783 = vshrl.u32 %v2782, 7
        %v2784 = vsub.s32 0, %v2783
        %v2785 = vrot.slane %v2765, %v2784
        %v2787 = vmul.f32 %v2780, %v2785
        %v2789 = vlaneseq
        %v2790 = vshrl.u32 %v2789, 7
        %v2791 = vsub.s32 0, %v2790
        %v2792 = vrot.slane %v2767, %v2791
        %v2794 = vadd.f32 %v2787, %v2792
        %v2795 = vld [vmem:[%s13] sm:$0x1]
        %v2796 = vld [vmem:[%s14] sm:$0x1]
        %vm2797 = vcmask 261127
        %v2798 = vsel %vm2797, %v2794, 0.0
        %2799 = vadd.xlane.f32.xlu0 %v2798
        %v2800 = vpop.xlane.xlu0 %2799
        %v2801 = vmul.f32 %v2800, %v1488
        %v2802 = vsub.f32 %v2794, %v2801
        %v2803 = vmul.f32 %v2802, %v2802
        %v2804 = vsel %vm2797, %v2803, 0.0
        %2805 = vadd.xlane.f32.xlu0 %v2804
        %v2806 = vpop.xlane.xlu0 %2805
        %v2807 = vmul.f32 %v2806, %v1488
        %v2808 = vadd.f32 %v2807, 1e-05
        %v2809 = vrsqrt.pop %v2808
        %v2810 = vmul.f32 %v2802, %v2809
        %v2812 = vlaneseq
        %v2813 = vshrl.u32 %v2812, 7
        %v2814 = vsub.s32 0, %v2813
        %v2815 = vrot.slane %v2795, %v2814
        %v2817 = vmul.f32 %v2810, %v2815
        %v2819 = vlaneseq
        %v2820 = vshrl.u32 %v2819, 7
        %v2821 = vsub.s32 0, %v2820
        %v2822 = vrot.slane %v2796, %v2821
        %v2824 = vadd.f32 %v2817, %v2822
        %v2825 = vld [vmem:[%s15] sm:$0xff]
        %v2826 = vld [vmem:[%s15 + $0x8] sm:$0xff]
        %v2827 = vld [vmem:[%s15 + $0x10] sm:$0xff]
        %v2828 = vld [vmem:[%s15 + $0x18] sm:$0xff]
        %v2829 = vld [vmem:[%s16] sm:$0x1]
        %v2831 = vrot.slane %v2824, 7
        %v2832 = vsel %vm647, %v2831, 0
        %2834 = vmatprep.subr.mxu0 0.0
        %2835 = vmatpush1.msra.mxu0 %v2825
        %2836 = vmatprep.subr.mxu0 0.0
        %2837 = vmatpush1.msra.mxu0 %v2826
        %2838 = vmatprep.subr.mxu0 0.0
        %2839 = vmatpush1.msra.mxu0 %v2827
        %2840 = vmatprep.subr.mxu0 0.0
        %2841 = vmatpush1.msra.mxu0 %v2828
        %2842 = vmatprep.subr.mxu0 0.0
        %2843 = vmatpush1.msra.mxu0 0.0
        %2844 = vmatprep.subr.mxu0 0.0
        %2845 = vmatpush1.msra.mxu0 0.0
        %2846 = vmatprep.subr.mxu0 0.0
        %2847 = vmatpush1.msra.mxu0 0.0
        %2848 = vmatprep.subr.mxu0 0.0
        %2849 = vmatpush1.msra.mxu0 0.0
        %2850 = vmatprep.subr.mxu0 0.0
        %2851 = vmatpush1.msra.mxu0 0.0
        %2852 = vmatprep.subr.mxu0 0.0
        %2853 = vmatpush1.msra.mxu0 0.0
        %2854 = vmatprep.subr.mxu0 0.0
        %2855 = vmatpush1.msra.mxu0 0.0
        %2856 = vmatprep.subr.mxu0 0.0
        %2857 = vmatpush1.msra.mxu0 0.0
        %2858 = vmatprep.subr.mxu0 0.0
        %2859 = vmatpush1.msra.mxu0 0.0
        %2860 = vmatprep.subr.mxu0 0.0
        %2861 = vmatpush1.msra.mxu0 0.0
        %2862 = vmatprep.subr.mxu0 0.0
        %2863 = vmatpush1.msra.mxu0 0.0
        %2864 = vmatprep.subr.mxu0 0.0
        %2865 = vmatpush1.msra.mxu0 0.0
        %2866 = vmatprep.subr.mxu0 0.0
        %2867 = vmatpush1.msra.mxu0 0.0
        %2868 = vmatprep.subr.mxu0 0.0
        %2869 = vmatpush1.msra.mxu0 0.0
        %2870 = vmatprep.subr.mxu0 0.0
        %2871 = vmatpush1.msra.mxu0 0.0
        %2872 = vmatprep.subr.mxu0 0.0
        %2873 = vmatpush1.msra.mxu0 0.0
        %2874 = vmatprep.subr.mxu0 0.0
        %2875 = vmatpush1.msra.mxu0 0.0
        %2876 = vmatprep.subr.mxu0 0.0
        %2877 = vmatpush1.msra.mxu0 0.0
        %2878 = vmatprep.subr.mxu0 0.0
        %2879 = vmatpush1.msra.mxu0 0.0
        %2880 = vmatprep.subr.mxu0 0.0
        %2881 = vmatpush1.msra.mxu0 0.0
        %2882 = vmatprep.subr.mxu0 0.0
        %2883 = vmatpush1.msra.mxu0 0.0
        %2884 = vmatprep.subr.mxu0 0.0
        %2885 = vmatpush1.msra.mxu0 0.0
        %2886 = vmatprep.subr.mxu0 0.0
        %2887 = vmatpush1.msra.mxu0 0.0
        %2888 = vmatprep.subr.mxu0 0.0
        %2889 = vmatpush1.msra.mxu0 0.0
        %2890 = vmatprep.subr.mxu0 0.0
        %2891 = vmatpush1.msra.mxu0 0.0
        %2892 = vmatprep.subr.mxu0 0.0
        %2893 = vmatpush1.msra.mxu0 0.0
        %2894 = vmatprep.subr.mxu0 0.0
        %2895 = vmatpush1.msra.mxu0 0.0
        %2896 = vmatprep.subr.mxu0 0.0
        %2897 = vmatpush1.msra.mxu0 0.0
        %2898 = vmatprep.mubr.f32.mxu0 0.0
        %2899 = vmatmul.mubr.f32.gmra.mrb[0].mxu0 %v2832
        %v2900 = vpop.f32.mrb[0].mxu0
        %v2901 = vadd.f32 %v2829, %v2900
        %v2902 = vpop.f32.mrb[0].mxu0
        %2903 = vdwg.mxu0
        %2904 = vst [vmem:[%s538] sm:$0x1] %v2901
        %s2905 = sand.u32 %s401, 1
        %s2906 = scalar_lea.sflag [#allocation3], %s2905
        %s2907 = sand.u32 %s401, 1
        %s2908 = scalar_lea.vmem [#allocation2], %s2907
        // Predicated region
        $region89: #{tpu_custom_call.1} parent=87 // pred_check
          %p2909 = pneg %p411
        $region90: #{tpu_custom_call.1} parent=87 // pred_check_branch
          %2911 = sbr.rel (%p2909) target = $region92
        $region91: #{tpu_custom_call.1} parent=87 // pred_region
          %s2913 = ssub.s32 16, 16
          %2914 = vsyncadd %s2906, %s2913
          %s2915 = smul.addr %s31, 16
          %s2916 = scalar_lea.hbm %s17, %s2915
          %s2918 = sshll.u32 %s2908, 4
          %s2919 = int_to_ptr.vmem [resolvable:$true] %s2918
          %2921 = dma.vmem_to_hbm [thread:$0]  %s2919, 16, %s2916, %s2906
        $region92: #{tpu_custom_call.1} parent=87 // pred_fallthru
          _
      $region88: #{tpu_custom_call.1} parent=5 // pred_fallthru
        _
      %p2922 = scmp.le.s32.totalorder 2, %s26
      // Predicated region
      $region93: #{tpu_custom_call.1} parent=5 // pred_check
        %p2923 = pneg %p2922
      $region94: #{tpu_custom_call.1} parent=5 // pred_check_branch
        %2925 = sbr.rel (%p2923) target = $region96
      $region95: #{tpu_custom_call.1} parent=5 // pred_region
        %s2926 = ssub.s32 %s26, 2
        // Predicated region
        $region97: #{tpu_custom_call.1} parent=95 // pred_check
          %p2927 = pneg %p417
        $region98: #{tpu_custom_call.1} parent=95 // pred_check_branch
          %2929 = sbr.rel (%p2927) target = $region100
        $region99: #{tpu_custom_call.1} parent=95 // pred_region
          %s2930 = sand.u32 %s402, 1
          %s2931 = scalar_lea.sflag [#allocation3], %s2930
          %s2932 = sand.u32 %s402, 1
          %s2933 = scalar_lea.vmem [#allocation2], %s2932
          %2934 = dma.done %s2931, 16
        $region100: #{tpu_custom_call.1} parent=95 // pred_fallthru
          _
      $region96: #{tpu_custom_call.1} parent=5 // pred_fallthru
        _
    $region6: #{tpu_custom_call.1} parent=1 // loop_footer
      %s30 = sadd.s32 1, %s26
    $region7: #{tpu_custom_call.1} parent=1 // loop_footer_branch
      %25 = sbr.rel target = $region3
    $region8: #{tpu_custom_call.1} parent=1 // loop_exit
      _
    %2935 = vsyncpa [#allocation3], 1
    %s2936 = scalar_lea.sflag [#allocation3], 1
    %2937 = vsyncpa %s2936, 1

</llo_original>
